<compile_context>
chip_gen: v7x
topology: tpu7x:2x2x1
jax: 0.10.0
libtpu: 0.0.40
codegen_flags: <defaults>
</compile_context>

<pallas_src>
import functools

import jax
import jax.numpy as jnp
from jax.experimental import pallas as pl
from jax.experimental.pallas import tpu as pltpu


# --------------------------------------------------------------------------
# Fused Pallas kernel: all BiLSTM layers + FC in one body
# --------------------------------------------------------------------------
def fused_bilstm_fc_kernel(*refs, batch_p, seq, hidden_dim, num_layers):
    Bp, S, H, L = batch_p, seq, hidden_dim, num_layers
    G4 = 4 * H                                    # per-direction gate width
    x_ref = refs[0]
    layer_refs = refs[1:1 + 4 * L]                # per layer: w_cat, whh_f, whh_r, b_cat
    fc_w_ref = refs[1 + 4 * L]
    fc_b_ref = refs[2 + 4 * L]
    out_ref = refs[3 + 4 * L]
    hsf_ref = refs[4 + 4 * L]                     # (S*Bp, H) scratch, fwd hidden stack
    hsr_ref = refs[5 + 4 * L]                     # (S*Bp, H) scratch, rev hidden stack
    gx_ref = refs[6 + 4 * L]                      # (S*Bp, 8H) scratch, input projection

    # g-gate lane mask (lanes [2H, 3H) of a (Bp, 4H) gate tile use tanh);
    # hoisted once for all layers / directions / timesteps.
    lane = jax.lax.broadcasted_iota(jnp.int32, (Bp, G4), 1)
    g_mask = (lane >= 2 * H) & (lane < 3 * H)

    def activations(gates):
        # One full-tile tanh; sigmoid(x) = 0.5 * (1 + tanh(x / 2)) on non-g lanes.
        pre = jnp.where(g_mask, gates, 0.5 * gates)
        t = jnp.tanh(pre)
        return jnp.where(g_mask, t, 0.5 * t + 0.5)

    for layer in range(L):
        w_cat_ref, whh_f_ref, whh_r_ref, b_ref = layer_refs[4 * layer:4 * layer + 4]

        # Hoisted input projection for BOTH directions: one lane-dense (.., 8H) matmul.
        if layer == 0:
            gx_ref[...] = (jnp.dot(x_ref[...], w_cat_ref[...],
                                   preferred_element_type=jnp.float32)
                           + b_ref[...])
        else:
            # Split-weight form of "concat([hs_f, hs_r], axis=1) @ W" -> no lane concat.
            gx_ref[...] = (jnp.dot(hsf_ref[...], w_cat_ref[0:H, :],
                                   preferred_element_type=jnp.float32)
                           + jnp.dot(hsr_ref[...], w_cat_ref[H:2 * H, :],
                                     preferred_element_type=jnp.float32)
                           + b_ref[...])

        whh_f = whh_f_ref[...]                    # (H, 4H)
        whh_r = whh_r_ref[...]                    # (H, 4H)

        h_f = jnp.zeros((Bp, H), jnp.float32)
        c_f = jnp.zeros((Bp, H), jnp.float32)
        h_r = jnp.zeros((Bp, H), jnp.float32)
        c_r = jnp.zeros((Bp, H), jnp.float32)

        # Fully unrolled time loop: forward chain at time t, reverse chain at
        # time S-1-t, advanced together (independent -> latencies overlap).
        for t in range(S):
            tr = S - 1 - t
            gf = gx_ref[t * Bp:(t + 1) * Bp, 0:G4] + jnp.dot(
                h_f, whh_f, preferred_element_type=jnp.float32)          # (Bp, 4H)
            gr = gx_ref[tr * Bp:(tr + 1) * Bp, G4:2 * G4] + jnp.dot(
                h_r, whh_r, preferred_element_type=jnp.float32)          # (Bp, 4H)

            af = activations(gf)
            ar = activations(gr)

            c_f = af[:, H:2 * H] * c_f + af[:, 0:H] * af[:, 2 * H:3 * H]
            c_r = ar[:, H:2 * H] * c_r + ar[:, 0:H] * ar[:, 2 * H:3 * H]
            h_f = af[:, 3 * H:4 * H] * jnp.tanh(c_f)
            h_r = ar[:, 3 * H:4 * H] * jnp.tanh(c_r)

            # Aligned sublane-group stores into the per-layer hidden stacks.
            hsf_ref[t * Bp:(t + 1) * Bp, :] = h_f
            hsr_ref[tr * Bp:(tr + 1) * Bp, :] = h_r

    # Final FC as split-weight matmuls (no lane concat), single store.
    out_ref[...] = (jnp.dot(hsf_ref[...], fc_w_ref[0:H, :],
                            preferred_element_type=jnp.float32)
                    + jnp.dot(hsr_ref[...], fc_w_ref[H:2 * H, :],
                              preferred_element_type=jnp.float32)
                    + fc_b_ref[...]).astype(out_ref.dtype)


# --------------------------------------------------------------------------
# Wrapper: one pallas_call for the whole forward pass
# --------------------------------------------------------------------------
@functools.partial(jax.jit, static_argnames=("hidden_dim", "num_layers"))
def bilstm_model_forward(x, params, hidden_dim, num_layers):
    """Equivalent of BiLSTMModel.forward (dropout in eval mode -> identity)."""
    B, S = x.shape[0], x.shape[1]
    H = hidden_dim
    x3d = x.reshape(B, S, -1)                       # x.view(B, S, -1)
    D = x3d.shape[-1]

    # Pad batch to a full sublane group of 8 (pad rows are zeros, sliced off later).
    Bp = ((B + 7) // 8) * 8
    xp = jnp.pad(x3d, ((0, Bp - B), (0, 0), (0, 0)))
    # Time-major + flattened to 2-D so the kernel only sees 2-D operands.
    x2d = jnp.transpose(xp, (1, 0, 2)).reshape(S * Bp, D)

    args = [x2d]
    for layer in range(num_layers):
        p = params[f"layer{layer}"]
        w_cat = jnp.concatenate([p["w_ih_f"], p["w_ih_r"]], axis=1)   # (Din, 8H)
        b_cat = jnp.concatenate([p["b_f"], p["b_r"]], axis=1)          # (1, 8H)
        args += [w_cat, p["w_hh_f"], p["w_hh_r"], b_cat]
    args += [params["fc_w"], params["fc_b"]]
    out_dim = params["fc_w"].shape[1]

    y2d = pl.pallas_call(
        functools.partial(fused_bilstm_fc_kernel, batch_p=Bp, seq=S,
                          hidden_dim=H, num_layers=num_layers),
        out_shape=jax.ShapeDtypeStruct((S * Bp, out_dim), jnp.float32),
        in_specs=[pl.BlockSpec(memory_space=pltpu.MemorySpace.VMEM)] * len(args),
        out_specs=pl.BlockSpec(memory_space=pltpu.MemorySpace.VMEM),
        scratch_shapes=[
            pltpu.VMEM((S * Bp, H), jnp.float32),        # hs_f stack
            pltpu.VMEM((S * Bp, H), jnp.float32),        # hs_r stack
            pltpu.VMEM((S * Bp, 8 * H), jnp.float32),    # fused input projection
        ],
    )(*args)

    # TODO(synk): nn.Dropout(p=0.1) is stochastic in train mode; implemented as
    #             identity (eval/inference mode).
    y = y2d.reshape(S, Bp, out_dim)[:, :B, :]            # drop pad rows
    return jnp.transpose(y, (1, 0, 2))                   # (B, S, O)


# --------------------------------------------------------------------------
# Deterministic parameter init (PyTorch-style U(-1/sqrt(H), 1/sqrt(H)))
# --------------------------------------------------------------------------
def init_params(key, input_dim, hidden_dim, num_layers, output_dim):
    H = hidden_dim
    k = 1.0 / jnp.sqrt(H)
    params = {}
    for layer in range(num_layers):
        d_in = input_dim if layer == 0 else 2 * H
        lp = {}
        for dname in ("f", "r"):
            key, k1, k2, k3, k4 = jax.random.split(key, 5)
            w_ih = jax.random.uniform(k1, (4 * H, d_in), jnp.float32, -k, k)
            w_hh = jax.random.uniform(k2, (4 * H, H), jnp.float32, -k, k)
            b_ih = jax.random.uniform(k3, (4 * H,), jnp.float32, -k, k)
            b_hh = jax.random.uniform(k4, (4 * H,), jnp.float32, -k, k)
            lp[f"w_ih_{dname}"] = w_ih.T                    # (d_in, 4H)
            lp[f"w_hh_{dname}"] = w_hh.T                    # (H, 4H)
            lp[f"b_{dname}"] = (b_ih + b_hh)[None, :]       # (1, 4H)
        params[f"layer{layer}"] = lp

    kf = 1.0 / jnp.sqrt(2 * H)
    key, k1, k2 = jax.random.split(key, 3)
    params["fc_w"] = jax.random.uniform(
        k1, (output_dim, 2 * H), jnp.float32, -kf, kf).T     # (2H, O)
    params["fc_b"] = jax.random.uniform(
        k2, (output_dim,), jnp.float32, -kf, kf)[None, :]    # (1, O)
    return params


# --------------------------------------------------------------------------
# Pure-JAX reference (lax.scan) for correctness check
# --------------------------------------------------------------------------
def _ref_lstm_dir(x_tbd, w_ih, w_hh, b, H, reverse):
    T, B, _ = x_tbd.shape
    xs = x_tbd[::-1] if reverse else x_tbd

    def step(carry, x_t):
        h, c = carry
        g = x_t @ w_ih + h @ w_hh + b
        i = jax.nn.sigmoid(g[:, :H])
        f = jax.nn.sigmoid(g[:, H:2 * H])
        gg = jnp.tanh(g[:, 2 * H:3 * H])
        o = jax.nn.sigmoid(g[:, 3 * H:])
        c = f * c + i * gg
        h = o * jnp.tanh(c)
        return (h, c), h

    zeros = jnp.zeros((B, H), jnp.float32)
    _, hs = jax.lax.scan(step, (zeros, zeros), xs)
    return hs[::-1] if reverse else hs


def _ref_forward(x, params, hidden_dim, num_layers):
    B, S = x.shape[0], x.shape[1]
    x = x.reshape(B, S, -1)
    layer_in = jnp.transpose(x, (1, 0, 2))
    for layer in range(num_layers):
        p = params[f"layer{layer}"]
        f = _ref_lstm_dir(layer_in, p["w_ih_f"], p["w_hh_f"], p["b_f"],
                          hidden_dim, False)
        r = _ref_lstm_dir(layer_in, p["w_ih_r"], p["w_hh_r"], p["b_r"],
                          hidden_dim, True)
        layer_in = jnp.concatenate([f, r], axis=-1)
    out = jnp.transpose(layer_in, (1, 0, 2))
    y = out.reshape(B * S, 2 * hidden_dim) @ params["fc_w"] + params["fc_b"]
    return y.reshape(B, S, -1)


# --------------------------------------------------------------------------
if __name__ == "__main__":
    # Module hyperparameters (small, consistent with the forward pass)
    batch, seq, h_sp, w_sp = 2, 8, 4, 4       # x: (B, S, 4, 4) -> view -> (B, S, 16)
    input_dim = h_sp * w_sp                   # 16
    hidden_dim = 32
    num_layers = 2
    output_dim = 8

    key = jax.random.PRNGKey(0)
    kx, kp = jax.random.split(key)
    x = jax.random.normal(kx, (batch, seq, h_sp, w_sp), jnp.float32)
    params = init_params(kp, input_dim, hidden_dim, num_layers, output_dim)

    out = bilstm_model_forward(x, params, hidden_dim, num_layers)
    out = jax.block_until_ready(out)

    ref = _ref_forward(x, params, hidden_dim, num_layers)
    assert out.shape == (batch, seq, output_dim), out.shape
    assert jnp.allclose(out, ref, atol=1e-4, rtol=1e-4), (
        "mismatch vs reference, max abs diff = %e" % float(jnp.max(jnp.abs(out - ref))))

    print("KERNEL_OK")
</pallas_src>

<mosaic_0001>
module attributes {stable_mosaic.version = 11 : i64} {
  func.func @fused_bilstm_fc_kernel(%arg0: memref<64x16xf32, #tpu.memory_space<vmem>>, %arg1: memref<16x256xf32, #tpu.memory_space<vmem>>, %arg2: memref<32x128xf32, #tpu.memory_space<vmem>>, %arg3: memref<32x128xf32, #tpu.memory_space<vmem>>, %arg4: memref<1x256xf32, #tpu.memory_space<vmem>>, %arg5: memref<64x256xf32, #tpu.memory_space<vmem>>, %arg6: memref<32x128xf32, #tpu.memory_space<vmem>>, %arg7: memref<32x128xf32, #tpu.memory_space<vmem>>, %arg8: memref<1x256xf32, #tpu.memory_space<vmem>>, %arg9: memref<64x8xf32, #tpu.memory_space<vmem>>, %arg10: memref<1x8xf32, #tpu.memory_space<vmem>>, %arg11: memref<64x8xf32, #tpu.memory_space<vmem>>, %arg12: memref<64x32xf32, #tpu.memory_space<vmem>>, %arg13: memref<64x32xf32, #tpu.memory_space<vmem>>, %arg14: memref<64x256xf32, #tpu.memory_space<vmem>>) attributes {dimension_semantics = [], scalar_prefetch = 0 : i64, scratch_operands = 3 : i64, tpu.core_type = #tpu.core_type<tc>} {
    %0 = tpu.iota {dimensions = array<i32: 1>} : vector<8x128xi32>
    %c64_i32 = arith.constant 64 : i32
    %1 = vector.broadcast %c64_i32 : i32 to vector<8x128xi32>
    %2 = arith.cmpi sge, %0, %1 : vector<8x128xi32>
    %c96_i32 = arith.constant 96 : i32
    %3 = vector.broadcast %c96_i32 : i32 to vector<8x128xi32>
    %4 = arith.cmpi slt, %0, %3 : vector<8x128xi32>
    %5 = arith.andi %2, %4 : vector<8x128xi1>
    %c0 = arith.constant 0 : index
    %c0_0 = arith.constant 0 : index
    %6 = vector.load %arg0[%c0, %c0_0] : memref<64x16xf32, #tpu.memory_space<vmem>>, vector<64x16xf32>
    %c0_1 = arith.constant 0 : index
    %c0_2 = arith.constant 0 : index
    %7 = vector.load %arg1[%c0_1, %c0_2] : memref<16x256xf32, #tpu.memory_space<vmem>>, vector<16x256xf32>
    %cst = arith.constant dense<0.000000e+00> : vector<64x256xf32>
    %8 = tpu.matmul %6, %7, %cst {dimension_numbers = #tpu.dot_dimension_numbers<[1], [0], [0], [1], [0, 0, 1, 1], [], []>} : vector<64x16xf32>, vector<16x256xf32>, vector<64x256xf32> -> vector<64x256xf32>
    %c0_3 = arith.constant 0 : index
    %c0_4 = arith.constant 0 : index
    %9 = vector.load %arg4[%c0_3, %c0_4] : memref<1x256xf32, #tpu.memory_space<vmem>>, vector<1x256xf32>
    %10 = vector.broadcast %9 : vector<1x256xf32> to vector<64x256xf32>
    %11 = arith.addf %8, %10 : vector<64x256xf32>
    %c0_5 = arith.constant 0 : index
    %c0_6 = arith.constant 0 : index
    %12 = vector.load %arg14[%c0_5, %c0_6] : memref<64x256xf32, #tpu.memory_space<vmem>>, vector<64x256xf32>
    tpu.vector_store %arg14[%c0_5, %c0_6], %11 {strides = array<i32>} : memref<64x256xf32, #tpu.memory_space<vmem>>, vector<64x256xf32>,
    %c0_7 = arith.constant 0 : index
    %c0_8 = arith.constant 0 : index
    %13 = vector.load %arg2[%c0_7, %c0_8] : memref<32x128xf32, #tpu.memory_space<vmem>>, vector<32x128xf32>
    %c0_9 = arith.constant 0 : index
    %c0_10 = arith.constant 0 : index
    %14 = vector.load %arg3[%c0_9, %c0_10] : memref<32x128xf32, #tpu.memory_space<vmem>>, vector<32x128xf32>
    %cst_11 = arith.constant 0.000000e+00 : f32
    %15 = vector.broadcast %cst_11 : f32 to vector<8x32xf32>
    %cst_12 = arith.constant 0.000000e+00 : f32
    %16 = vector.broadcast %cst_12 : f32 to vector<8x32xf32>
    %cst_13 = arith.constant 0.000000e+00 : f32
    %17 = vector.broadcast %cst_13 : f32 to vector<8x32xf32>
    %cst_14 = arith.constant 0.000000e+00 : f32
    %18 = vector.broadcast %cst_14 : f32 to vector<8x32xf32>
    %c0_15 = arith.constant 0 : index
    %c0_16 = arith.constant 0 : index
    %19 = vector.load %arg14[%c0_15, %c0_16] : memref<64x256xf32, #tpu.memory_space<vmem>>, vector<8x128xf32>
    %cst_17 = arith.constant dense<0.000000e+00> : vector<8x128xf32>
    %20 = tpu.matmul %15, %13, %cst_17 {dimension_numbers = #tpu.dot_dimension_numbers<[1], [0], [0], [1], [0, 0, 1, 1], [], []>} : vector<8x32xf32>, vector<32x128xf32>, vector<8x128xf32> -> vector<8x128xf32>
    %21 = arith.addf %19, %20 : vector<8x128xf32>
    %c56 = arith.constant 56 : index
    %c128 = arith.constant 128 : index
    %22 = vector.load %arg14[%c56, %c128] : memref<64x256xf32, #tpu.memory_space<vmem>>, vector<8x128xf32>
    %cst_18 = arith.constant dense<0.000000e+00> : vector<8x128xf32>
    %23 = tpu.matmul %17, %14, %cst_18 {dimension_numbers = #tpu.dot_dimension_numbers<[1], [0], [0], [1], [0, 0, 1, 1], [], []>} : vector<8x32xf32>, vector<32x128xf32>, vector<8x128xf32> -> vector<8x128xf32>
    %24 = arith.addf %22, %23 : vector<8x128xf32>
    %cst_19 = arith.constant 5.000000e-01 : f32
    %25 = vector.broadcast %cst_19 : f32 to vector<8x128xf32>
    %26 = arith.mulf %25, %21 : vector<8x128xf32>
    %27 = arith.select %5, %21, %26 : vector<8x128xi1>, vector<8x128xf32>
    %28 = math.tanh %27 : vector<8x128xf32>
    %cst_20 = arith.constant 5.000000e-01 : f32
    %29 = vector.broadcast %cst_20 : f32 to vector<8x128xf32>
    %30 = arith.mulf %29, %28 : vector<8x128xf32>
    %cst_21 = arith.constant 5.000000e-01 : f32
    %31 = vector.broadcast %cst_21 : f32 to vector<8x128xf32>
    %32 = arith.addf %30, %31 : vector<8x128xf32>
    %33 = arith.select %5, %28, %32 : vector<8x128xi1>, vector<8x128xf32>
    %cst_22 = arith.constant 5.000000e-01 : f32
    %34 = vector.broadcast %cst_22 : f32 to vector<8x128xf32>
    %35 = arith.mulf %34, %24 : vector<8x128xf32>
    %36 = arith.select %5, %24, %35 : vector<8x128xi1>, vector<8x128xf32>
    %37 = math.tanh %36 : vector<8x128xf32>
    %cst_23 = arith.constant 5.000000e-01 : f32
    %38 = vector.broadcast %cst_23 : f32 to vector<8x128xf32>
    %39 = arith.mulf %38, %37 : vector<8x128xf32>
    %cst_24 = arith.constant 5.000000e-01 : f32
    %40 = vector.broadcast %cst_24 : f32 to vector<8x128xf32>
    %41 = arith.addf %39, %40 : vector<8x128xf32>
    %42 = arith.select %5, %37, %41 : vector<8x128xi1>, vector<8x128xf32>
    %43 = vector.extract_strided_slice %33 {offsets = [0, 32], sizes = [8, 32], strides = [1, 1]} : vector<8x128xf32> to vector<8x32xf32>
    %44 = arith.mulf %43, %16 : vector<8x32xf32>
    %45 = vector.extract_strided_slice %33 {offsets = [0, 0], sizes = [8, 32], strides = [1, 1]} : vector<8x128xf32> to vector<8x32xf32>
    %46 = vector.extract_strided_slice %33 {offsets = [0, 64], sizes = [8, 32], strides = [1, 1]} : vector<8x128xf32> to vector<8x32xf32>
    %47 = arith.mulf %45, %46 : vector<8x32xf32>
    %48 = arith.addf %44, %47 : vector<8x32xf32>
    %49 = vector.extract_strided_slice %42 {offsets = [0, 32], sizes = [8, 32], strides = [1, 1]} : vector<8x128xf32> to vector<8x32xf32>
    %50 = arith.mulf %49, %18 : vector<8x32xf32>
    %51 = vector.extract_strided_slice %42 {offsets = [0, 0], sizes = [8, 32], strides = [1, 1]} : vector<8x128xf32> to vector<8x32xf32>
    %52 = vector.extract_strided_slice %42 {offsets = [0, 64], sizes = [8, 32], strides = [1, 1]} : vector<8x128xf32> to vector<8x32xf32>
    %53 = arith.mulf %51, %52 : vector<8x32xf32>
    %54 = arith.addf %50, %53 : vector<8x32xf32>
    %55 = vector.extract_strided_slice %33 {offsets = [0, 96], sizes = [8, 32], strides = [1, 1]} : vector<8x128xf32> to vector<8x32xf32>
    %56 = math.tanh %48 : vector<8x32xf32>
    %57 = arith.mulf %55, %56 : vector<8x32xf32>
    %58 = vector.extract_strided_slice %42 {offsets = [0, 96], sizes = [8, 32], strides = [1, 1]} : vector<8x128xf32> to vector<8x32xf32>
    %59 = math.tanh %54 : vector<8x32xf32>
    %60 = arith.mulf %58, %59 : vector<8x32xf32>
    %c0_25 = arith.constant 0 : index
    %c0_26 = arith.constant 0 : index
    %61 = vector.load %arg12[%c0_25, %c0_26] : memref<64x32xf32, #tpu.memory_space<vmem>>, vector<8x32xf32>
    tpu.vector_store %arg12[%c0_25, %c0_26], %57 {strides = array<i32>} : memref<64x32xf32, #tpu.memory_space<vmem>>, vector<8x32xf32>,
    %c56_27 = arith.constant 56 : index
    %c0_28 = arith.constant 0 : index
    %62 = vector.load %arg13[%c56_27, %c0_28] : memref<64x32xf32, #tpu.memory_space<vmem>>, vector<8x32xf32>
    tpu.vector_store %arg13[%c56_27, %c0_28], %60 {strides = array<i32>} : memref<64x32xf32, #tpu.memory_space<vmem>>, vector<8x32xf32>,
    %c8 = arith.constant 8 : index
    %c0_29 = arith.constant 0 : index
    %63 = vector.load %arg14[%c8, %c0_29] : memref<64x256xf32, #tpu.memory_space<vmem>>, vector<8x128xf32>
    %cst_30 = arith.constant dense<0.000000e+00> : vector<8x128xf32>
    %64 = tpu.matmul %57, %13, %cst_30 {dimension_numbers = #tpu.dot_dimension_numbers<[1], [0], [0], [1], [0, 0, 1, 1], [], []>} : vector<8x32xf32>, vector<32x128xf32>, vector<8x128xf32> -> vector<8x128xf32>
    %65 = arith.addf %63, %64 : vector<8x128xf32>
    %c48 = arith.constant 48 : index
    %c128_31 = arith.constant 128 : index
    %66 = vector.load %arg14[%c48, %c128_31] : memref<64x256xf32, #tpu.memory_space<vmem>>, vector<8x128xf32>
    %cst_32 = arith.constant dense<0.000000e+00> : vector<8x128xf32>
    %67 = tpu.matmul %60, %14, %cst_32 {dimension_numbers = #tpu.dot_dimension_numbers<[1], [0], [0], [1], [0, 0, 1, 1], [], []>} : vector<8x32xf32>, vector<32x128xf32>, vector<8x128xf32> -> vector<8x128xf32>
    %68 = arith.addf %66, %67 : vector<8x128xf32>
    %cst_33 = arith.constant 5.000000e-01 : f32
    %69 = vector.broadcast %cst_33 : f32 to vector<8x128xf32>
    %70 = arith.mulf %69, %65 : vector<8x128xf32>
    %71 = arith.select %5, %65, %70 : vector<8x128xi1>, vector<8x128xf32>
    %72 = math.tanh %71 : vector<8x128xf32>
    %cst_34 = arith.constant 5.000000e-01 : f32
    %73 = vector.broadcast %cst_34 : f32 to vector<8x128xf32>
    %74 = arith.mulf %73, %72 : vector<8x128xf32>
    %cst_35 = arith.constant 5.000000e-01 : f32
    %75 = vector.broadcast %cst_35 : f32 to vector<8x128xf32>
    %76 = arith.addf %74, %75 : vector<8x128xf32>
    %77 = arith.select %5, %72, %76 : vector<8x128xi1>, vector<8x128xf32>
    %cst_36 = arith.constant 5.000000e-01 : f32
    %78 = vector.broadcast %cst_36 : f32 to vector<8x128xf32>
    %79 = arith.mulf %78, %68 : vector<8x128xf32>
    %80 = arith.select %5, %68, %79 : vector<8x128xi1>, vector<8x128xf32>
    %81 = math.tanh %80 : vector<8x128xf32>
    %cst_37 = arith.constant 5.000000e-01 : f32
    %82 = vector.broadcast %cst_37 : f32 to vector<8x128xf32>
    %83 = arith.mulf %82, %81 : vector<8x128xf32>
    %cst_38 = arith.constant 5.000000e-01 : f32
    %84 = vector.broadcast %cst_38 : f32 to vector<8x128xf32>
    %85 = arith.addf %83, %84 : vector<8x128xf32>
    %86 = arith.select %5, %81, %85 : vector<8x128xi1>, vector<8x128xf32>
    %87 = vector.extract_strided_slice %77 {offsets = [0, 32], sizes = [8, 32], strides = [1, 1]} : vector<8x128xf32> to vector<8x32xf32>
    %88 = arith.mulf %87, %48 : vector<8x32xf32>
    %89 = vector.extract_strided_slice %77 {offsets = [0, 0], sizes = [8, 32], strides = [1, 1]} : vector<8x128xf32> to vector<8x32xf32>
    %90 = vector.extract_strided_slice %77 {offsets = [0, 64], sizes = [8, 32], strides = [1, 1]} : vector<8x128xf32> to vector<8x32xf32>
    %91 = arith.mulf %89, %90 : vector<8x32xf32>
    %92 = arith.addf %88, %91 : vector<8x32xf32>
    %93 = vector.extract_strided_slice %86 {offsets = [0, 32], sizes = [8, 32], strides = [1, 1]} : vector<8x128xf32> to vector<8x32xf32>
    %94 = arith.mulf %93, %54 : vector<8x32xf32>
    %95 = vector.extract_strided_slice %86 {offsets = [0, 0], sizes = [8, 32], strides = [1, 1]} : vector<8x128xf32> to vector<8x32xf32>
    %96 = vector.extract_strided_slice %86 {offsets = [0, 64], sizes = [8, 32], strides = [1, 1]} : vector<8x128xf32> to vector<8x32xf32>
    %97 = arith.mulf %95, %96 : vector<8x32xf32>
    %98 = arith.addf %94, %97 : vector<8x32xf32>
    %99 = vector.extract_strided_slice %77 {offsets = [0, 96], sizes = [8, 32], strides = [1, 1]} : vector<8x128xf32> to vector<8x32xf32>
    %100 = math.tanh %92 : vector<8x32xf32>
    %101 = arith.mulf %99, %100 : vector<8x32xf32>
    %102 = vector.extract_strided_slice %86 {offsets = [0, 96], sizes = [8, 32], strides = [1, 1]} : vector<8x128xf32> to vector<8x32xf32>
    %103 = math.tanh %98 : vector<8x32xf32>
    %104 = arith.mulf %102, %103 : vector<8x32xf32>
    %c8_39 = arith.constant 8 : index
    %c0_40 = arith.constant 0 : index
    %105 = vector.load %arg12[%c8_39, %c0_40] : memref<64x32xf32, #tpu.memory_space<vmem>>, vector<8x32xf32>
    tpu.vector_store %arg12[%c8_39, %c0_40], %101 {strides = array<i32>} : memref<64x32xf32, #tpu.memory_space<vmem>>, vector<8x32xf32>,
    %c48_41 = arith.constant 48 : index
    %c0_42 = arith.constant 0 : index
    %106 = vector.load %arg13[%c48_41, %c0_42] : memref<64x32xf32, #tpu.memory_space<vmem>>, vector<8x32xf32>
    tpu.vector_store %arg13[%c48_41, %c0_42], %104 {strides = array<i32>} : memref<64x32xf32, #tpu.memory_space<vmem>>, vector<8x32xf32>,
    %c16 = arith.constant 16 : index
    %c0_43 = arith.constant 0 : index
    %107 = vector.load %arg14[%c16, %c0_43] : memref<64x256xf32, #tpu.memory_space<vmem>>, vector<8x128xf32>
    %cst_44 = arith.constant dense<0.000000e+00> : vector<8x128xf32>
    %108 = tpu.matmul %101, %13, %cst_44 {dimension_numbers = #tpu.dot_dimension_numbers<[1], [0], [0], [1], [0, 0, 1, 1], [], []>} : vector<8x32xf32>, vector<32x128xf32>, vector<8x128xf32> -> vector<8x128xf32>
    %109 = arith.addf %107, %108 : vector<8x128xf32>
    %c40 = arith.constant 40 : index
    %c128_45 = arith.constant 128 : index
    %110 = vector.load %arg14[%c40, %c128_45] : memref<64x256xf32, #tpu.memory_space<vmem>>, vector<8x128xf32>
    %cst_46 = arith.constant dense<0.000000e+00> : vector<8x128xf32>
    %111 = tpu.matmul %104, %14, %cst_46 {dimension_numbers = #tpu.dot_dimension_numbers<[1], [0], [0], [1], [0, 0, 1, 1], [], []>} : vector<8x32xf32>, vector<32x128xf32>, vector<8x128xf32> -> vector<8x128xf32>
    %112 = arith.addf %110, %111 : vector<8x128xf32>
    %cst_47 = arith.constant 5.000000e-01 : f32
    %113 = vector.broadcast %cst_47 : f32 to vector<8x128xf32>
    %114 = arith.mulf %113, %109 : vector<8x128xf32>
    %115 = arith.select %5, %109, %114 : vector<8x128xi1>, vector<8x128xf32>
    %116 = math.tanh %115 : vector<8x128xf32>
    %cst_48 = arith.constant 5.000000e-01 : f32
    %117 = vector.broadcast %cst_48 : f32 to vector<8x128xf32>
    %118 = arith.mulf %117, %116 : vector<8x128xf32>
    %cst_49 = arith.constant 5.000000e-01 : f32
    %119 = vector.broadcast %cst_49 : f32 to vector<8x128xf32>
    %120 = arith.addf %118, %119 : vector<8x128xf32>
    %121 = arith.select %5, %116, %120 : vector<8x128xi1>, vector<8x128xf32>
    %cst_50 = arith.constant 5.000000e-01 : f32
    %122 = vector.broadcast %cst_50 : f32 to vector<8x128xf32>
    %123 = arith.mulf %122, %112 : vector<8x128xf32>
    %124 = arith.select %5, %112, %123 : vector<8x128xi1>, vector<8x128xf32>
    %125 = math.tanh %124 : vector<8x128xf32>
    %cst_51 = arith.constant 5.000000e-01 : f32
    %126 = vector.broadcast %cst_51 : f32 to vector<8x128xf32>
    %127 = arith.mulf %126, %125 : vector<8x128xf32>
    %cst_52 = arith.constant 5.000000e-01 : f32
    %128 = vector.broadcast %cst_52 : f32 to vector<8x128xf32>
    %129 = arith.addf %127, %128 : vector<8x128xf32>
    %130 = arith.select %5, %125, %129 : vector<8x128xi1>, vector<8x128xf32>
    %131 = vector.extract_strided_slice %121 {offsets = [0, 32], sizes = [8, 32], strides = [1, 1]} : vector<8x128xf32> to vector<8x32xf32>
    %132 = arith.mulf %131, %92 : vector<8x32xf32>
    %133 = vector.extract_strided_slice %121 {offsets = [0, 0], sizes = [8, 32], strides = [1, 1]} : vector<8x128xf32> to vector<8x32xf32>
    %134 = vector.extract_strided_slice %121 {offsets = [0, 64], sizes = [8, 32], strides = [1, 1]} : vector<8x128xf32> to vector<8x32xf32>
    %135 = arith.mulf %133, %134 : vector<8x32xf32>
    %136 = arith.addf %132, %135 : vector<8x32xf32>
    %137 = vector.extract_strided_slice %130 {offsets = [0, 32], sizes = [8, 32], strides = [1, 1]} : vector<8x128xf32> to vector<8x32xf32>
    %138 = arith.mulf %137, %98 : vector<8x32xf32>
    %139 = vector.extract_strided_slice %130 {offsets = [0, 0], sizes = [8, 32], strides = [1, 1]} : vector<8x128xf32> to vector<8x32xf32>
    %140 = vector.extract_strided_slice %130 {offsets = [0, 64], sizes = [8, 32], strides = [1, 1]} : vector<8x128xf32> to vector<8x32xf32>
    %141 = arith.mulf %139, %140 : vector<8x32xf32>
    %142 = arith.addf %138, %141 : vector<8x32xf32>
    %143 = vector.extract_strided_slice %121 {offsets = [0, 96], sizes = [8, 32], strides = [1, 1]} : vector<8x128xf32> to vector<8x32xf32>
    %144 = math.tanh %136 : vector<8x32xf32>
    %145 = arith.mulf %143, %144 : vector<8x32xf32>
    %146 = vector.extract_strided_slice %130 {offsets = [0, 96], sizes = [8, 32], strides = [1, 1]} : vector<8x128xf32> to vector<8x32xf32>
    %147 = math.tanh %142 : vector<8x32xf32>
    %148 = arith.mulf %146, %147 : vector<8x32xf32>
    %c16_53 = arith.constant 16 : index
    %c0_54 = arith.constant 0 : index
    %149 = vector.load %arg12[%c16_53, %c0_54] : memref<64x32xf32, #tpu.memory_space<vmem>>, vector<8x32xf32>
    tpu.vector_store %arg12[%c16_53, %c0_54], %145 {strides = array<i32>} : memref<64x32xf32, #tpu.memory_space<vmem>>, vector<8x32xf32>,
    %c40_55 = arith.constant 40 : index
    %c0_56 = arith.constant 0 : index
    %150 = vector.load %arg13[%c40_55, %c0_56] : memref<64x32xf32, #tpu.memory_space<vmem>>, vector<8x32xf32>
    tpu.vector_store %arg13[%c40_55, %c0_56], %148 {strides = array<i32>} : memref<64x32xf32, #tpu.memory_space<vmem>>, vector<8x32xf32>,
    %c24 = arith.constant 24 : index
    %c0_57 = arith.constant 0 : index
    %151 = vector.load %arg14[%c24, %c0_57] : memref<64x256xf32, #tpu.memory_space<vmem>>, vector<8x128xf32>
    %cst_58 = arith.constant dense<0.000000e+00> : vector<8x128xf32>
    %152 = tpu.matmul %145, %13, %cst_58 {dimension_numbers = #tpu.dot_dimension_numbers<[1], [0], [0], [1], [0, 0, 1, 1], [], []>} : vector<8x32xf32>, vector<32x128xf32>, vector<8x128xf32> -> vector<8x128xf32>
    %153 = arith.addf %151, %152 : vector<8x128xf32>
    %c32 = arith.constant 32 : index
    %c128_59 = arith.constant 128 : index
    %154 = vector.load %arg14[%c32, %c128_59] : memref<64x256xf32, #tpu.memory_space<vmem>>, vector<8x128xf32>
    %cst_60 = arith.constant dense<0.000000e+00> : vector<8x128xf32>
    %155 = tpu.matmul %148, %14, %cst_60 {dimension_numbers = #tpu.dot_dimension_numbers<[1], [0], [0], [1], [0, 0, 1, 1], [], []>} : vector<8x32xf32>, vector<32x128xf32>, vector<8x128xf32> -> vector<8x128xf32>
    %156 = arith.addf %154, %155 : vector<8x128xf32>
    %cst_61 = arith.constant 5.000000e-01 : f32
    %157 = vector.broadcast %cst_61 : f32 to vector<8x128xf32>
    %158 = arith.mulf %157, %153 : vector<8x128xf32>
    %159 = arith.select %5, %153, %158 : vector<8x128xi1>, vector<8x128xf32>
    %160 = math.tanh %159 : vector<8x128xf32>
    %cst_62 = arith.constant 5.000000e-01 : f32
    %161 = vector.broadcast %cst_62 : f32 to vector<8x128xf32>
    %162 = arith.mulf %161, %160 : vector<8x128xf32>
    %cst_63 = arith.constant 5.000000e-01 : f32
    %163 = vector.broadcast %cst_63 : f32 to vector<8x128xf32>
    %164 = arith.addf %162, %163 : vector<8x128xf32>
    %165 = arith.select %5, %160, %164 : vector<8x128xi1>, vector<8x128xf32>
    %cst_64 = arith.constant 5.000000e-01 : f32
    %166 = vector.broadcast %cst_64 : f32 to vector<8x128xf32>
    %167 = arith.mulf %166, %156 : vector<8x128xf32>
    %168 = arith.select %5, %156, %167 : vector<8x128xi1>, vector<8x128xf32>
    %169 = math.tanh %168 : vector<8x128xf32>
    %cst_65 = arith.constant 5.000000e-01 : f32
    %170 = vector.broadcast %cst_65 : f32 to vector<8x128xf32>
    %171 = arith.mulf %170, %169 : vector<8x128xf32>
    %cst_66 = arith.constant 5.000000e-01 : f32
    %172 = vector.broadcast %cst_66 : f32 to vector<8x128xf32>
    %173 = arith.addf %171, %172 : vector<8x128xf32>
    %174 = arith.select %5, %169, %173 : vector<8x128xi1>, vector<8x128xf32>
    %175 = vector.extract_strided_slice %165 {offsets = [0, 32], sizes = [8, 32], strides = [1, 1]} : vector<8x128xf32> to vector<8x32xf32>
    %176 = arith.mulf %175, %136 : vector<8x32xf32>
    %177 = vector.extract_strided_slice %165 {offsets = [0, 0], sizes = [8, 32], strides = [1, 1]} : vector<8x128xf32> to vector<8x32xf32>
    %178 = vector.extract_strided_slice %165 {offsets = [0, 64], sizes = [8, 32], strides = [1, 1]} : vector<8x128xf32> to vector<8x32xf32>
    %179 = arith.mulf %177, %178 : vector<8x32xf32>
    %180 = arith.addf %176, %179 : vector<8x32xf32>
    %181 = vector.extract_strided_slice %174 {offsets = [0, 32], sizes = [8, 32], strides = [1, 1]} : vector<8x128xf32> to vector<8x32xf32>
    %182 = arith.mulf %181, %142 : vector<8x32xf32>
    %183 = vector.extract_strided_slice %174 {offsets = [0, 0], sizes = [8, 32], strides = [1, 1]} : vector<8x128xf32> to vector<8x32xf32>
    %184 = vector.extract_strided_slice %174 {offsets = [0, 64], sizes = [8, 32], strides = [1, 1]} : vector<8x128xf32> to vector<8x32xf32>
    %185 = arith.mulf %183, %184 : vector<8x32xf32>
    %186 = arith.addf %182, %185 : vector<8x32xf32>
    %187 = vector.extract_strided_slice %165 {offsets = [0, 96], sizes = [8, 32], strides = [1, 1]} : vector<8x128xf32> to vector<8x32xf32>
    %188 = math.tanh %180 : vector<8x32xf32>
    %189 = arith.mulf %187, %188 : vector<8x32xf32>
    %190 = vector.extract_strided_slice %174 {offsets = [0, 96], sizes = [8, 32], strides = [1, 1]} : vector<8x128xf32> to vector<8x32xf32>
    %191 = math.tanh %186 : vector<8x32xf32>
    %192 = arith.mulf %190, %191 : vector<8x32xf32>
    %c24_67 = arith.constant 24 : index
    %c0_68 = arith.constant 0 : index
    %193 = vector.load %arg12[%c24_67, %c0_68] : memref<64x32xf32, #tpu.memory_space<vmem>>, vector<8x32xf32>
    tpu.vector_store %arg12[%c24_67, %c0_68], %189 {strides = array<i32>} : memref<64x32xf32, #tpu.memory_space<vmem>>, vector<8x32xf32>,
    %c32_69 = arith.constant 32 : index
    %c0_70 = arith.constant 0 : index
    %194 = vector.load %arg13[%c32_69, %c0_70] : memref<64x32xf32, #tpu.memory_space<vmem>>, vector<8x32xf32>
    tpu.vector_store %arg13[%c32_69, %c0_70], %192 {strides = array<i32>} : memref<64x32xf32, #tpu.memory_space<vmem>>, vector<8x32xf32>,
    %c32_71 = arith.constant 32 : index
    %c0_72 = arith.constant 0 : index
    %195 = vector.load %arg14[%c32_71, %c0_72] : memref<64x256xf32, #tpu.memory_space<vmem>>, vector<8x128xf32>
    %cst_73 = arith.constant dense<0.000000e+00> : vector<8x128xf32>
    %196 = tpu.matmul %189, %13, %cst_73 {dimension_numbers = #tpu.dot_dimension_numbers<[1], [0], [0], [1], [0, 0, 1, 1], [], []>} : vector<8x32xf32>, vector<32x128xf32>, vector<8x128xf32> -> vector<8x128xf32>
    %197 = arith.addf %195, %196 : vector<8x128xf32>
    %c24_74 = arith.constant 24 : index
    %c128_75 = arith.constant 128 : index
    %198 = vector.load %arg14[%c24_74, %c128_75] : memref<64x256xf32, #tpu.memory_space<vmem>>, vector<8x128xf32>
    %cst_76 = arith.constant dense<0.000000e+00> : vector<8x128xf32>
    %199 = tpu.matmul %192, %14, %cst_76 {dimension_numbers = #tpu.dot_dimension_numbers<[1], [0], [0], [1], [0, 0, 1, 1], [], []>} : vector<8x32xf32>, vector<32x128xf32>, vector<8x128xf32> -> vector<8x128xf32>
    %200 = arith.addf %198, %199 : vector<8x128xf32>
    %cst_77 = arith.constant 5.000000e-01 : f32
    %201 = vector.broadcast %cst_77 : f32 to vector<8x128xf32>
    %202 = arith.mulf %201, %197 : vector<8x128xf32>
    %203 = arith.select %5, %197, %202 : vector<8x128xi1>, vector<8x128xf32>
    %204 = math.tanh %203 : vector<8x128xf32>
    %cst_78 = arith.constant 5.000000e-01 : f32
    %205 = vector.broadcast %cst_78 : f32 to vector<8x128xf32>
    %206 = arith.mulf %205, %204 : vector<8x128xf32>
    %cst_79 = arith.constant 5.000000e-01 : f32
    %207 = vector.broadcast %cst_79 : f32 to vector<8x128xf32>
    %208 = arith.addf %206, %207 : vector<8x128xf32>
    %209 = arith.select %5, %204, %208 : vector<8x128xi1>, vector<8x128xf32>
    %cst_80 = arith.constant 5.000000e-01 : f32
    %210 = vector.broadcast %cst_80 : f32 to vector<8x128xf32>
    %211 = arith.mulf %210, %200 : vector<8x128xf32>
    %212 = arith.select %5, %200, %211 : vector<8x128xi1>, vector<8x128xf32>
    %213 = math.tanh %212 : vector<8x128xf32>
    %cst_81 = arith.constant 5.000000e-01 : f32
    %214 = vector.broadcast %cst_81 : f32 to vector<8x128xf32>
    %215 = arith.mulf %214, %213 : vector<8x128xf32>
    %cst_82 = arith.constant 5.000000e-01 : f32
    %216 = vector.broadcast %cst_82 : f32 to vector<8x128xf32>
    %217 = arith.addf %215, %216 : vector<8x128xf32>
    %218 = arith.select %5, %213, %217 : vector<8x128xi1>, vector<8x128xf32>
    %219 = vector.extract_strided_slice %209 {offsets = [0, 32], sizes = [8, 32], strides = [1, 1]} : vector<8x128xf32> to vector<8x32xf32>
    %220 = arith.mulf %219, %180 : vector<8x32xf32>
    %221 = vector.extract_strided_slice %209 {offsets = [0, 0], sizes = [8, 32], strides = [1, 1]} : vector<8x128xf32> to vector<8x32xf32>
    %222 = vector.extract_strided_slice %209 {offsets = [0, 64], sizes = [8, 32], strides = [1, 1]} : vector<8x128xf32> to vector<8x32xf32>
    %223 = arith.mulf %221, %222 : vector<8x32xf32>
    %224 = arith.addf %220, %223 : vector<8x32xf32>
    %225 = vector.extract_strided_slice %218 {offsets = [0, 32], sizes = [8, 32], strides = [1, 1]} : vector<8x128xf32> to vector<8x32xf32>
    %226 = arith.mulf %225, %186 : vector<8x32xf32>
    %227 = vector.extract_strided_slice %218 {offsets = [0, 0], sizes = [8, 32], strides = [1, 1]} : vector<8x128xf32> to vector<8x32xf32>
    %228 = vector.extract_strided_slice %218 {offsets = [0, 64], sizes = [8, 32], strides = [1, 1]} : vector<8x128xf32> to vector<8x32xf32>
    %229 = arith.mulf %227, %228 : vector<8x32xf32>
    %230 = arith.addf %226, %229 : vector<8x32xf32>
    %231 = vector.extract_strided_slice %209 {offsets = [0, 96], sizes = [8, 32], strides = [1, 1]} : vector<8x128xf32> to vector<8x32xf32>
    %232 = math.tanh %224 : vector<8x32xf32>
    %233 = arith.mulf %231, %232 : vector<8x32xf32>
    %234 = vector.extract_strided_slice %218 {offsets = [0, 96], sizes = [8, 32], strides = [1, 1]} : vector<8x128xf32> to vector<8x32xf32>
    %235 = math.tanh %230 : vector<8x32xf32>
    %236 = arith.mulf %234, %235 : vector<8x32xf32>
    %c32_83 = arith.constant 32 : index
    %c0_84 = arith.constant 0 : index
    %237 = vector.load %arg12[%c32_83, %c0_84] : memref<64x32xf32, #tpu.memory_space<vmem>>, vector<8x32xf32>
    tpu.vector_store %arg12[%c32_83, %c0_84], %233 {strides = array<i32>} : memref<64x32xf32, #tpu.memory_space<vmem>>, vector<8x32xf32>,
    %c24_85 = arith.constant 24 : index
    %c0_86 = arith.constant 0 : index
    %238 = vector.load %arg13[%c24_85, %c0_86] : memref<64x32xf32, #tpu.memory_space<vmem>>, vector<8x32xf32>
    tpu.vector_store %arg13[%c24_85, %c0_86], %236 {strides = array<i32>} : memref<64x32xf32, #tpu.memory_space<vmem>>, vector<8x32xf32>,
    %c40_87 = arith.constant 40 : index
    %c0_88 = arith.constant 0 : index
    %239 = vector.load %arg14[%c40_87, %c0_88] : memref<64x256xf32, #tpu.memory_space<vmem>>, vector<8x128xf32>
    %cst_89 = arith.constant dense<0.000000e+00> : vector<8x128xf32>
    %240 = tpu.matmul %233, %13, %cst_89 {dimension_numbers = #tpu.dot_dimension_numbers<[1], [0], [0], [1], [0, 0, 1, 1], [], []>} : vector<8x32xf32>, vector<32x128xf32>, vector<8x128xf32> -> vector<8x128xf32>
    %241 = arith.addf %239, %240 : vector<8x128xf32>
    %c16_90 = arith.constant 16 : index
    %c128_91 = arith.constant 128 : index
    %242 = vector.load %arg14[%c16_90, %c128_91] : memref<64x256xf32, #tpu.memory_space<vmem>>, vector<8x128xf32>
    %cst_92 = arith.constant dense<0.000000e+00> : vector<8x128xf32>
    %243 = tpu.matmul %236, %14, %cst_92 {dimension_numbers = #tpu.dot_dimension_numbers<[1], [0], [0], [1], [0, 0, 1, 1], [], []>} : vector<8x32xf32>, vector<32x128xf32>, vector<8x128xf32> -> vector<8x128xf32>
    %244 = arith.addf %242, %243 : vector<8x128xf32>
    %cst_93 = arith.constant 5.000000e-01 : f32
    %245 = vector.broadcast %cst_93 : f32 to vector<8x128xf32>
    %246 = arith.mulf %245, %241 : vector<8x128xf32>
    %247 = arith.select %5, %241, %246 : vector<8x128xi1>, vector<8x128xf32>
    %248 = math.tanh %247 : vector<8x128xf32>
    %cst_94 = arith.constant 5.000000e-01 : f32
    %249 = vector.broadcast %cst_94 : f32 to vector<8x128xf32>
    %250 = arith.mulf %249, %248 : vector<8x128xf32>
    %cst_95 = arith.constant 5.000000e-01 : f32
    %251 = vector.broadcast %cst_95 : f32 to vector<8x128xf32>
    %252 = arith.addf %250, %251 : vector<8x128xf32>
    %253 = arith.select %5, %248, %252 : vector<8x128xi1>, vector<8x128xf32>
    %cst_96 = arith.constant 5.000000e-01 : f32
    %254 = vector.broadcast %cst_96 : f32 to vector<8x128xf32>
    %255 = arith.mulf %254, %244 : vector<8x128xf32>
    %256 = arith.select %5, %244, %255 : vector<8x128xi1>, vector<8x128xf32>
    %257 = math.tanh %256 : vector<8x128xf32>
    %cst_97 = arith.constant 5.000000e-01 : f32
    %258 = vector.broadcast %cst_97 : f32 to vector<8x128xf32>
    %259 = arith.mulf %258, %257 : vector<8x128xf32>
    %cst_98 = arith.constant 5.000000e-01 : f32
    %260 = vector.broadcast %cst_98 : f32 to vector<8x128xf32>
    %261 = arith.addf %259, %260 : vector<8x128xf32>
    %262 = arith.select %5, %257, %261 : vector<8x128xi1>, vector<8x128xf32>
    %263 = vector.extract_strided_slice %253 {offsets = [0, 32], sizes = [8, 32], strides = [1, 1]} : vector<8x128xf32> to vector<8x32xf32>
    %264 = arith.mulf %263, %224 : vector<8x32xf32>
    %265 = vector.extract_strided_slice %253 {offsets = [0, 0], sizes = [8, 32], strides = [1, 1]} : vector<8x128xf32> to vector<8x32xf32>
    %266 = vector.extract_strided_slice %253 {offsets = [0, 64], sizes = [8, 32], strides = [1, 1]} : vector<8x128xf32> to vector<8x32xf32>
    %267 = arith.mulf %265, %266 : vector<8x32xf32>
    %268 = arith.addf %264, %267 : vector<8x32xf32>
    %269 = vector.extract_strided_slice %262 {offsets = [0, 32], sizes = [8, 32], strides = [1, 1]} : vector<8x128xf32> to vector<8x32xf32>
    %270 = arith.mulf %269, %230 : vector<8x32xf32>
    %271 = vector.extract_strided_slice %262 {offsets = [0, 0], sizes = [8, 32], strides = [1, 1]} : vector<8x128xf32> to vector<8x32xf32>
    %272 = vector.extract_strided_slice %262 {offsets = [0, 64], sizes = [8, 32], strides = [1, 1]} : vector<8x128xf32> to vector<8x32xf32>
    %273 = arith.mulf %271, %272 : vector<8x32xf32>
    %274 = arith.addf %270, %273 : vector<8x32xf32>
    %275 = vector.extract_strided_slice %253 {offsets = [0, 96], sizes = [8, 32], strides = [1, 1]} : vector<8x128xf32> to vector<8x32xf32>
    %276 = math.tanh %268 : vector<8x32xf32>
    %277 = arith.mulf %275, %276 : vector<8x32xf32>
    %278 = vector.extract_strided_slice %262 {offsets = [0, 96], sizes = [8, 32], strides = [1, 1]} : vector<8x128xf32> to vector<8x32xf32>
    %279 = math.tanh %274 : vector<8x32xf32>
    %280 = arith.mulf %278, %279 : vector<8x32xf32>
    %c40_99 = arith.constant 40 : index
    %c0_100 = arith.constant 0 : index
    %281 = vector.load %arg12[%c40_99, %c0_100] : memref<64x32xf32, #tpu.memory_space<vmem>>, vector<8x32xf32>
    tpu.vector_store %arg12[%c40_99, %c0_100], %277 {strides = array<i32>} : memref<64x32xf32, #tpu.memory_space<vmem>>, vector<8x32xf32>,
    %c16_101 = arith.constant 16 : index
    %c0_102 = arith.constant 0 : index
    %282 = vector.load %arg13[%c16_101, %c0_102] : memref<64x32xf32, #tpu.memory_space<vmem>>, vector<8x32xf32>
    tpu.vector_store %arg13[%c16_101, %c0_102], %280 {strides = array<i32>} : memref<64x32xf32, #tpu.memory_space<vmem>>, vector<8x32xf32>,
    %c48_103 = arith.constant 48 : index
    %c0_104 = arith.constant 0 : index
    %283 = vector.load %arg14[%c48_103, %c0_104] : memref<64x256xf32, #tpu.memory_space<vmem>>, vector<8x128xf32>
    %cst_105 = arith.constant dense<0.000000e+00> : vector<8x128xf32>
    %284 = tpu.matmul %277, %13, %cst_105 {dimension_numbers = #tpu.dot_dimension_numbers<[1], [0], [0], [1], [0, 0, 1, 1], [], []>} : vector<8x32xf32>, vector<32x128xf32>, vector<8x128xf32> -> vector<8x128xf32>
    %285 = arith.addf %283, %284 : vector<8x128xf32>
    %c8_106 = arith.constant 8 : index
    %c128_107 = arith.constant 128 : index
    %286 = vector.load %arg14[%c8_106, %c128_107] : memref<64x256xf32, #tpu.memory_space<vmem>>, vector<8x128xf32>
    %cst_108 = arith.constant dense<0.000000e+00> : vector<8x128xf32>
    %287 = tpu.matmul %280, %14, %cst_108 {dimension_numbers = #tpu.dot_dimension_numbers<[1], [0], [0], [1], [0, 0, 1, 1], [], []>} : vector<8x32xf32>, vector<32x128xf32>, vector<8x128xf32> -> vector<8x128xf32>
    %288 = arith.addf %286, %287 : vector<8x128xf32>
    %cst_109 = arith.constant 5.000000e-01 : f32
    %289 = vector.broadcast %cst_109 : f32 to vector<8x128xf32>
    %290 = arith.mulf %289, %285 : vector<8x128xf32>
    %291 = arith.select %5, %285, %290 : vector<8x128xi1>, vector<8x128xf32>
    %292 = math.tanh %291 : vector<8x128xf32>
    %cst_110 = arith.constant 5.000000e-01 : f32
    %293 = vector.broadcast %cst_110 : f32 to vector<8x128xf32>
    %294 = arith.mulf %293, %292 : vector<8x128xf32>
    %cst_111 = arith.constant 5.000000e-01 : f32
    %295 = vector.broadcast %cst_111 : f32 to vector<8x128xf32>
    %296 = arith.addf %294, %295 : vector<8x128xf32>
    %297 = arith.select %5, %292, %296 : vector<8x128xi1>, vector<8x128xf32>
    %cst_112 = arith.constant 5.000000e-01 : f32
    %298 = vector.broadcast %cst_112 : f32 to vector<8x128xf32>
    %299 = arith.mulf %298, %288 : vector<8x128xf32>
    %300 = arith.select %5, %288, %299 : vector<8x128xi1>, vector<8x128xf32>
    %301 = math.tanh %300 : vector<8x128xf32>
    %cst_113 = arith.constant 5.000000e-01 : f32
    %302 = vector.broadcast %cst_113 : f32 to vector<8x128xf32>
    %303 = arith.mulf %302, %301 : vector<8x128xf32>
    %cst_114 = arith.constant 5.000000e-01 : f32
    %304 = vector.broadcast %cst_114 : f32 to vector<8x128xf32>
    %305 = arith.addf %303, %304 : vector<8x128xf32>
    %306 = arith.select %5, %301, %305 : vector<8x128xi1>, vector<8x128xf32>
    %307 = vector.extract_strided_slice %297 {offsets = [0, 32], sizes = [8, 32], strides = [1, 1]} : vector<8x128xf32> to vector<8x32xf32>
    %308 = arith.mulf %307, %268 : vector<8x32xf32>
    %309 = vector.extract_strided_slice %297 {offsets = [0, 0], sizes = [8, 32], strides = [1, 1]} : vector<8x128xf32> to vector<8x32xf32>
    %310 = vector.extract_strided_slice %297 {offsets = [0, 64], sizes = [8, 32], strides = [1, 1]} : vector<8x128xf32> to vector<8x32xf32>
    %311 = arith.mulf %309, %310 : vector<8x32xf32>
    %312 = arith.addf %308, %311 : vector<8x32xf32>
    %313 = vector.extract_strided_slice %306 {offsets = [0, 32], sizes = [8, 32], strides = [1, 1]} : vector<8x128xf32> to vector<8x32xf32>
    %314 = arith.mulf %313, %274 : vector<8x32xf32>
    %315 = vector.extract_strided_slice %306 {offsets = [0, 0], sizes = [8, 32], strides = [1, 1]} : vector<8x128xf32> to vector<8x32xf32>
    %316 = vector.extract_strided_slice %306 {offsets = [0, 64], sizes = [8, 32], strides = [1, 1]} : vector<8x128xf32> to vector<8x32xf32>
    %317 = arith.mulf %315, %316 : vector<8x32xf32>
    %318 = arith.addf %314, %317 : vector<8x32xf32>
    %319 = vector.extract_strided_slice %297 {offsets = [0, 96], sizes = [8, 32], strides = [1, 1]} : vector<8x128xf32> to vector<8x32xf32>
    %320 = math.tanh %312 : vector<8x32xf32>
    %321 = arith.mulf %319, %320 : vector<8x32xf32>
    %322 = vector.extract_strided_slice %306 {offsets = [0, 96], sizes = [8, 32], strides = [1, 1]} : vector<8x128xf32> to vector<8x32xf32>
    %323 = math.tanh %318 : vector<8x32xf32>
    %324 = arith.mulf %322, %323 : vector<8x32xf32>
    %c48_115 = arith.constant 48 : index
    %c0_116 = arith.constant 0 : index
    %325 = vector.load %arg12[%c48_115, %c0_116] : memref<64x32xf32, #tpu.memory_space<vmem>>, vector<8x32xf32>
    tpu.vector_store %arg12[%c48_115, %c0_116], %321 {strides = array<i32>} : memref<64x32xf32, #tpu.memory_space<vmem>>, vector<8x32xf32>,
    %c8_117 = arith.constant 8 : index
    %c0_118 = arith.constant 0 : index
    %326 = vector.load %arg13[%c8_117, %c0_118] : memref<64x32xf32, #tpu.memory_space<vmem>>, vector<8x32xf32>
    tpu.vector_store %arg13[%c8_117, %c0_118], %324 {strides = array<i32>} : memref<64x32xf32, #tpu.memory_space<vmem>>, vector<8x32xf32>,
    %c56_119 = arith.constant 56 : index
    %c0_120 = arith.constant 0 : index
    %327 = vector.load %arg14[%c56_119, %c0_120] : memref<64x256xf32, #tpu.memory_space<vmem>>, vector<8x128xf32>
    %cst_121 = arith.constant dense<0.000000e+00> : vector<8x128xf32>
    %328 = tpu.matmul %321, %13, %cst_121 {dimension_numbers = #tpu.dot_dimension_numbers<[1], [0], [0], [1], [0, 0, 1, 1], [], []>} : vector<8x32xf32>, vector<32x128xf32>, vector<8x128xf32> -> vector<8x128xf32>
    %329 = arith.addf %327, %328 : vector<8x128xf32>
    %c0_122 = arith.constant 0 : index
    %c128_123 = arith.constant 128 : index
    %330 = vector.load %arg14[%c0_122, %c128_123] : memref<64x256xf32, #tpu.memory_space<vmem>>, vector<8x128xf32>
    %cst_124 = arith.constant dense<0.000000e+00> : vector<8x128xf32>
    %331 = tpu.matmul %324, %14, %cst_124 {dimension_numbers = #tpu.dot_dimension_numbers<[1], [0], [0], [1], [0, 0, 1, 1], [], []>} : vector<8x32xf32>, vector<32x128xf32>, vector<8x128xf32> -> vector<8x128xf32>
    %332 = arith.addf %330, %331 : vector<8x128xf32>
    %cst_125 = arith.constant 5.000000e-01 : f32
    %333 = vector.broadcast %cst_125 : f32 to vector<8x128xf32>
    %334 = arith.mulf %333, %329 : vector<8x128xf32>
    %335 = arith.select %5, %329, %334 : vector<8x128xi1>, vector<8x128xf32>
    %336 = math.tanh %335 : vector<8x128xf32>
    %cst_126 = arith.constant 5.000000e-01 : f32
    %337 = vector.broadcast %cst_126 : f32 to vector<8x128xf32>
    %338 = arith.mulf %337, %336 : vector<8x128xf32>
    %cst_127 = arith.constant 5.000000e-01 : f32
    %339 = vector.broadcast %cst_127 : f32 to vector<8x128xf32>
    %340 = arith.addf %338, %339 : vector<8x128xf32>
    %341 = arith.select %5, %336, %340 : vector<8x128xi1>, vector<8x128xf32>
    %cst_128 = arith.constant 5.000000e-01 : f32
    %342 = vector.broadcast %cst_128 : f32 to vector<8x128xf32>
    %343 = arith.mulf %342, %332 : vector<8x128xf32>
    %344 = arith.select %5, %332, %343 : vector<8x128xi1>, vector<8x128xf32>
    %345 = math.tanh %344 : vector<8x128xf32>
    %cst_129 = arith.constant 5.000000e-01 : f32
    %346 = vector.broadcast %cst_129 : f32 to vector<8x128xf32>
    %347 = arith.mulf %346, %345 : vector<8x128xf32>
    %cst_130 = arith.constant 5.000000e-01 : f32
    %348 = vector.broadcast %cst_130 : f32 to vector<8x128xf32>
    %349 = arith.addf %347, %348 : vector<8x128xf32>
    %350 = arith.select %5, %345, %349 : vector<8x128xi1>, vector<8x128xf32>
    %351 = vector.extract_strided_slice %341 {offsets = [0, 32], sizes = [8, 32], strides = [1, 1]} : vector<8x128xf32> to vector<8x32xf32>
    %352 = arith.mulf %351, %312 : vector<8x32xf32>
    %353 = vector.extract_strided_slice %341 {offsets = [0, 0], sizes = [8, 32], strides = [1, 1]} : vector<8x128xf32> to vector<8x32xf32>
    %354 = vector.extract_strided_slice %341 {offsets = [0, 64], sizes = [8, 32], strides = [1, 1]} : vector<8x128xf32> to vector<8x32xf32>
    %355 = arith.mulf %353, %354 : vector<8x32xf32>
    %356 = arith.addf %352, %355 : vector<8x32xf32>
    %357 = vector.extract_strided_slice %350 {offsets = [0, 32], sizes = [8, 32], strides = [1, 1]} : vector<8x128xf32> to vector<8x32xf32>
    %358 = arith.mulf %357, %318 : vector<8x32xf32>
    %359 = vector.extract_strided_slice %350 {offsets = [0, 0], sizes = [8, 32], strides = [1, 1]} : vector<8x128xf32> to vector<8x32xf32>
    %360 = vector.extract_strided_slice %350 {offsets = [0, 64], sizes = [8, 32], strides = [1, 1]} : vector<8x128xf32> to vector<8x32xf32>
    %361 = arith.mulf %359, %360 : vector<8x32xf32>
    %362 = arith.addf %358, %361 : vector<8x32xf32>
    %363 = vector.extract_strided_slice %341 {offsets = [0, 96], sizes = [8, 32], strides = [1, 1]} : vector<8x128xf32> to vector<8x32xf32>
    %364 = math.tanh %356 : vector<8x32xf32>
    %365 = arith.mulf %363, %364 : vector<8x32xf32>
    %366 = vector.extract_strided_slice %350 {offsets = [0, 96], sizes = [8, 32], strides = [1, 1]} : vector<8x128xf32> to vector<8x32xf32>
    %367 = math.tanh %362 : vector<8x32xf32>
    %368 = arith.mulf %366, %367 : vector<8x32xf32>
    %c56_131 = arith.constant 56 : index
    %c0_132 = arith.constant 0 : index
    %369 = vector.load %arg12[%c56_131, %c0_132] : memref<64x32xf32, #tpu.memory_space<vmem>>, vector<8x32xf32>
    tpu.vector_store %arg12[%c56_131, %c0_132], %365 {strides = array<i32>} : memref<64x32xf32, #tpu.memory_space<vmem>>, vector<8x32xf32>,
    %c0_133 = arith.constant 0 : index
    %c0_134 = arith.constant 0 : index
    %370 = vector.load %arg13[%c0_133, %c0_134] : memref<64x32xf32, #tpu.memory_space<vmem>>, vector<8x32xf32>
    tpu.vector_store %arg13[%c0_133, %c0_134], %368 {strides = array<i32>} : memref<64x32xf32, #tpu.memory_space<vmem>>, vector<8x32xf32>,
    %c0_135 = arith.constant 0 : index
    %c0_136 = arith.constant 0 : index
    %371 = vector.load %arg12[%c0_135, %c0_136] : memref<64x32xf32, #tpu.memory_space<vmem>>, vector<64x32xf32>
    %c0_137 = arith.constant 0 : index
    %c0_138 = arith.constant 0 : index
    %372 = vector.load %arg5[%c0_137, %c0_138] : memref<64x256xf32, #tpu.memory_space<vmem>>, vector<32x256xf32>
    %cst_139 = arith.constant dense<0.000000e+00> : vector<64x256xf32>
    %373 = tpu.matmul %371, %372, %cst_139 {dimension_numbers = #tpu.dot_dimension_numbers<[1], [0], [0], [1], [0, 0, 1, 1], [], []>} : vector<64x32xf32>, vector<32x256xf32>, vector<64x256xf32> -> vector<64x256xf32>
    %c0_140 = arith.constant 0 : index
    %c0_141 = arith.constant 0 : index
    %374 = vector.load %arg13[%c0_140, %c0_141] : memref<64x32xf32, #tpu.memory_space<vmem>>, vector<64x32xf32>
    %c32_142 = arith.constant 32 : index
    %c0_143 = arith.constant 0 : index
    %375 = vector.load %arg5[%c32_142, %c0_143] : memref<64x256xf32, #tpu.memory_space<vmem>>, vector<32x256xf32>
    %cst_144 = arith.constant dense<0.000000e+00> : vector<64x256xf32>
    %376 = tpu.matmul %374, %375, %cst_144 {dimension_numbers = #tpu.dot_dimension_numbers<[1], [0], [0], [1], [0, 0, 1, 1], [], []>} : vector<64x32xf32>, vector<32x256xf32>, vector<64x256xf32> -> vector<64x256xf32>
    %377 = arith.addf %373, %376 : vector<64x256xf32>
    %c0_145 = arith.constant 0 : index
    %c0_146 = arith.constant 0 : index
    %378 = vector.load %arg8[%c0_145, %c0_146] : memref<1x256xf32, #tpu.memory_space<vmem>>, vector<1x256xf32>
    %379 = vector.broadcast %378 : vector<1x256xf32> to vector<64x256xf32>
    %380 = arith.addf %377, %379 : vector<64x256xf32>
    %c0_147 = arith.constant 0 : index
    %c0_148 = arith.constant 0 : index
    %381 = vector.load %arg14[%c0_147, %c0_148] : memref<64x256xf32, #tpu.memory_space<vmem>>, vector<64x256xf32>
    tpu.vector_store %arg14[%c0_147, %c0_148], %380 {strides = array<i32>} : memref<64x256xf32, #tpu.memory_space<vmem>>, vector<64x256xf32>,
    %c0_149 = arith.constant 0 : index
    %c0_150 = arith.constant 0 : index
    %382 = vector.load %arg6[%c0_149, %c0_150] : memref<32x128xf32, #tpu.memory_space<vmem>>, vector<32x128xf32>
    %c0_151 = arith.constant 0 : index
    %c0_152 = arith.constant 0 : index
    %383 = vector.load %arg7[%c0_151, %c0_152] : memref<32x128xf32, #tpu.memory_space<vmem>>, vector<32x128xf32>
    %cst_153 = arith.constant 0.000000e+00 : f32
    %384 = vector.broadcast %cst_153 : f32 to vector<8x32xf32>
    %cst_154 = arith.constant 0.000000e+00 : f32
    %385 = vector.broadcast %cst_154 : f32 to vector<8x32xf32>
    %cst_155 = arith.constant 0.000000e+00 : f32
    %386 = vector.broadcast %cst_155 : f32 to vector<8x32xf32>
    %cst_156 = arith.constant 0.000000e+00 : f32
    %387 = vector.broadcast %cst_156 : f32 to vector<8x32xf32>
    %c0_157 = arith.constant 0 : index
    %c0_158 = arith.constant 0 : index
    %388 = vector.load %arg14[%c0_157, %c0_158] : memref<64x256xf32, #tpu.memory_space<vmem>>, vector<8x128xf32>
    %cst_159 = arith.constant dense<0.000000e+00> : vector<8x128xf32>
    %389 = tpu.matmul %384, %382, %cst_159 {dimension_numbers = #tpu.dot_dimension_numbers<[1], [0], [0], [1], [0, 0, 1, 1], [], []>} : vector<8x32xf32>, vector<32x128xf32>, vector<8x128xf32> -> vector<8x128xf32>
    %390 = arith.addf %388, %389 : vector<8x128xf32>
    %c56_160 = arith.constant 56 : index
    %c128_161 = arith.constant 128 : index
    %391 = vector.load %arg14[%c56_160, %c128_161] : memref<64x256xf32, #tpu.memory_space<vmem>>, vector<8x128xf32>
    %cst_162 = arith.constant dense<0.000000e+00> : vector<8x128xf32>
    %392 = tpu.matmul %386, %383, %cst_162 {dimension_numbers = #tpu.dot_dimension_numbers<[1], [0], [0], [1], [0, 0, 1, 1], [], []>} : vector<8x32xf32>, vector<32x128xf32>, vector<8x128xf32> -> vector<8x128xf32>
    %393 = arith.addf %391, %392 : vector<8x128xf32>
    %cst_163 = arith.constant 5.000000e-01 : f32
    %394 = vector.broadcast %cst_163 : f32 to vector<8x128xf32>
    %395 = arith.mulf %394, %390 : vector<8x128xf32>
    %396 = arith.select %5, %390, %395 : vector<8x128xi1>, vector<8x128xf32>
    %397 = math.tanh %396 : vector<8x128xf32>
    %cst_164 = arith.constant 5.000000e-01 : f32
    %398 = vector.broadcast %cst_164 : f32 to vector<8x128xf32>
    %399 = arith.mulf %398, %397 : vector<8x128xf32>
    %cst_165 = arith.constant 5.000000e-01 : f32
    %400 = vector.broadcast %cst_165 : f32 to vector<8x128xf32>
    %401 = arith.addf %399, %400 : vector<8x128xf32>
    %402 = arith.select %5, %397, %401 : vector<8x128xi1>, vector<8x128xf32>
    %cst_166 = arith.constant 5.000000e-01 : f32
    %403 = vector.broadcast %cst_166 : f32 to vector<8x128xf32>
    %404 = arith.mulf %403, %393 : vector<8x128xf32>
    %405 = arith.select %5, %393, %404 : vector<8x128xi1>, vector<8x128xf32>
    %406 = math.tanh %405 : vector<8x128xf32>
    %cst_167 = arith.constant 5.000000e-01 : f32
    %407 = vector.broadcast %cst_167 : f32 to vector<8x128xf32>
    %408 = arith.mulf %407, %406 : vector<8x128xf32>
    %cst_168 = arith.constant 5.000000e-01 : f32
    %409 = vector.broadcast %cst_168 : f32 to vector<8x128xf32>
    %410 = arith.addf %408, %409 : vector<8x128xf32>
    %411 = arith.select %5, %406, %410 : vector<8x128xi1>, vector<8x128xf32>
    %412 = vector.extract_strided_slice %402 {offsets = [0, 32], sizes = [8, 32], strides = [1, 1]} : vector<8x128xf32> to vector<8x32xf32>
    %413 = arith.mulf %412, %385 : vector<8x32xf32>
    %414 = vector.extract_strided_slice %402 {offsets = [0, 0], sizes = [8, 32], strides = [1, 1]} : vector<8x128xf32> to vector<8x32xf32>
    %415 = vector.extract_strided_slice %402 {offsets = [0, 64], sizes = [8, 32], strides = [1, 1]} : vector<8x128xf32> to vector<8x32xf32>
    %416 = arith.mulf %414, %415 : vector<8x32xf32>
    %417 = arith.addf %413, %416 : vector<8x32xf32>
    %418 = vector.extract_strided_slice %411 {offsets = [0, 32], sizes = [8, 32], strides = [1, 1]} : vector<8x128xf32> to vector<8x32xf32>
    %419 = arith.mulf %418, %387 : vector<8x32xf32>
    %420 = vector.extract_strided_slice %411 {offsets = [0, 0], sizes = [8, 32], strides = [1, 1]} : vector<8x128xf32> to vector<8x32xf32>
    %421 = vector.extract_strided_slice %411 {offsets = [0, 64], sizes = [8, 32], strides = [1, 1]} : vector<8x128xf32> to vector<8x32xf32>
    %422 = arith.mulf %420, %421 : vector<8x32xf32>
    %423 = arith.addf %419, %422 : vector<8x32xf32>
    %424 = vector.extract_strided_slice %402 {offsets = [0, 96], sizes = [8, 32], strides = [1, 1]} : vector<8x128xf32> to vector<8x32xf32>
    %425 = math.tanh %417 : vector<8x32xf32>
    %426 = arith.mulf %424, %425 : vector<8x32xf32>
    %427 = vector.extract_strided_slice %411 {offsets = [0, 96], sizes = [8, 32], strides = [1, 1]} : vector<8x128xf32> to vector<8x32xf32>
    %428 = math.tanh %423 : vector<8x32xf32>
    %429 = arith.mulf %427, %428 : vector<8x32xf32>
    %c0_169 = arith.constant 0 : index
    %c0_170 = arith.constant 0 : index
    %430 = vector.load %arg12[%c0_169, %c0_170] : memref<64x32xf32, #tpu.memory_space<vmem>>, vector<8x32xf32>
    tpu.vector_store %arg12[%c0_169, %c0_170], %426 {strides = array<i32>} : memref<64x32xf32, #tpu.memory_space<vmem>>, vector<8x32xf32>,
    %c56_171 = arith.constant 56 : index
    %c0_172 = arith.constant 0 : index
    %431 = vector.load %arg13[%c56_171, %c0_172] : memref<64x32xf32, #tpu.memory_space<vmem>>, vector<8x32xf32>
    tpu.vector_store %arg13[%c56_171, %c0_172], %429 {strides = array<i32>} : memref<64x32xf32, #tpu.memory_space<vmem>>, vector<8x32xf32>,
    %c8_173 = arith.constant 8 : index
    %c0_174 = arith.constant 0 : index
    %432 = vector.load %arg14[%c8_173, %c0_174] : memref<64x256xf32, #tpu.memory_space<vmem>>, vector<8x128xf32>
    %cst_175 = arith.constant dense<0.000000e+00> : vector<8x128xf32>
    %433 = tpu.matmul %426, %382, %cst_175 {dimension_numbers = #tpu.dot_dimension_numbers<[1], [0], [0], [1], [0, 0, 1, 1], [], []>} : vector<8x32xf32>, vector<32x128xf32>, vector<8x128xf32> -> vector<8x128xf32>
    %434 = arith.addf %432, %433 : vector<8x128xf32>
    %c48_176 = arith.constant 48 : index
    %c128_177 = arith.constant 128 : index
    %435 = vector.load %arg14[%c48_176, %c128_177] : memref<64x256xf32, #tpu.memory_space<vmem>>, vector<8x128xf32>
    %cst_178 = arith.constant dense<0.000000e+00> : vector<8x128xf32>
    %436 = tpu.matmul %429, %383, %cst_178 {dimension_numbers = #tpu.dot_dimension_numbers<[1], [0], [0], [1], [0, 0, 1, 1], [], []>} : vector<8x32xf32>, vector<32x128xf32>, vector<8x128xf32> -> vector<8x128xf32>
    %437 = arith.addf %435, %436 : vector<8x128xf32>
    %cst_179 = arith.constant 5.000000e-01 : f32
    %438 = vector.broadcast %cst_179 : f32 to vector<8x128xf32>
    %439 = arith.mulf %438, %434 : vector<8x128xf32>
    %440 = arith.select %5, %434, %439 : vector<8x128xi1>, vector<8x128xf32>
    %441 = math.tanh %440 : vector<8x128xf32>
    %cst_180 = arith.constant 5.000000e-01 : f32
    %442 = vector.broadcast %cst_180 : f32 to vector<8x128xf32>
    %443 = arith.mulf %442, %441 : vector<8x128xf32>
    %cst_181 = arith.constant 5.000000e-01 : f32
    %444 = vector.broadcast %cst_181 : f32 to vector<8x128xf32>
    %445 = arith.addf %443, %444 : vector<8x128xf32>
    %446 = arith.select %5, %441, %445 : vector<8x128xi1>, vector<8x128xf32>
    %cst_182 = arith.constant 5.000000e-01 : f32
    %447 = vector.broadcast %cst_182 : f32 to vector<8x128xf32>
    %448 = arith.mulf %447, %437 : vector<8x128xf32>
    %449 = arith.select %5, %437, %448 : vector<8x128xi1>, vector<8x128xf32>
    %450 = math.tanh %449 : vector<8x128xf32>
    %cst_183 = arith.constant 5.000000e-01 : f32
    %451 = vector.broadcast %cst_183 : f32 to vector<8x128xf32>
    %452 = arith.mulf %451, %450 : vector<8x128xf32>
    %cst_184 = arith.constant 5.000000e-01 : f32
    %453 = vector.broadcast %cst_184 : f32 to vector<8x128xf32>
    %454 = arith.addf %452, %453 : vector<8x128xf32>
    %455 = arith.select %5, %450, %454 : vector<8x128xi1>, vector<8x128xf32>
    %456 = vector.extract_strided_slice %446 {offsets = [0, 32], sizes = [8, 32], strides = [1, 1]} : vector<8x128xf32> to vector<8x32xf32>
    %457 = arith.mulf %456, %417 : vector<8x32xf32>
    %458 = vector.extract_strided_slice %446 {offsets = [0, 0], sizes = [8, 32], strides = [1, 1]} : vector<8x128xf32> to vector<8x32xf32>
    %459 = vector.extract_strided_slice %446 {offsets = [0, 64], sizes = [8, 32], strides = [1, 1]} : vector<8x128xf32> to vector<8x32xf32>
    %460 = arith.mulf %458, %459 : vector<8x32xf32>
    %461 = arith.addf %457, %460 : vector<8x32xf32>
    %462 = vector.extract_strided_slice %455 {offsets = [0, 32], sizes = [8, 32], strides = [1, 1]} : vector<8x128xf32> to vector<8x32xf32>
    %463 = arith.mulf %462, %423 : vector<8x32xf32>
    %464 = vector.extract_strided_slice %455 {offsets = [0, 0], sizes = [8, 32], strides = [1, 1]} : vector<8x128xf32> to vector<8x32xf32>
    %465 = vector.extract_strided_slice %455 {offsets = [0, 64], sizes = [8, 32], strides = [1, 1]} : vector<8x128xf32> to vector<8x32xf32>
    %466 = arith.mulf %464, %465 : vector<8x32xf32>
    %467 = arith.addf %463, %466 : vector<8x32xf32>
    %468 = vector.extract_strided_slice %446 {offsets = [0, 96], sizes = [8, 32], strides = [1, 1]} : vector<8x128xf32> to vector<8x32xf32>
    %469 = math.tanh %461 : vector<8x32xf32>
    %470 = arith.mulf %468, %469 : vector<8x32xf32>
    %471 = vector.extract_strided_slice %455 {offsets = [0, 96], sizes = [8, 32], strides = [1, 1]} : vector<8x128xf32> to vector<8x32xf32>
    %472 = math.tanh %467 : vector<8x32xf32>
    %473 = arith.mulf %471, %472 : vector<8x32xf32>
    %c8_185 = arith.constant 8 : index
    %c0_186 = arith.constant 0 : index
    %474 = vector.load %arg12[%c8_185, %c0_186] : memref<64x32xf32, #tpu.memory_space<vmem>>, vector<8x32xf32>
    tpu.vector_store %arg12[%c8_185, %c0_186], %470 {strides = array<i32>} : memref<64x32xf32, #tpu.memory_space<vmem>>, vector<8x32xf32>,
    %c48_187 = arith.constant 48 : index
    %c0_188 = arith.constant 0 : index
    %475 = vector.load %arg13[%c48_187, %c0_188] : memref<64x32xf32, #tpu.memory_space<vmem>>, vector<8x32xf32>
    tpu.vector_store %arg13[%c48_187, %c0_188], %473 {strides = array<i32>} : memref<64x32xf32, #tpu.memory_space<vmem>>, vector<8x32xf32>,
    %c16_189 = arith.constant 16 : index
    %c0_190 = arith.constant 0 : index
    %476 = vector.load %arg14[%c16_189, %c0_190] : memref<64x256xf32, #tpu.memory_space<vmem>>, vector<8x128xf32>
    %cst_191 = arith.constant dense<0.000000e+00> : vector<8x128xf32>
    %477 = tpu.matmul %470, %382, %cst_191 {dimension_numbers = #tpu.dot_dimension_numbers<[1], [0], [0], [1], [0, 0, 1, 1], [], []>} : vector<8x32xf32>, vector<32x128xf32>, vector<8x128xf32> -> vector<8x128xf32>
    %478 = arith.addf %476, %477 : vector<8x128xf32>
    %c40_192 = arith.constant 40 : index
    %c128_193 = arith.constant 128 : index
    %479 = vector.load %arg14[%c40_192, %c128_193] : memref<64x256xf32, #tpu.memory_space<vmem>>, vector<8x128xf32>
    %cst_194 = arith.constant dense<0.000000e+00> : vector<8x128xf32>
    %480 = tpu.matmul %473, %383, %cst_194 {dimension_numbers = #tpu.dot_dimension_numbers<[1], [0], [0], [1], [0, 0, 1, 1], [], []>} : vector<8x32xf32>, vector<32x128xf32>, vector<8x128xf32> -> vector<8x128xf32>
    %481 = arith.addf %479, %480 : vector<8x128xf32>
    %cst_195 = arith.constant 5.000000e-01 : f32
    %482 = vector.broadcast %cst_195 : f32 to vector<8x128xf32>
    %483 = arith.mulf %482, %478 : vector<8x128xf32>
    %484 = arith.select %5, %478, %483 : vector<8x128xi1>, vector<8x128xf32>
    %485 = math.tanh %484 : vector<8x128xf32>
    %cst_196 = arith.constant 5.000000e-01 : f32
    %486 = vector.broadcast %cst_196 : f32 to vector<8x128xf32>
    %487 = arith.mulf %486, %485 : vector<8x128xf32>
    %cst_197 = arith.constant 5.000000e-01 : f32
    %488 = vector.broadcast %cst_197 : f32 to vector<8x128xf32>
    %489 = arith.addf %487, %488 : vector<8x128xf32>
    %490 = arith.select %5, %485, %489 : vector<8x128xi1>, vector<8x128xf32>
    %cst_198 = arith.constant 5.000000e-01 : f32
    %491 = vector.broadcast %cst_198 : f32 to vector<8x128xf32>
    %492 = arith.mulf %491, %481 : vector<8x128xf32>
    %493 = arith.select %5, %481, %492 : vector<8x128xi1>, vector<8x128xf32>
    %494 = math.tanh %493 : vector<8x128xf32>
    %cst_199 = arith.constant 5.000000e-01 : f32
    %495 = vector.broadcast %cst_199 : f32 to vector<8x128xf32>
    %496 = arith.mulf %495, %494 : vector<8x128xf32>
    %cst_200 = arith.constant 5.000000e-01 : f32
    %497 = vector.broadcast %cst_200 : f32 to vector<8x128xf32>
    %498 = arith.addf %496, %497 : vector<8x128xf32>
    %499 = arith.select %5, %494, %498 : vector<8x128xi1>, vector<8x128xf32>
    %500 = vector.extract_strided_slice %490 {offsets = [0, 32], sizes = [8, 32], strides = [1, 1]} : vector<8x128xf32> to vector<8x32xf32>
    %501 = arith.mulf %500, %461 : vector<8x32xf32>
    %502 = vector.extract_strided_slice %490 {offsets = [0, 0], sizes = [8, 32], strides = [1, 1]} : vector<8x128xf32> to vector<8x32xf32>
    %503 = vector.extract_strided_slice %490 {offsets = [0, 64], sizes = [8, 32], strides = [1, 1]} : vector<8x128xf32> to vector<8x32xf32>
    %504 = arith.mulf %502, %503 : vector<8x32xf32>
    %505 = arith.addf %501, %504 : vector<8x32xf32>
    %506 = vector.extract_strided_slice %499 {offsets = [0, 32], sizes = [8, 32], strides = [1, 1]} : vector<8x128xf32> to vector<8x32xf32>
    %507 = arith.mulf %506, %467 : vector<8x32xf32>
    %508 = vector.extract_strided_slice %499 {offsets = [0, 0], sizes = [8, 32], strides = [1, 1]} : vector<8x128xf32> to vector<8x32xf32>
    %509 = vector.extract_strided_slice %499 {offsets = [0, 64], sizes = [8, 32], strides = [1, 1]} : vector<8x128xf32> to vector<8x32xf32>
    %510 = arith.mulf %508, %509 : vector<8x32xf32>
    %511 = arith.addf %507, %510 : vector<8x32xf32>
    %512 = vector.extract_strided_slice %490 {offsets = [0, 96], sizes = [8, 32], strides = [1, 1]} : vector<8x128xf32> to vector<8x32xf32>
    %513 = math.tanh %505 : vector<8x32xf32>
    %514 = arith.mulf %512, %513 : vector<8x32xf32>
    %515 = vector.extract_strided_slice %499 {offsets = [0, 96], sizes = [8, 32], strides = [1, 1]} : vector<8x128xf32> to vector<8x32xf32>
    %516 = math.tanh %511 : vector<8x32xf32>
    %517 = arith.mulf %515, %516 : vector<8x32xf32>
    %c16_201 = arith.constant 16 : index
    %c0_202 = arith.constant 0 : index
    %518 = vector.load %arg12[%c16_201, %c0_202] : memref<64x32xf32, #tpu.memory_space<vmem>>, vector<8x32xf32>
    tpu.vector_store %arg12[%c16_201, %c0_202], %514 {strides = array<i32>} : memref<64x32xf32, #tpu.memory_space<vmem>>, vector<8x32xf32>,
    %c40_203 = arith.constant 40 : index
    %c0_204 = arith.constant 0 : index
    %519 = vector.load %arg13[%c40_203, %c0_204] : memref<64x32xf32, #tpu.memory_space<vmem>>, vector<8x32xf32>
    tpu.vector_store %arg13[%c40_203, %c0_204], %517 {strides = array<i32>} : memref<64x32xf32, #tpu.memory_space<vmem>>, vector<8x32xf32>,
    %c24_205 = arith.constant 24 : index
    %c0_206 = arith.constant 0 : index
    %520 = vector.load %arg14[%c24_205, %c0_206] : memref<64x256xf32, #tpu.memory_space<vmem>>, vector<8x128xf32>
    %cst_207 = arith.constant dense<0.000000e+00> : vector<8x128xf32>
    %521 = tpu.matmul %514, %382, %cst_207 {dimension_numbers = #tpu.dot_dimension_numbers<[1], [0], [0], [1], [0, 0, 1, 1], [], []>} : vector<8x32xf32>, vector<32x128xf32>, vector<8x128xf32> -> vector<8x128xf32>
    %522 = arith.addf %520, %521 : vector<8x128xf32>
    %c32_208 = arith.constant 32 : index
    %c128_209 = arith.constant 128 : index
    %523 = vector.load %arg14[%c32_208, %c128_209] : memref<64x256xf32, #tpu.memory_space<vmem>>, vector<8x128xf32>
    %cst_210 = arith.constant dense<0.000000e+00> : vector<8x128xf32>
    %524 = tpu.matmul %517, %383, %cst_210 {dimension_numbers = #tpu.dot_dimension_numbers<[1], [0], [0], [1], [0, 0, 1, 1], [], []>} : vector<8x32xf32>, vector<32x128xf32>, vector<8x128xf32> -> vector<8x128xf32>
    %525 = arith.addf %523, %524 : vector<8x128xf32>
    %cst_211 = arith.constant 5.000000e-01 : f32
    %526 = vector.broadcast %cst_211 : f32 to vector<8x128xf32>
    %527 = arith.mulf %526, %522 : vector<8x128xf32>
    %528 = arith.select %5, %522, %527 : vector<8x128xi1>, vector<8x128xf32>
    %529 = math.tanh %528 : vector<8x128xf32>
    %cst_212 = arith.constant 5.000000e-01 : f32
    %530 = vector.broadcast %cst_212 : f32 to vector<8x128xf32>
    %531 = arith.mulf %530, %529 : vector<8x128xf32>
    %cst_213 = arith.constant 5.000000e-01 : f32
    %532 = vector.broadcast %cst_213 : f32 to vector<8x128xf32>
    %533 = arith.addf %531, %532 : vector<8x128xf32>
    %534 = arith.select %5, %529, %533 : vector<8x128xi1>, vector<8x128xf32>
    %cst_214 = arith.constant 5.000000e-01 : f32
    %535 = vector.broadcast %cst_214 : f32 to vector<8x128xf32>
    %536 = arith.mulf %535, %525 : vector<8x128xf32>
    %537 = arith.select %5, %525, %536 : vector<8x128xi1>, vector<8x128xf32>
    %538 = math.tanh %537 : vector<8x128xf32>
    %cst_215 = arith.constant 5.000000e-01 : f32
    %539 = vector.broadcast %cst_215 : f32 to vector<8x128xf32>
    %540 = arith.mulf %539, %538 : vector<8x128xf32>
    %cst_216 = arith.constant 5.000000e-01 : f32
    %541 = vector.broadcast %cst_216 : f32 to vector<8x128xf32>
    %542 = arith.addf %540, %541 : vector<8x128xf32>
    %543 = arith.select %5, %538, %542 : vector<8x128xi1>, vector<8x128xf32>
    %544 = vector.extract_strided_slice %534 {offsets = [0, 32], sizes = [8, 32], strides = [1, 1]} : vector<8x128xf32> to vector<8x32xf32>
    %545 = arith.mulf %544, %505 : vector<8x32xf32>
    %546 = vector.extract_strided_slice %534 {offsets = [0, 0], sizes = [8, 32], strides = [1, 1]} : vector<8x128xf32> to vector<8x32xf32>
    %547 = vector.extract_strided_slice %534 {offsets = [0, 64], sizes = [8, 32], strides = [1, 1]} : vector<8x128xf32> to vector<8x32xf32>
    %548 = arith.mulf %546, %547 : vector<8x32xf32>
    %549 = arith.addf %545, %548 : vector<8x32xf32>
    %550 = vector.extract_strided_slice %543 {offsets = [0, 32], sizes = [8, 32], strides = [1, 1]} : vector<8x128xf32> to vector<8x32xf32>
    %551 = arith.mulf %550, %511 : vector<8x32xf32>
    %552 = vector.extract_strided_slice %543 {offsets = [0, 0], sizes = [8, 32], strides = [1, 1]} : vector<8x128xf32> to vector<8x32xf32>
    %553 = vector.extract_strided_slice %543 {offsets = [0, 64], sizes = [8, 32], strides = [1, 1]} : vector<8x128xf32> to vector<8x32xf32>
    %554 = arith.mulf %552, %553 : vector<8x32xf32>
    %555 = arith.addf %551, %554 : vector<8x32xf32>
    %556 = vector.extract_strided_slice %534 {offsets = [0, 96], sizes = [8, 32], strides = [1, 1]} : vector<8x128xf32> to vector<8x32xf32>
    %557 = math.tanh %549 : vector<8x32xf32>
    %558 = arith.mulf %556, %557 : vector<8x32xf32>
    %559 = vector.extract_strided_slice %543 {offsets = [0, 96], sizes = [8, 32], strides = [1, 1]} : vector<8x128xf32> to vector<8x32xf32>
    %560 = math.tanh %555 : vector<8x32xf32>
    %561 = arith.mulf %559, %560 : vector<8x32xf32>
    %c24_217 = arith.constant 24 : index
    %c0_218 = arith.constant 0 : index
    %562 = vector.load %arg12[%c24_217, %c0_218] : memref<64x32xf32, #tpu.memory_space<vmem>>, vector<8x32xf32>
    tpu.vector_store %arg12[%c24_217, %c0_218], %558 {strides = array<i32>} : memref<64x32xf32, #tpu.memory_space<vmem>>, vector<8x32xf32>,
    %c32_219 = arith.constant 32 : index
    %c0_220 = arith.constant 0 : index
    %563 = vector.load %arg13[%c32_219, %c0_220] : memref<64x32xf32, #tpu.memory_space<vmem>>, vector<8x32xf32>
    tpu.vector_store %arg13[%c32_219, %c0_220], %561 {strides = array<i32>} : memref<64x32xf32, #tpu.memory_space<vmem>>, vector<8x32xf32>,
    %c32_221 = arith.constant 32 : index
    %c0_222 = arith.constant 0 : index
    %564 = vector.load %arg14[%c32_221, %c0_222] : memref<64x256xf32, #tpu.memory_space<vmem>>, vector<8x128xf32>
    %cst_223 = arith.constant dense<0.000000e+00> : vector<8x128xf32>
    %565 = tpu.matmul %558, %382, %cst_223 {dimension_numbers = #tpu.dot_dimension_numbers<[1], [0], [0], [1], [0, 0, 1, 1], [], []>} : vector<8x32xf32>, vector<32x128xf32>, vector<8x128xf32> -> vector<8x128xf32>
    %566 = arith.addf %564, %565 : vector<8x128xf32>
    %c24_224 = arith.constant 24 : index
    %c128_225 = arith.constant 128 : index
    %567 = vector.load %arg14[%c24_224, %c128_225] : memref<64x256xf32, #tpu.memory_space<vmem>>, vector<8x128xf32>
    %cst_226 = arith.constant dense<0.000000e+00> : vector<8x128xf32>
    %568 = tpu.matmul %561, %383, %cst_226 {dimension_numbers = #tpu.dot_dimension_numbers<[1], [0], [0], [1], [0, 0, 1, 1], [], []>} : vector<8x32xf32>, vector<32x128xf32>, vector<8x128xf32> -> vector<8x128xf32>
    %569 = arith.addf %567, %568 : vector<8x128xf32>
    %cst_227 = arith.constant 5.000000e-01 : f32
    %570 = vector.broadcast %cst_227 : f32 to vector<8x128xf32>
    %571 = arith.mulf %570, %566 : vector<8x128xf32>
    %572 = arith.select %5, %566, %571 : vector<8x128xi1>, vector<8x128xf32>
    %573 = math.tanh %572 : vector<8x128xf32>
    %cst_228 = arith.constant 5.000000e-01 : f32
    %574 = vector.broadcast %cst_228 : f32 to vector<8x128xf32>
    %575 = arith.mulf %574, %573 : vector<8x128xf32>
    %cst_229 = arith.constant 5.000000e-01 : f32
    %576 = vector.broadcast %cst_229 : f32 to vector<8x128xf32>
    %577 = arith.addf %575, %576 : vector<8x128xf32>
    %578 = arith.select %5, %573, %577 : vector<8x128xi1>, vector<8x128xf32>
    %cst_230 = arith.constant 5.000000e-01 : f32
    %579 = vector.broadcast %cst_230 : f32 to vector<8x128xf32>
    %580 = arith.mulf %579, %569 : vector<8x128xf32>
    %581 = arith.select %5, %569, %580 : vector<8x128xi1>, vector<8x128xf32>
    %582 = math.tanh %581 : vector<8x128xf32>
    %cst_231 = arith.constant 5.000000e-01 : f32
    %583 = vector.broadcast %cst_231 : f32 to vector<8x128xf32>
    %584 = arith.mulf %583, %582 : vector<8x128xf32>
    %cst_232 = arith.constant 5.000000e-01 : f32
    %585 = vector.broadcast %cst_232 : f32 to vector<8x128xf32>
    %586 = arith.addf %584, %585 : vector<8x128xf32>
    %587 = arith.select %5, %582, %586 : vector<8x128xi1>, vector<8x128xf32>
    %588 = vector.extract_strided_slice %578 {offsets = [0, 32], sizes = [8, 32], strides = [1, 1]} : vector<8x128xf32> to vector<8x32xf32>
    %589 = arith.mulf %588, %549 : vector<8x32xf32>
    %590 = vector.extract_strided_slice %578 {offsets = [0, 0], sizes = [8, 32], strides = [1, 1]} : vector<8x128xf32> to vector<8x32xf32>
    %591 = vector.extract_strided_slice %578 {offsets = [0, 64], sizes = [8, 32], strides = [1, 1]} : vector<8x128xf32> to vector<8x32xf32>
    %592 = arith.mulf %590, %591 : vector<8x32xf32>
    %593 = arith.addf %589, %592 : vector<8x32xf32>
    %594 = vector.extract_strided_slice %587 {offsets = [0, 32], sizes = [8, 32], strides = [1, 1]} : vector<8x128xf32> to vector<8x32xf32>
    %595 = arith.mulf %594, %555 : vector<8x32xf32>
    %596 = vector.extract_strided_slice %587 {offsets = [0, 0], sizes = [8, 32], strides = [1, 1]} : vector<8x128xf32> to vector<8x32xf32>
    %597 = vector.extract_strided_slice %587 {offsets = [0, 64], sizes = [8, 32], strides = [1, 1]} : vector<8x128xf32> to vector<8x32xf32>
    %598 = arith.mulf %596, %597 : vector<8x32xf32>
    %599 = arith.addf %595, %598 : vector<8x32xf32>
    %600 = vector.extract_strided_slice %578 {offsets = [0, 96], sizes = [8, 32], strides = [1, 1]} : vector<8x128xf32> to vector<8x32xf32>
    %601 = math.tanh %593 : vector<8x32xf32>
    %602 = arith.mulf %600, %601 : vector<8x32xf32>
    %603 = vector.extract_strided_slice %587 {offsets = [0, 96], sizes = [8, 32], strides = [1, 1]} : vector<8x128xf32> to vector<8x32xf32>
    %604 = math.tanh %599 : vector<8x32xf32>
    %605 = arith.mulf %603, %604 : vector<8x32xf32>
    %c32_233 = arith.constant 32 : index
    %c0_234 = arith.constant 0 : index
    %606 = vector.load %arg12[%c32_233, %c0_234] : memref<64x32xf32, #tpu.memory_space<vmem>>, vector<8x32xf32>
    tpu.vector_store %arg12[%c32_233, %c0_234], %602 {strides = array<i32>} : memref<64x32xf32, #tpu.memory_space<vmem>>, vector<8x32xf32>,
    %c24_235 = arith.constant 24 : index
    %c0_236 = arith.constant 0 : index
    %607 = vector.load %arg13[%c24_235, %c0_236] : memref<64x32xf32, #tpu.memory_space<vmem>>, vector<8x32xf32>
    tpu.vector_store %arg13[%c24_235, %c0_236], %605 {strides = array<i32>} : memref<64x32xf32, #tpu.memory_space<vmem>>, vector<8x32xf32>,
    %c40_237 = arith.constant 40 : index
    %c0_238 = arith.constant 0 : index
    %608 = vector.load %arg14[%c40_237, %c0_238] : memref<64x256xf32, #tpu.memory_space<vmem>>, vector<8x128xf32>
    %cst_239 = arith.constant dense<0.000000e+00> : vector<8x128xf32>
    %609 = tpu.matmul %602, %382, %cst_239 {dimension_numbers = #tpu.dot_dimension_numbers<[1], [0], [0], [1], [0, 0, 1, 1], [], []>} : vector<8x32xf32>, vector<32x128xf32>, vector<8x128xf32> -> vector<8x128xf32>
    %610 = arith.addf %608, %609 : vector<8x128xf32>
    %c16_240 = arith.constant 16 : index
    %c128_241 = arith.constant 128 : index
    %611 = vector.load %arg14[%c16_240, %c128_241] : memref<64x256xf32, #tpu.memory_space<vmem>>, vector<8x128xf32>
    %cst_242 = arith.constant dense<0.000000e+00> : vector<8x128xf32>
    %612 = tpu.matmul %605, %383, %cst_242 {dimension_numbers = #tpu.dot_dimension_numbers<[1], [0], [0], [1], [0, 0, 1, 1], [], []>} : vector<8x32xf32>, vector<32x128xf32>, vector<8x128xf32> -> vector<8x128xf32>
    %613 = arith.addf %611, %612 : vector<8x128xf32>
    %cst_243 = arith.constant 5.000000e-01 : f32
    %614 = vector.broadcast %cst_243 : f32 to vector<8x128xf32>
    %615 = arith.mulf %614, %610 : vector<8x128xf32>
    %616 = arith.select %5, %610, %615 : vector<8x128xi1>, vector<8x128xf32>
    %617 = math.tanh %616 : vector<8x128xf32>
    %cst_244 = arith.constant 5.000000e-01 : f32
    %618 = vector.broadcast %cst_244 : f32 to vector<8x128xf32>
    %619 = arith.mulf %618, %617 : vector<8x128xf32>
    %cst_245 = arith.constant 5.000000e-01 : f32
    %620 = vector.broadcast %cst_245 : f32 to vector<8x128xf32>
    %621 = arith.addf %619, %620 : vector<8x128xf32>
    %622 = arith.select %5, %617, %621 : vector<8x128xi1>, vector<8x128xf32>
    %cst_246 = arith.constant 5.000000e-01 : f32
    %623 = vector.broadcast %cst_246 : f32 to vector<8x128xf32>
    %624 = arith.mulf %623, %613 : vector<8x128xf32>
    %625 = arith.select %5, %613, %624 : vector<8x128xi1>, vector<8x128xf32>
    %626 = math.tanh %625 : vector<8x128xf32>
    %cst_247 = arith.constant 5.000000e-01 : f32
    %627 = vector.broadcast %cst_247 : f32 to vector<8x128xf32>
    %628 = arith.mulf %627, %626 : vector<8x128xf32>
    %cst_248 = arith.constant 5.000000e-01 : f32
    %629 = vector.broadcast %cst_248 : f32 to vector<8x128xf32>
    %630 = arith.addf %628, %629 : vector<8x128xf32>
    %631 = arith.select %5, %626, %630 : vector<8x128xi1>, vector<8x128xf32>
    %632 = vector.extract_strided_slice %622 {offsets = [0, 32], sizes = [8, 32], strides = [1, 1]} : vector<8x128xf32> to vector<8x32xf32>
    %633 = arith.mulf %632, %593 : vector<8x32xf32>
    %634 = vector.extract_strided_slice %622 {offsets = [0, 0], sizes = [8, 32], strides = [1, 1]} : vector<8x128xf32> to vector<8x32xf32>
    %635 = vector.extract_strided_slice %622 {offsets = [0, 64], sizes = [8, 32], strides = [1, 1]} : vector<8x128xf32> to vector<8x32xf32>
    %636 = arith.mulf %634, %635 : vector<8x32xf32>
    %637 = arith.addf %633, %636 : vector<8x32xf32>
    %638 = vector.extract_strided_slice %631 {offsets = [0, 32], sizes = [8, 32], strides = [1, 1]} : vector<8x128xf32> to vector<8x32xf32>
    %639 = arith.mulf %638, %599 : vector<8x32xf32>
    %640 = vector.extract_strided_slice %631 {offsets = [0, 0], sizes = [8, 32], strides = [1, 1]} : vector<8x128xf32> to vector<8x32xf32>
    %641 = vector.extract_strided_slice %631 {offsets = [0, 64], sizes = [8, 32], strides = [1, 1]} : vector<8x128xf32> to vector<8x32xf32>
    %642 = arith.mulf %640, %641 : vector<8x32xf32>
    %643 = arith.addf %639, %642 : vector<8x32xf32>
    %644 = vector.extract_strided_slice %622 {offsets = [0, 96], sizes = [8, 32], strides = [1, 1]} : vector<8x128xf32> to vector<8x32xf32>
    %645 = math.tanh %637 : vector<8x32xf32>
    %646 = arith.mulf %644, %645 : vector<8x32xf32>
    %647 = vector.extract_strided_slice %631 {offsets = [0, 96], sizes = [8, 32], strides = [1, 1]} : vector<8x128xf32> to vector<8x32xf32>
    %648 = math.tanh %643 : vector<8x32xf32>
    %649 = arith.mulf %647, %648 : vector<8x32xf32>
    %c40_249 = arith.constant 40 : index
    %c0_250 = arith.constant 0 : index
    %650 = vector.load %arg12[%c40_249, %c0_250] : memref<64x32xf32, #tpu.memory_space<vmem>>, vector<8x32xf32>
    tpu.vector_store %arg12[%c40_249, %c0_250], %646 {strides = array<i32>} : memref<64x32xf32, #tpu.memory_space<vmem>>, vector<8x32xf32>,
    %c16_251 = arith.constant 16 : index
    %c0_252 = arith.constant 0 : index
    %651 = vector.load %arg13[%c16_251, %c0_252] : memref<64x32xf32, #tpu.memory_space<vmem>>, vector<8x32xf32>
    tpu.vector_store %arg13[%c16_251, %c0_252], %649 {strides = array<i32>} : memref<64x32xf32, #tpu.memory_space<vmem>>, vector<8x32xf32>,
    %c48_253 = arith.constant 48 : index
    %c0_254 = arith.constant 0 : index
    %652 = vector.load %arg14[%c48_253, %c0_254] : memref<64x256xf32, #tpu.memory_space<vmem>>, vector<8x128xf32>
    %cst_255 = arith.constant dense<0.000000e+00> : vector<8x128xf32>
    %653 = tpu.matmul %646, %382, %cst_255 {dimension_numbers = #tpu.dot_dimension_numbers<[1], [0], [0], [1], [0, 0, 1, 1], [], []>} : vector<8x32xf32>, vector<32x128xf32>, vector<8x128xf32> -> vector<8x128xf32>
    %654 = arith.addf %652, %653 : vector<8x128xf32>
    %c8_256 = arith.constant 8 : index
    %c128_257 = arith.constant 128 : index
    %655 = vector.load %arg14[%c8_256, %c128_257] : memref<64x256xf32, #tpu.memory_space<vmem>>, vector<8x128xf32>
    %cst_258 = arith.constant dense<0.000000e+00> : vector<8x128xf32>
    %656 = tpu.matmul %649, %383, %cst_258 {dimension_numbers = #tpu.dot_dimension_numbers<[1], [0], [0], [1], [0, 0, 1, 1], [], []>} : vector<8x32xf32>, vector<32x128xf32>, vector<8x128xf32> -> vector<8x128xf32>
    %657 = arith.addf %655, %656 : vector<8x128xf32>
    %cst_259 = arith.constant 5.000000e-01 : f32
    %658 = vector.broadcast %cst_259 : f32 to vector<8x128xf32>
    %659 = arith.mulf %658, %654 : vector<8x128xf32>
    %660 = arith.select %5, %654, %659 : vector<8x128xi1>, vector<8x128xf32>
    %661 = math.tanh %660 : vector<8x128xf32>
    %cst_260 = arith.constant 5.000000e-01 : f32
    %662 = vector.broadcast %cst_260 : f32 to vector<8x128xf32>
    %663 = arith.mulf %662, %661 : vector<8x128xf32>
    %cst_261 = arith.constant 5.000000e-01 : f32
    %664 = vector.broadcast %cst_261 : f32 to vector<8x128xf32>
    %665 = arith.addf %663, %664 : vector<8x128xf32>
    %666 = arith.select %5, %661, %665 : vector<8x128xi1>, vector<8x128xf32>
    %cst_262 = arith.constant 5.000000e-01 : f32
    %667 = vector.broadcast %cst_262 : f32 to vector<8x128xf32>
    %668 = arith.mulf %667, %657 : vector<8x128xf32>
    %669 = arith.select %5, %657, %668 : vector<8x128xi1>, vector<8x128xf32>
    %670 = math.tanh %669 : vector<8x128xf32>
    %cst_263 = arith.constant 5.000000e-01 : f32
    %671 = vector.broadcast %cst_263 : f32 to vector<8x128xf32>
    %672 = arith.mulf %671, %670 : vector<8x128xf32>
    %cst_264 = arith.constant 5.000000e-01 : f32
    %673 = vector.broadcast %cst_264 : f32 to vector<8x128xf32>
    %674 = arith.addf %672, %673 : vector<8x128xf32>
    %675 = arith.select %5, %670, %674 : vector<8x128xi1>, vector<8x128xf32>
    %676 = vector.extract_strided_slice %666 {offsets = [0, 32], sizes = [8, 32], strides = [1, 1]} : vector<8x128xf32> to vector<8x32xf32>
    %677 = arith.mulf %676, %637 : vector<8x32xf32>
    %678 = vector.extract_strided_slice %666 {offsets = [0, 0], sizes = [8, 32], strides = [1, 1]} : vector<8x128xf32> to vector<8x32xf32>
    %679 = vector.extract_strided_slice %666 {offsets = [0, 64], sizes = [8, 32], strides = [1, 1]} : vector<8x128xf32> to vector<8x32xf32>
    %680 = arith.mulf %678, %679 : vector<8x32xf32>
    %681 = arith.addf %677, %680 : vector<8x32xf32>
    %682 = vector.extract_strided_slice %675 {offsets = [0, 32], sizes = [8, 32], strides = [1, 1]} : vector<8x128xf32> to vector<8x32xf32>
    %683 = arith.mulf %682, %643 : vector<8x32xf32>
    %684 = vector.extract_strided_slice %675 {offsets = [0, 0], sizes = [8, 32], strides = [1, 1]} : vector<8x128xf32> to vector<8x32xf32>
    %685 = vector.extract_strided_slice %675 {offsets = [0, 64], sizes = [8, 32], strides = [1, 1]} : vector<8x128xf32> to vector<8x32xf32>
    %686 = arith.mulf %684, %685 : vector<8x32xf32>
    %687 = arith.addf %683, %686 : vector<8x32xf32>
    %688 = vector.extract_strided_slice %666 {offsets = [0, 96], sizes = [8, 32], strides = [1, 1]} : vector<8x128xf32> to vector<8x32xf32>
    %689 = math.tanh %681 : vector<8x32xf32>
    %690 = arith.mulf %688, %689 : vector<8x32xf32>
    %691 = vector.extract_strided_slice %675 {offsets = [0, 96], sizes = [8, 32], strides = [1, 1]} : vector<8x128xf32> to vector<8x32xf32>
    %692 = math.tanh %687 : vector<8x32xf32>
    %693 = arith.mulf %691, %692 : vector<8x32xf32>
    %c48_265 = arith.constant 48 : index
    %c0_266 = arith.constant 0 : index
    %694 = vector.load %arg12[%c48_265, %c0_266] : memref<64x32xf32, #tpu.memory_space<vmem>>, vector<8x32xf32>
    tpu.vector_store %arg12[%c48_265, %c0_266], %690 {strides = array<i32>} : memref<64x32xf32, #tpu.memory_space<vmem>>, vector<8x32xf32>,
    %c8_267 = arith.constant 8 : index
    %c0_268 = arith.constant 0 : index
    %695 = vector.load %arg13[%c8_267, %c0_268] : memref<64x32xf32, #tpu.memory_space<vmem>>, vector<8x32xf32>
    tpu.vector_store %arg13[%c8_267, %c0_268], %693 {strides = array<i32>} : memref<64x32xf32, #tpu.memory_space<vmem>>, vector<8x32xf32>,
    %c56_269 = arith.constant 56 : index
    %c0_270 = arith.constant 0 : index
    %696 = vector.load %arg14[%c56_269, %c0_270] : memref<64x256xf32, #tpu.memory_space<vmem>>, vector<8x128xf32>
    %cst_271 = arith.constant dense<0.000000e+00> : vector<8x128xf32>
    %697 = tpu.matmul %690, %382, %cst_271 {dimension_numbers = #tpu.dot_dimension_numbers<[1], [0], [0], [1], [0, 0, 1, 1], [], []>} : vector<8x32xf32>, vector<32x128xf32>, vector<8x128xf32> -> vector<8x128xf32>
    %698 = arith.addf %696, %697 : vector<8x128xf32>
    %c0_272 = arith.constant 0 : index
    %c128_273 = arith.constant 128 : index
    %699 = vector.load %arg14[%c0_272, %c128_273] : memref<64x256xf32, #tpu.memory_space<vmem>>, vector<8x128xf32>
    %cst_274 = arith.constant dense<0.000000e+00> : vector<8x128xf32>
    %700 = tpu.matmul %693, %383, %cst_274 {dimension_numbers = #tpu.dot_dimension_numbers<[1], [0], [0], [1], [0, 0, 1, 1], [], []>} : vector<8x32xf32>, vector<32x128xf32>, vector<8x128xf32> -> vector<8x128xf32>
    %701 = arith.addf %699, %700 : vector<8x128xf32>
    %cst_275 = arith.constant 5.000000e-01 : f32
    %702 = vector.broadcast %cst_275 : f32 to vector<8x128xf32>
    %703 = arith.mulf %702, %698 : vector<8x128xf32>
    %704 = arith.select %5, %698, %703 : vector<8x128xi1>, vector<8x128xf32>
    %705 = math.tanh %704 : vector<8x128xf32>
    %cst_276 = arith.constant 5.000000e-01 : f32
    %706 = vector.broadcast %cst_276 : f32 to vector<8x128xf32>
    %707 = arith.mulf %706, %705 : vector<8x128xf32>
    %cst_277 = arith.constant 5.000000e-01 : f32
    %708 = vector.broadcast %cst_277 : f32 to vector<8x128xf32>
    %709 = arith.addf %707, %708 : vector<8x128xf32>
    %710 = arith.select %5, %705, %709 : vector<8x128xi1>, vector<8x128xf32>
    %cst_278 = arith.constant 5.000000e-01 : f32
    %711 = vector.broadcast %cst_278 : f32 to vector<8x128xf32>
    %712 = arith.mulf %711, %701 : vector<8x128xf32>
    %713 = arith.select %5, %701, %712 : vector<8x128xi1>, vector<8x128xf32>
    %714 = math.tanh %713 : vector<8x128xf32>
    %cst_279 = arith.constant 5.000000e-01 : f32
    %715 = vector.broadcast %cst_279 : f32 to vector<8x128xf32>
    %716 = arith.mulf %715, %714 : vector<8x128xf32>
    %cst_280 = arith.constant 5.000000e-01 : f32
    %717 = vector.broadcast %cst_280 : f32 to vector<8x128xf32>
    %718 = arith.addf %716, %717 : vector<8x128xf32>
    %719 = arith.select %5, %714, %718 : vector<8x128xi1>, vector<8x128xf32>
    %720 = vector.extract_strided_slice %710 {offsets = [0, 32], sizes = [8, 32], strides = [1, 1]} : vector<8x128xf32> to vector<8x32xf32>
    %721 = arith.mulf %720, %681 : vector<8x32xf32>
    %722 = vector.extract_strided_slice %710 {offsets = [0, 0], sizes = [8, 32], strides = [1, 1]} : vector<8x128xf32> to vector<8x32xf32>
    %723 = vector.extract_strided_slice %710 {offsets = [0, 64], sizes = [8, 32], strides = [1, 1]} : vector<8x128xf32> to vector<8x32xf32>
    %724 = arith.mulf %722, %723 : vector<8x32xf32>
    %725 = arith.addf %721, %724 : vector<8x32xf32>
    %726 = vector.extract_strided_slice %719 {offsets = [0, 32], sizes = [8, 32], strides = [1, 1]} : vector<8x128xf32> to vector<8x32xf32>
    %727 = arith.mulf %726, %687 : vector<8x32xf32>
    %728 = vector.extract_strided_slice %719 {offsets = [0, 0], sizes = [8, 32], strides = [1, 1]} : vector<8x128xf32> to vector<8x32xf32>
    %729 = vector.extract_strided_slice %719 {offsets = [0, 64], sizes = [8, 32], strides = [1, 1]} : vector<8x128xf32> to vector<8x32xf32>
    %730 = arith.mulf %728, %729 : vector<8x32xf32>
    %731 = arith.addf %727, %730 : vector<8x32xf32>
    %732 = vector.extract_strided_slice %710 {offsets = [0, 96], sizes = [8, 32], strides = [1, 1]} : vector<8x128xf32> to vector<8x32xf32>
    %733 = math.tanh %725 : vector<8x32xf32>
    %734 = arith.mulf %732, %733 : vector<8x32xf32>
    %735 = vector.extract_strided_slice %719 {offsets = [0, 96], sizes = [8, 32], strides = [1, 1]} : vector<8x128xf32> to vector<8x32xf32>
    %736 = math.tanh %731 : vector<8x32xf32>
    %737 = arith.mulf %735, %736 : vector<8x32xf32>
    %c56_281 = arith.constant 56 : index
    %c0_282 = arith.constant 0 : index
    %738 = vector.load %arg12[%c56_281, %c0_282] : memref<64x32xf32, #tpu.memory_space<vmem>>, vector<8x32xf32>
    tpu.vector_store %arg12[%c56_281, %c0_282], %734 {strides = array<i32>} : memref<64x32xf32, #tpu.memory_space<vmem>>, vector<8x32xf32>,
    %c0_283 = arith.constant 0 : index
    %c0_284 = arith.constant 0 : index
    %739 = vector.load %arg13[%c0_283, %c0_284] : memref<64x32xf32, #tpu.memory_space<vmem>>, vector<8x32xf32>
    tpu.vector_store %arg13[%c0_283, %c0_284], %737 {strides = array<i32>} : memref<64x32xf32, #tpu.memory_space<vmem>>, vector<8x32xf32>,
    %c0_285 = arith.constant 0 : index
    %c0_286 = arith.constant 0 : index
    %740 = vector.load %arg12[%c0_285, %c0_286] : memref<64x32xf32, #tpu.memory_space<vmem>>, vector<64x32xf32>
    %c0_287 = arith.constant 0 : index
    %c0_288 = arith.constant 0 : index
    %741 = vector.load %arg9[%c0_287, %c0_288] : memref<64x8xf32, #tpu.memory_space<vmem>>, vector<32x8xf32>
    %cst_289 = arith.constant dense<0.000000e+00> : vector<64x8xf32>
    %742 = tpu.matmul %740, %741, %cst_289 {dimension_numbers = #tpu.dot_dimension_numbers<[1], [0], [0], [1], [0, 0, 1, 1], [], []>} : vector<64x32xf32>, vector<32x8xf32>, vector<64x8xf32> -> vector<64x8xf32>
    %c0_290 = arith.constant 0 : index
    %c0_291 = arith.constant 0 : index
    %743 = vector.load %arg13[%c0_290, %c0_291] : memref<64x32xf32, #tpu.memory_space<vmem>>, vector<64x32xf32>
    %c32_292 = arith.constant 32 : index
    %c0_293 = arith.constant 0 : index
    %744 = vector.load %arg9[%c32_292, %c0_293] : memref<64x8xf32, #tpu.memory_space<vmem>>, vector<32x8xf32>
    %cst_294 = arith.constant dense<0.000000e+00> : vector<64x8xf32>
    %745 = tpu.matmul %743, %744, %cst_294 {dimension_numbers = #tpu.dot_dimension_numbers<[1], [0], [0], [1], [0, 0, 1, 1], [], []>} : vector<64x32xf32>, vector<32x8xf32>, vector<64x8xf32> -> vector<64x8xf32>
    %746 = arith.addf %742, %745 : vector<64x8xf32>
    %c0_295 = arith.constant 0 : index
    %c0_296 = arith.constant 0 : index
    %747 = vector.load %arg10[%c0_295, %c0_296] : memref<1x8xf32, #tpu.memory_space<vmem>>, vector<1x8xf32>
    %748 = vector.broadcast %747 : vector<1x8xf32> to vector<64x8xf32>
    %749 = arith.addf %746, %748 : vector<64x8xf32>
    %c0_297 = arith.constant 0 : index
    %c0_298 = arith.constant 0 : index
    %750 = vector.load %arg11[%c0_297, %c0_298] : memref<64x8xf32, #tpu.memory_space<vmem>>, vector<64x8xf32>
    tpu.vector_store %arg11[%c0_297, %c0_298], %749 {strides = array<i32>} : memref<64x8xf32, #tpu.memory_space<vmem>>, vector<64x8xf32>,
    return
  }
}

</mosaic_0001>

<llo_original>
// kernel: bilstm_model_forward.1
$region0: #{bilstm_model_forward.1}
  #allocation0 [shape = 'u32[]', space=smem, size = 0x4, offset = 0x4, fixed_abs, tag = 'smem constant byte address 0x4 - core index']
  #allocation1 [shape = 'u32[144,128]{1,0:T(1,128)}', space=vmem, size = 0x12000, scoped, tag = 'internal scratch']
  #allocation2 [shape = 'f32[64,32]{1,0:T(8,128)}', space=vmem, size = 0x8000, scoped, tag = 'scratch operand']
  #allocation3 [shape = 'f32[64,32]{1,0:T(8,128)}', space=vmem, size = 0x8000, scoped, tag = 'scratch operand']
  #allocation4 [shape = 'f32[64,256]{1,0:T(8,128)}', space=vmem, size = 0x10000, scoped, tag = 'scratch operand']
  %s0 = inlined_call_operand.vmem [shape: f32[64,16], index: 0, kind: input, shape index: {}]
  %s1 = inlined_call_operand.vmem [shape: f32[16,256], index: 1, kind: input, shape index: {}]
  %s2 = inlined_call_operand.vmem [shape: f32[32,128], index: 2, kind: input, shape index: {}]
  %s3 = inlined_call_operand.vmem [shape: f32[32,128], index: 3, kind: input, shape index: {}]
  %s4 = inlined_call_operand.vmem [shape: f32[1,256], index: 4, kind: input, shape index: {}]
  %s5 = inlined_call_operand.vmem [shape: f32[64,256], index: 5, kind: input, shape index: {}]
  %s6 = inlined_call_operand.vmem [shape: f32[32,128], index: 6, kind: input, shape index: {}]
  %s7 = inlined_call_operand.vmem [shape: f32[32,128], index: 7, kind: input, shape index: {}]
  %s8 = inlined_call_operand.vmem [shape: f32[1,256], index: 8, kind: input, shape index: {}]
  %s9 = inlined_call_operand.vmem [shape: f32[64,8], index: 9, kind: input, shape index: {}]
  %s10 = inlined_call_operand.vmem [shape: f32[1,8], index: 10, kind: input, shape index: {}]
  %s11 = inlined_call_operand.vmem [shape: f32[64,8], index: 11, kind: output, shape index: {}]
  %s12 = sld [smem:[#allocation0]]
  $region54: #{bilstm_model_forward.1} parent=0
    _
  %s14 = ssub.s32 1, %s12
  %s15 = scalar_select 0, %s14, %s12
  // Predicated region
  $region2: #{bilstm_model_forward.1} parent=0 // pred_check
    _
  $region3: #{bilstm_model_forward.1} parent=0 // pred_check_branch
    %17 = sbr.rel (0) target = $region5
  $region4: #{bilstm_model_forward.1} parent=0 // pred_region
    _
  $region5: #{bilstm_model_forward.1} parent=0 // pred_fallthru
    _
  // Predicated region
  $region6: #{bilstm_model_forward.1} parent=0 // pred_check
    _
  $region7: #{bilstm_model_forward.1} parent=0 // pred_check_branch
    %19 = sbr.rel (0) target = $region9
  $region8: #{bilstm_model_forward.1} parent=0 // pred_region
    _
  $region9: #{bilstm_model_forward.1} parent=0 // pred_fallthru
    _
  // Predicated region
  $region10: #{bilstm_model_forward.1} parent=0 // pred_check
    _
  $region11: #{bilstm_model_forward.1} parent=0 // pred_check_branch
    %21 = sbr.rel (0) target = $region13
  $region12: #{bilstm_model_forward.1} parent=0 // pred_region
    _
  $region13: #{bilstm_model_forward.1} parent=0 // pred_fallthru
    _
  // Predicated region
  $region14: #{bilstm_model_forward.1} parent=0 // pred_check
    _
  $region15: #{bilstm_model_forward.1} parent=0 // pred_check_branch
    %23 = sbr.rel (0) target = $region17
  $region16: #{bilstm_model_forward.1} parent=0 // pred_region
    _
  $region17: #{bilstm_model_forward.1} parent=0 // pred_fallthru
    _
  // Predicated region
  $region18: #{bilstm_model_forward.1} parent=0 // pred_check
    _
  $region19: #{bilstm_model_forward.1} parent=0 // pred_check_branch
    %25 = sbr.rel (0) target = $region21
  $region20: #{bilstm_model_forward.1} parent=0 // pred_region
    _
  $region21: #{bilstm_model_forward.1} parent=0 // pred_fallthru
    _
  // Predicated region
  $region22: #{bilstm_model_forward.1} parent=0 // pred_check
    _
  $region23: #{bilstm_model_forward.1} parent=0 // pred_check_branch
    %27 = sbr.rel (0) target = $region25
  $region24: #{bilstm_model_forward.1} parent=0 // pred_region
    _
  $region25: #{bilstm_model_forward.1} parent=0 // pred_fallthru
    _
  // Predicated region
  $region26: #{bilstm_model_forward.1} parent=0 // pred_check
    _
  $region27: #{bilstm_model_forward.1} parent=0 // pred_check_branch
    %29 = sbr.rel (0) target = $region29
  $region28: #{bilstm_model_forward.1} parent=0 // pred_region
    _
  $region29: #{bilstm_model_forward.1} parent=0 // pred_fallthru
    _
  // Predicated region
  $region30: #{bilstm_model_forward.1} parent=0 // pred_check
    _
  $region31: #{bilstm_model_forward.1} parent=0 // pred_check_branch
    %31 = sbr.rel (0) target = $region33
  $region32: #{bilstm_model_forward.1} parent=0 // pred_region
    _
  $region33: #{bilstm_model_forward.1} parent=0 // pred_fallthru
    _
  // Predicated region
  $region34: #{bilstm_model_forward.1} parent=0 // pred_check
    _
  $region35: #{bilstm_model_forward.1} parent=0 // pred_check_branch
    %33 = sbr.rel (0) target = $region37
  $region36: #{bilstm_model_forward.1} parent=0 // pred_region
    _
  $region37: #{bilstm_model_forward.1} parent=0 // pred_fallthru
    _
  // Predicated region
  $region38: #{bilstm_model_forward.1} parent=0 // pred_check
    _
  $region39: #{bilstm_model_forward.1} parent=0 // pred_check_branch
    %35 = sbr.rel (0) target = $region41
  $region40: #{bilstm_model_forward.1} parent=0 // pred_region
    _
  $region41: #{bilstm_model_forward.1} parent=0 // pred_fallthru
    _
  // Predicated region
  $region42: #{bilstm_model_forward.1} parent=0 // pred_check
    _
  $region43: #{bilstm_model_forward.1} parent=0 // pred_check_branch
    %37 = sbr.rel (0) target = $region45
  $region44: #{bilstm_model_forward.1} parent=0 // pred_region
    _
  $region45: #{bilstm_model_forward.1} parent=0 // pred_fallthru
    _
  %v38 = vlaneseq
  %v39 = vand.u32 %v38, 127
  %vm40 = vcmp.ge.s32.totalorder %v39, 64
  %vm41 = vcmp.lt.s32.totalorder %v39, 96
  %vm42 = vmand %vm40, %vm41
  %v43 = vld [vmem:[%s0] sm:$0xff]
  %v44 = vld [vmem:[%s0 + $0x8] sm:$0xff]
  %v45 = vld [vmem:[%s0 + $0x10] sm:$0xff]
  %v46 = vld [vmem:[%s0 + $0x18] sm:$0xff]
  %v47 = vld [vmem:[%s0 + $0x20] sm:$0xff]
  %v48 = vld [vmem:[%s0 + $0x28] sm:$0xff]
  %v49 = vld [vmem:[%s0 + $0x30] sm:$0xff]
  %v50 = vld [vmem:[%s0 + $0x38] sm:$0xff]
  %v51 = vld [vmem:[%s1] sm:$0xff]
  %v52 = vld [vmem:[%s1 + $0x8] sm:$0xff]
  %v53 = vld [vmem:[%s1 + $0x10] sm:$0xff]
  %v54 = vld [vmem:[%s1 + $0x18] sm:$0xff]
  %v55 = vld [vmem:[%s4] sm:$0x3]
  %v57 = vlaneseq
  %v58 = vshrl.u32 %v57, 7
  %v59 = vsub.s32 0, %v58
  %v60 = vrot.slane %v55, %v59
  %v61 = vlaneseq
  %v62 = vshrl.u32 %v61, 7
  %v63 = vsub.s32 1, %v62
  %v64 = vrot.slane %v55, %v63
  %vm67 = vcmask 130048
  %v69 = vsel %vm67, %v43, 0
  %v72 = vsel %vm67, %v44, 0
  %v75 = vsel %vm67, %v45, 0
  %v78 = vsel %vm67, %v46, 0
  %v81 = vsel %vm67, %v47, 0
  %v84 = vsel %vm67, %v48, 0
  %v87 = vsel %vm67, %v49, 0
  %v90 = vsel %vm67, %v50, 0
  %92 = vmatprep.subr.mxu0 %v52
  %93 = vmatpush1.msra.mxu0 %v51
  %94 = vmatprep.subr.mxu0 %v54
  %95 = vmatpush1.msra.mxu0 %v53
  %96 = vmatprep.subr.mxu0 0.0
  %97 = vmatpush1.msra.mxu0 0.0
  %98 = vmatprep.subr.mxu0 0.0
  %99 = vmatpush1.msra.mxu0 0.0
  %100 = vmatprep.subr.mxu0 0.0
  %101 = vmatpush1.msra.mxu0 0.0
  %102 = vmatprep.subr.mxu0 0.0
  %103 = vmatpush1.msra.mxu0 0.0
  %104 = vmatprep.subr.mxu0 0.0
  %105 = vmatpush1.msra.mxu0 0.0
  %106 = vmatprep.subr.mxu0 0.0
  %107 = vmatpush1.msra.mxu0 0.0
  %108 = vmatprep.subr.mxu0 0.0
  %109 = vmatpush1.msra.mxu0 0.0
  %110 = vmatprep.subr.mxu0 0.0
  %111 = vmatpush1.msra.mxu0 0.0
  %112 = vmatprep.subr.mxu0 0.0
  %113 = vmatpush1.msra.mxu0 0.0
  %114 = vmatprep.subr.mxu0 0.0
  %115 = vmatpush1.msra.mxu0 0.0
  %116 = vmatprep.subr.mxu0 0.0
  %117 = vmatpush1.msra.mxu0 0.0
  %118 = vmatprep.subr.mxu0 0.0
  %119 = vmatpush1.msra.mxu0 0.0
  %120 = vmatprep.subr.mxu0 0.0
  %121 = vmatpush1.msra.mxu0 0.0
  %122 = vmatprep.subr.mxu0 0.0
  %123 = vmatpush1.msra.mxu0 0.0
  %124 = vmatprep.subr.mxu0 0.0
  %125 = vmatpush1.msra.mxu0 0.0
  %126 = vmatprep.subr.mxu0 0.0
  %127 = vmatpush1.msra.mxu0 0.0
  %128 = vmatprep.subr.mxu0 0.0
  %129 = vmatpush1.msra.mxu0 0.0
  %130 = vmatprep.subr.mxu0 0.0
  %131 = vmatpush1.msra.mxu0 0.0
  %132 = vmatprep.subr.mxu0 0.0
  %133 = vmatpush1.msra.mxu0 0.0
  %134 = vmatprep.subr.mxu0 0.0
  %135 = vmatpush1.msra.mxu0 0.0
  %136 = vmatprep.subr.mxu0 0.0
  %137 = vmatpush1.msra.mxu0 0.0
  %138 = vmatprep.subr.mxu0 0.0
  %139 = vmatpush1.msra.mxu0 0.0
  %140 = vmatprep.subr.mxu0 0.0
  %141 = vmatpush1.msra.mxu0 0.0
  %142 = vmatprep.subr.mxu0 0.0
  %143 = vmatpush1.msra.mxu0 0.0
  %144 = vmatprep.subr.mxu0 0.0
  %145 = vmatpush1.msra.mxu0 0.0
  %146 = vmatprep.subr.mxu0 0.0
  %147 = vmatpush1.msra.mxu0 0.0
  %148 = vmatprep.subr.mxu0 0.0
  %149 = vmatpush1.msra.mxu0 0.0
  %150 = vmatprep.subr.mxu0 0.0
  %151 = vmatpush1.msra.mxu0 0.0
  %152 = vmatprep.subr.mxu0 0.0
  %153 = vmatpush1.msra.mxu0 0.0
  %154 = vmatprep.subr.mxu0 0.0
  %155 = vmatpush1.msra.mxu0 0.0
  %156 = vmatprep.mubr.f32.mxu0 0.0
  %157 = vmatmul.mubr.f32.gmra.mrb[0].mxu0 %v69
  %v158 = vpop.f32.mrb[0].mxu0
  %v159 = vadd.f32 %v60, %v158
  %v160 = vpop.f32.mrb[0].mxu0
  %v161 = vadd.f32 %v64, %v160
  %162 = vmatprep.mubr.f32.mxu0 0.0
  %163 = vmatmul.mubr.f32.gmra.mrb[0].mxu0 %v72
  %v164 = vpop.f32.mrb[0].mxu0
  %v165 = vadd.f32 %v60, %v164
  %v166 = vpop.f32.mrb[0].mxu0
  %v167 = vadd.f32 %v64, %v166
  %168 = vmatprep.mubr.f32.mxu0 0.0
  %169 = vmatmul.mubr.f32.gmra.mrb[0].mxu0 %v75
  %v170 = vpop.f32.mrb[0].mxu0
  %v171 = vadd.f32 %v60, %v170
  %v172 = vpop.f32.mrb[0].mxu0
  %v173 = vadd.f32 %v64, %v172
  %174 = vmatprep.mubr.f32.mxu0 0.0
  %175 = vmatmul.mubr.f32.gmra.mrb[0].mxu0 %v78
  %v176 = vpop.f32.mrb[0].mxu0
  %v177 = vadd.f32 %v60, %v176
  %v178 = vpop.f32.mrb[0].mxu0
  %v179 = vadd.f32 %v64, %v178
  %180 = vmatprep.mubr.f32.mxu0 0.0
  %181 = vmatmul.mubr.f32.gmra.mrb[0].mxu0 %v81
  %v182 = vpop.f32.mrb[0].mxu0
  %v183 = vadd.f32 %v60, %v182
  %v184 = vpop.f32.mrb[0].mxu0
  %v185 = vadd.f32 %v64, %v184
  %186 = vmatprep.mubr.f32.mxu0 0.0
  %187 = vmatmul.mubr.f32.gmra.mrb[0].mxu0 %v84
  %v188 = vpop.f32.mrb[0].mxu0
  %v189 = vadd.f32 %v60, %v188
  %v190 = vpop.f32.mrb[0].mxu0
  %v191 = vadd.f32 %v64, %v190
  %192 = vmatprep.mubr.f32.mxu0 0.0
  %193 = vmatmul.mubr.f32.gmra.mrb[0].mxu0 %v87
  %v194 = vpop.f32.mrb[0].mxu0
  %v195 = vadd.f32 %v60, %v194
  %v196 = vpop.f32.mrb[0].mxu0
  %v197 = vadd.f32 %v64, %v196
  %198 = vmatprep.mubr.f32.mxu0 0.0
  %199 = vmatmul.mubr.f32.gmra.mrb[0].mxu0 %v90
  %v200 = vpop.f32.mrb[0].mxu0
  %v201 = vadd.f32 %v60, %v200
  %v202 = vpop.f32.mrb[0].mxu0
  %v203 = vadd.f32 %v64, %v202
  %204 = vdwg.mxu0
  %205 = vst [vmem:[#allocation4] sm:$0xff] %v159
  %206 = vst [vmem:[#allocation4 + $0x8] sm:$0xff] %v161
  %207 = vst [vmem:[#allocation4 + $0x10] sm:$0xff] %v165
  %208 = vst [vmem:[#allocation4 + $0x18] sm:$0xff] %v167
  %209 = vst [vmem:[#allocation4 + $0x20] sm:$0xff] %v171
  %210 = vst [vmem:[#allocation4 + $0x28] sm:$0xff] %v173
  %211 = vst [vmem:[#allocation4 + $0x30] sm:$0xff] %v177
  %212 = vst [vmem:[#allocation4 + $0x38] sm:$0xff] %v179
  %213 = vst [vmem:[#allocation4 + $0x40] sm:$0xff] %v183
  %214 = vst [vmem:[#allocation4 + $0x48] sm:$0xff] %v185
  %215 = vst [vmem:[#allocation4 + $0x50] sm:$0xff] %v189
  %216 = vst [vmem:[#allocation4 + $0x58] sm:$0xff] %v191
  %217 = vst [vmem:[#allocation4 + $0x60] sm:$0xff] %v195
  %218 = vst [vmem:[#allocation4 + $0x68] sm:$0xff] %v197
  %219 = vst [vmem:[#allocation4 + $0x70] sm:$0xff] %v201
  %220 = vst [vmem:[#allocation4 + $0x78] sm:$0xff] %v203
  %v221 = vld [vmem:[%s2] sm:$0xff]
  %v222 = vld [vmem:[%s2 + $0x8] sm:$0xff]
  %v223 = vld [vmem:[%s2 + $0x10] sm:$0xff]
  %v224 = vld [vmem:[%s2 + $0x18] sm:$0xff]
  %v225 = vld [vmem:[%s3] sm:$0xff]
  %v226 = vld [vmem:[%s3 + $0x8] sm:$0xff]
  %v227 = vld [vmem:[%s3 + $0x10] sm:$0xff]
  %v228 = vld [vmem:[%s3 + $0x18] sm:$0xff]
  %v229 = vld [vmem:[#allocation4] sm:$0xff]
  %vm230 = vcmask 261120
  %v232 = vsel %vm230, 0.0, 0
  %234 = vmatprep.subr.mxu0 0.0
  %235 = vmatpush1.msra.mxu0 %v221
  %236 = vmatprep.subr.mxu0 0.0
  %237 = vmatpush1.msra.mxu0 %v222
  %238 = vmatprep.subr.mxu0 0.0
  %239 = vmatpush1.msra.mxu0 %v223
  %240 = vmatprep.subr.mxu0 0.0
  %241 = vmatpush1.msra.mxu0 %v224
  %242 = vmatprep.subr.mxu0 0.0
  %243 = vmatpush1.msra.mxu0 0.0
  %244 = vmatprep.subr.mxu0 0.0
  %245 = vmatpush1.msra.mxu0 0.0
  %246 = vmatprep.subr.mxu0 0.0
  %247 = vmatpush1.msra.mxu0 0.0
  %248 = vmatprep.subr.mxu0 0.0
  %249 = vmatpush1.msra.mxu0 0.0
  %250 = vmatprep.subr.mxu0 0.0
  %251 = vmatpush1.msra.mxu0 0.0
  %252 = vmatprep.subr.mxu0 0.0
  %253 = vmatpush1.msra.mxu0 0.0
  %254 = vmatprep.subr.mxu0 0.0
  %255 = vmatpush1.msra.mxu0 0.0
  %256 = vmatprep.subr.mxu0 0.0
  %257 = vmatpush1.msra.mxu0 0.0
  %258 = vmatprep.subr.mxu0 0.0
  %259 = vmatpush1.msra.mxu0 0.0
  %260 = vmatprep.subr.mxu0 0.0
  %261 = vmatpush1.msra.mxu0 0.0
  %262 = vmatprep.subr.mxu0 0.0
  %263 = vmatpush1.msra.mxu0 0.0
  %264 = vmatprep.subr.mxu0 0.0
  %265 = vmatpush1.msra.mxu0 0.0
  %266 = vmatprep.subr.mxu0 0.0
  %267 = vmatpush1.msra.mxu0 0.0
  %268 = vmatprep.subr.mxu0 0.0
  %269 = vmatpush1.msra.mxu0 0.0
  %270 = vmatprep.subr.mxu0 0.0
  %271 = vmatpush1.msra.mxu0 0.0
  %272 = vmatprep.subr.mxu0 0.0
  %273 = vmatpush1.msra.mxu0 0.0
  %274 = vmatprep.subr.mxu0 0.0
  %275 = vmatpush1.msra.mxu0 0.0
  %276 = vmatprep.subr.mxu0 0.0
  %277 = vmatpush1.msra.mxu0 0.0
  %278 = vmatprep.subr.mxu0 0.0
  %279 = vmatpush1.msra.mxu0 0.0
  %280 = vmatprep.subr.mxu0 0.0
  %281 = vmatpush1.msra.mxu0 0.0
  %282 = vmatprep.subr.mxu0 0.0
  %283 = vmatpush1.msra.mxu0 0.0
  %284 = vmatprep.subr.mxu0 0.0
  %285 = vmatpush1.msra.mxu0 0.0
  %286 = vmatprep.subr.mxu0 0.0
  %287 = vmatpush1.msra.mxu0 0.0
  %288 = vmatprep.subr.mxu0 0.0
  %289 = vmatpush1.msra.mxu0 0.0
  %290 = vmatprep.subr.mxu0 0.0
  %291 = vmatpush1.msra.mxu0 0.0
  %292 = vmatprep.subr.mxu0 0.0
  %293 = vmatpush1.msra.mxu0 0.0
  %294 = vmatprep.subr.mxu0 0.0
  %295 = vmatpush1.msra.mxu0 0.0
  %296 = vmatprep.subr.mxu0 0.0
  %297 = vmatpush1.msra.mxu0 0.0
  %298 = vmatprep.mubr.f32.mxu0 0.0
  %299 = vmatmul.mubr.f32.gmra.mrb[0].mxu0 %v232
  %v300 = vpop.f32.mrb[0].mxu0
  %v301 = vadd.f32 0.0, %v300
  %v302 = vpop.f32.mrb[0].mxu0
  %303 = vdwg.mxu0
  %v304 = vadd.f32 %v229, %v301
  %v305 = vld [vmem:[#allocation4 + $0x78] sm:$0xff]
  %306 = vmatprep.subr.mxu0 0.0
  %307 = vmatpush1.msra.mxu0 %v225
  %308 = vmatprep.subr.mxu0 0.0
  %309 = vmatpush1.msra.mxu0 %v226
  %310 = vmatprep.subr.mxu0 0.0
  %311 = vmatpush1.msra.mxu0 %v227
  %312 = vmatprep.subr.mxu0 0.0
  %313 = vmatpush1.msra.mxu0 %v228
  %314 = vmatprep.subr.mxu0 0.0
  %315 = vmatpush1.msra.mxu0 0.0
  %316 = vmatprep.subr.mxu0 0.0
  %317 = vmatpush1.msra.mxu0 0.0
  %318 = vmatprep.subr.mxu0 0.0
  %319 = vmatpush1.msra.mxu0 0.0
  %320 = vmatprep.subr.mxu0 0.0
  %321 = vmatpush1.msra.mxu0 0.0
  %322 = vmatprep.subr.mxu0 0.0
  %323 = vmatpush1.msra.mxu0 0.0
  %324 = vmatprep.subr.mxu0 0.0
  %325 = vmatpush1.msra.mxu0 0.0
  %326 = vmatprep.subr.mxu0 0.0
  %327 = vmatpush1.msra.mxu0 0.0
  %328 = vmatprep.subr.mxu0 0.0
  %329 = vmatpush1.msra.mxu0 0.0
  %330 = vmatprep.subr.mxu0 0.0
  %331 = vmatpush1.msra.mxu0 0.0
  %332 = vmatprep.subr.mxu0 0.0
  %333 = vmatpush1.msra.mxu0 0.0
  %334 = vmatprep.subr.mxu0 0.0
  %335 = vmatpush1.msra.mxu0 0.0
  %336 = vmatprep.subr.mxu0 0.0
  %337 = vmatpush1.msra.mxu0 0.0
  %338 = vmatprep.subr.mxu0 0.0
  %339 = vmatpush1.msra.mxu0 0.0
  %340 = vmatprep.subr.mxu0 0.0
  %341 = vmatpush1.msra.mxu0 0.0
  %342 = vmatprep.subr.mxu0 0.0
  %343 = vmatpush1.msra.mxu0 0.0
  %344 = vmatprep.subr.mxu0 0.0
  %345 = vmatpush1.msra.mxu0 0.0
  %346 = vmatprep.subr.mxu0 0.0
  %347 = vmatpush1.msra.mxu0 0.0
  %348 = vmatprep.subr.mxu0 0.0
  %349 = vmatpush1.msra.mxu0 0.0
  %350 = vmatprep.subr.mxu0 0.0
  %351 = vmatpush1.msra.mxu0 0.0
  %352 = vmatprep.subr.mxu0 0.0
  %353 = vmatpush1.msra.mxu0 0.0
  %354 = vmatprep.subr.mxu0 0.0
  %355 = vmatpush1.msra.mxu0 0.0
  %356 = vmatprep.subr.mxu0 0.0
  %357 = vmatpush1.msra.mxu0 0.0
  %358 = vmatprep.subr.mxu0 0.0
  %359 = vmatpush1.msra.mxu0 0.0
  %360 = vmatprep.subr.mxu0 0.0
  %361 = vmatpush1.msra.mxu0 0.0
  %362 = vmatprep.subr.mxu0 0.0
  %363 = vmatpush1.msra.mxu0 0.0
  %364 = vmatprep.subr.mxu0 0.0
  %365 = vmatpush1.msra.mxu0 0.0
  %366 = vmatprep.subr.mxu0 0.0
  %367 = vmatpush1.msra.mxu0 0.0
  %368 = vmatprep.subr.mxu0 0.0
  %369 = vmatpush1.msra.mxu0 0.0
  %370 = vmatprep.mubr.f32.mxu0 0.0
  %371 = vmatmul.mubr.f32.gmra.mrb[0].mxu0 %v232
  %v372 = vpop.f32.mrb[0].mxu0
  %v373 = vadd.f32 0.0, %v372
  %v374 = vpop.f32.mrb[0].mxu0
  %375 = vdwg.mxu0
  %v376 = vadd.f32 %v305, %v373
  %v377 = vmul.f32 %v304, 0.5
  %v378 = vsel %vm42, %v304, %v377
  %v379 = vtanh.pop %v378
  %v380 = vmul.f32 %v379, 0.5
  %v381 = vadd.f32 %v380, 0.5
  %v382 = vsel %vm42, %v379, %v381
  %v383 = vmul.f32 %v376, 0.5
  %v384 = vsel %vm42, %v376, %v383
  %v385 = vtanh.pop %v384
  %v386 = vmul.f32 %v385, 0.5
  %v387 = vadd.f32 %v386, 0.5
  %v388 = vsel %vm42, %v385, %v387
  %v389 = vmul.f32 %v382, 0.0
  %391 = vrot.lane.b32.xlu0 %v382, 64
  %v392 = vpop.permute.xlu0 %391
  %v394 = vmul.f32 %v382, %v392
  %396 = vrot.lane.b32.xlu0 %v394, 32
  %v397 = vpop.permute.xlu0 %396
  %v399 = vadd.f32 %v389, %v397
  %v400 = vmul.f32 %v388, 0.0
  %402 = vrot.lane.b32.xlu0 %v388, 64
  %v403 = vpop.permute.xlu0 %402
  %v405 = vmul.f32 %v388, %v403
  %407 = vrot.lane.b32.xlu0 %v405, 32
  %v408 = vpop.permute.xlu0 %407
  %v410 = vadd.f32 %v400, %v408
  %v411 = vtanh.pop %v399
  %413 = vrot.lane.b32.xlu0 %v411, 64
  %v414 = vpop.permute.xlu0 %413
  %v416 = vmul.f32 %v382, %v414
  %v417 = vtanh.pop %v410
  %419 = vrot.lane.b32.xlu0 %v417, 64
  %v420 = vpop.permute.xlu0 %419
  %v422 = vmul.f32 %v388, %v420
  %424 = vrot.lane.b32.xlu0 %v416, 32
  %v425 = vpop.permute.xlu0 %424
  %427 = vst.msk [vmem:[#allocation2] sm:$0xff] %vm230, %v425
  %429 = vrot.lane.b32.xlu0 %v422, 32
  %v430 = vpop.permute.xlu0 %429
  %432 = vst.msk [vmem:[#allocation3 + $0x38] sm:$0xff] %vm230, %v430
  %v433 = vld [vmem:[#allocation4 + $0x10] sm:$0xff]
  %v434 = vsel %vm230, %v425, 0
  %436 = vmatprep.subr.mxu0 0.0
  %437 = vmatpush1.msra.mxu0 %v221
  %438 = vmatprep.subr.mxu0 0.0
  %439 = vmatpush1.msra.mxu0 %v222
  %440 = vmatprep.subr.mxu0 0.0
  %441 = vmatpush1.msra.mxu0 %v223
  %442 = vmatprep.subr.mxu0 0.0
  %443 = vmatpush1.msra.mxu0 %v224
  %444 = vmatprep.subr.mxu0 0.0
  %445 = vmatpush1.msra.mxu0 0.0
  %446 = vmatprep.subr.mxu0 0.0
  %447 = vmatpush1.msra.mxu0 0.0
  %448 = vmatprep.subr.mxu0 0.0
  %449 = vmatpush1.msra.mxu0 0.0
  %450 = vmatprep.subr.mxu0 0.0
  %451 = vmatpush1.msra.mxu0 0.0
  %452 = vmatprep.subr.mxu0 0.0
  %453 = vmatpush1.msra.mxu0 0.0
  %454 = vmatprep.subr.mxu0 0.0
  %455 = vmatpush1.msra.mxu0 0.0
  %456 = vmatprep.subr.mxu0 0.0
  %457 = vmatpush1.msra.mxu0 0.0
  %458 = vmatprep.subr.mxu0 0.0
  %459 = vmatpush1.msra.mxu0 0.0
  %460 = vmatprep.subr.mxu0 0.0
  %461 = vmatpush1.msra.mxu0 0.0
  %462 = vmatprep.subr.mxu0 0.0
  %463 = vmatpush1.msra.mxu0 0.0
  %464 = vmatprep.subr.mxu0 0.0
  %465 = vmatpush1.msra.mxu0 0.0
  %466 = vmatprep.subr.mxu0 0.0
  %467 = vmatpush1.msra.mxu0 0.0
  %468 = vmatprep.subr.mxu0 0.0
  %469 = vmatpush1.msra.mxu0 0.0
  %470 = vmatprep.subr.mxu0 0.0
  %471 = vmatpush1.msra.mxu0 0.0
  %472 = vmatprep.subr.mxu0 0.0
  %473 = vmatpush1.msra.mxu0 0.0
  %474 = vmatprep.subr.mxu0 0.0
  %475 = vmatpush1.msra.mxu0 0.0
  %476 = vmatprep.subr.mxu0 0.0
  %477 = vmatpush1.msra.mxu0 0.0
  %478 = vmatprep.subr.mxu0 0.0
  %479 = vmatpush1.msra.mxu0 0.0
  %480 = vmatprep.subr.mxu0 0.0
  %481 = vmatpush1.msra.mxu0 0.0
  %482 = vmatprep.subr.mxu0 0.0
  %483 = vmatpush1.msra.mxu0 0.0
  %484 = vmatprep.subr.mxu0 0.0
  %485 = vmatpush1.msra.mxu0 0.0
  %486 = vmatprep.subr.mxu0 0.0
  %487 = vmatpush1.msra.mxu0 0.0
  %488 = vmatprep.subr.mxu0 0.0
  %489 = vmatpush1.msra.mxu0 0.0
  %490 = vmatprep.subr.mxu0 0.0
  %491 = vmatpush1.msra.mxu0 0.0
  %492 = vmatprep.subr.mxu0 0.0
  %493 = vmatpush1.msra.mxu0 0.0
  %494 = vmatprep.subr.mxu0 0.0
  %495 = vmatpush1.msra.mxu0 0.0
  %496 = vmatprep.subr.mxu0 0.0
  %497 = vmatpush1.msra.mxu0 0.0
  %498 = vmatprep.subr.mxu0 0.0
  %499 = vmatpush1.msra.mxu0 0.0
  %500 = vmatprep.mubr.f32.mxu0 0.0
  %501 = vmatmul.mubr.f32.gmra.mrb[0].mxu0 %v434
  %v502 = vpop.f32.mrb[0].mxu0
  %v503 = vadd.f32 0.0, %v502
  %v504 = vpop.f32.mrb[0].mxu0
  %505 = vdwg.mxu0
  %v506 = vadd.f32 %v433, %v503
  %v507 = vld [vmem:[#allocation4 + $0x68] sm:$0xff]
  %v508 = vsel %vm230, %v430, 0
  %510 = vmatprep.subr.mxu0 0.0
  %511 = vmatpush1.msra.mxu0 %v225
  %512 = vmatprep.subr.mxu0 0.0
  %513 = vmatpush1.msra.mxu0 %v226
  %514 = vmatprep.subr.mxu0 0.0
  %515 = vmatpush1.msra.mxu0 %v227
  %516 = vmatprep.subr.mxu0 0.0
  %517 = vmatpush1.msra.mxu0 %v228
  %518 = vmatprep.subr.mxu0 0.0
  %519 = vmatpush1.msra.mxu0 0.0
  %520 = vmatprep.subr.mxu0 0.0
  %521 = vmatpush1.msra.mxu0 0.0
  %522 = vmatprep.subr.mxu0 0.0
  %523 = vmatpush1.msra.mxu0 0.0
  %524 = vmatprep.subr.mxu0 0.0
  %525 = vmatpush1.msra.mxu0 0.0
  %526 = vmatprep.subr.mxu0 0.0
  %527 = vmatpush1.msra.mxu0 0.0
  %528 = vmatprep.subr.mxu0 0.0
  %529 = vmatpush1.msra.mxu0 0.0
  %530 = vmatprep.subr.mxu0 0.0
  %531 = vmatpush1.msra.mxu0 0.0
  %532 = vmatprep.subr.mxu0 0.0
  %533 = vmatpush1.msra.mxu0 0.0
  %534 = vmatprep.subr.mxu0 0.0
  %535 = vmatpush1.msra.mxu0 0.0
  %536 = vmatprep.subr.mxu0 0.0
  %537 = vmatpush1.msra.mxu0 0.0
  %538 = vmatprep.subr.mxu0 0.0
  %539 = vmatpush1.msra.mxu0 0.0
  %540 = vmatprep.subr.mxu0 0.0
  %541 = vmatpush1.msra.mxu0 0.0
  %542 = vmatprep.subr.mxu0 0.0
  %543 = vmatpush1.msra.mxu0 0.0
  %544 = vmatprep.subr.mxu0 0.0
  %545 = vmatpush1.msra.mxu0 0.0
  %546 = vmatprep.subr.mxu0 0.0
  %547 = vmatpush1.msra.mxu0 0.0
  %548 = vmatprep.subr.mxu0 0.0
  %549 = vmatpush1.msra.mxu0 0.0
  %550 = vmatprep.subr.mxu0 0.0
  %551 = vmatpush1.msra.mxu0 0.0
  %552 = vmatprep.subr.mxu0 0.0
  %553 = vmatpush1.msra.mxu0 0.0
  %554 = vmatprep.subr.mxu0 0.0
  %555 = vmatpush1.msra.mxu0 0.0
  %556 = vmatprep.subr.mxu0 0.0
  %557 = vmatpush1.msra.mxu0 0.0
  %558 = vmatprep.subr.mxu0 0.0
  %559 = vmatpush1.msra.mxu0 0.0
  %560 = vmatprep.subr.mxu0 0.0
  %561 = vmatpush1.msra.mxu0 0.0
  %562 = vmatprep.subr.mxu0 0.0
  %563 = vmatpush1.msra.mxu0 0.0
  %564 = vmatprep.subr.mxu0 0.0
  %565 = vmatpush1.msra.mxu0 0.0
  %566 = vmatprep.subr.mxu0 0.0
  %567 = vmatpush1.msra.mxu0 0.0
  %568 = vmatprep.subr.mxu0 0.0
  %569 = vmatpush1.msra.mxu0 0.0
  %570 = vmatprep.subr.mxu0 0.0
  %571 = vmatpush1.msra.mxu0 0.0
  %572 = vmatprep.subr.mxu0 0.0
  %573 = vmatpush1.msra.mxu0 0.0
  %574 = vmatprep.mubr.f32.mxu0 0.0
  %575 = vmatmul.mubr.f32.gmra.mrb[0].mxu0 %v508
  %v576 = vpop.f32.mrb[0].mxu0
  %v577 = vadd.f32 0.0, %v576
  %v578 = vpop.f32.mrb[0].mxu0
  %579 = vdwg.mxu0
  %v580 = vadd.f32 %v507, %v577
  %v581 = vmul.f32 %v506, 0.5
  %v582 = vsel %vm42, %v506, %v581
  %v583 = vtanh.pop %v582
  %v584 = vmul.f32 %v583, 0.5
  %v585 = vadd.f32 %v584, 0.5
  %v586 = vsel %vm42, %v583, %v585
  %v587 = vmul.f32 %v580, 0.5
  %v588 = vsel %vm42, %v580, %v587
  %v589 = vtanh.pop %v588
  %v590 = vmul.f32 %v589, 0.5
  %v591 = vadd.f32 %v590, 0.5
  %v592 = vsel %vm42, %v589, %v591
  %v593 = vmul.f32 %v586, %v399
  %595 = vrot.lane.b32.xlu0 %v586, 64
  %v596 = vpop.permute.xlu0 %595
  %v598 = vmul.f32 %v586, %v596
  %600 = vrot.lane.b32.xlu0 %v598, 32
  %v601 = vpop.permute.xlu0 %600
  %v603 = vadd.f32 %v593, %v601
  %v604 = vmul.f32 %v592, %v410
  %606 = vrot.lane.b32.xlu0 %v592, 64
  %v607 = vpop.permute.xlu0 %606
  %v609 = vmul.f32 %v592, %v607
  %611 = vrot.lane.b32.xlu0 %v609, 32
  %v612 = vpop.permute.xlu0 %611
  %v614 = vadd.f32 %v604, %v612
  %v615 = vtanh.pop %v603
  %617 = vrot.lane.b32.xlu0 %v615, 64
  %v618 = vpop.permute.xlu0 %617
  %v620 = vmul.f32 %v586, %v618
  %v621 = vtanh.pop %v614
  %623 = vrot.lane.b32.xlu0 %v621, 64
  %v624 = vpop.permute.xlu0 %623
  %v626 = vmul.f32 %v592, %v624
  %628 = vrot.lane.b32.xlu0 %v620, 32
  %v629 = vpop.permute.xlu0 %628
  %631 = vst.msk [vmem:[#allocation2 + $0x8] sm:$0xff] %vm230, %v629
  %633 = vrot.lane.b32.xlu0 %v626, 32
  %v634 = vpop.permute.xlu0 %633
  %636 = vst.msk [vmem:[#allocation3 + $0x30] sm:$0xff] %vm230, %v634
  %v637 = vld [vmem:[#allocation4 + $0x20] sm:$0xff]
  %v638 = vsel %vm230, %v629, 0
  %640 = vmatprep.subr.mxu0 0.0
  %641 = vmatpush1.msra.mxu0 %v221
  %642 = vmatprep.subr.mxu0 0.0
  %643 = vmatpush1.msra.mxu0 %v222
  %644 = vmatprep.subr.mxu0 0.0
  %645 = vmatpush1.msra.mxu0 %v223
  %646 = vmatprep.subr.mxu0 0.0
  %647 = vmatpush1.msra.mxu0 %v224
  %648 = vmatprep.subr.mxu0 0.0
  %649 = vmatpush1.msra.mxu0 0.0
  %650 = vmatprep.subr.mxu0 0.0
  %651 = vmatpush1.msra.mxu0 0.0
  %652 = vmatprep.subr.mxu0 0.0
  %653 = vmatpush1.msra.mxu0 0.0
  %654 = vmatprep.subr.mxu0 0.0
  %655 = vmatpush1.msra.mxu0 0.0
  %656 = vmatprep.subr.mxu0 0.0
  %657 = vmatpush1.msra.mxu0 0.0
  %658 = vmatprep.subr.mxu0 0.0
  %659 = vmatpush1.msra.mxu0 0.0
  %660 = vmatprep.subr.mxu0 0.0
  %661 = vmatpush1.msra.mxu0 0.0
  %662 = vmatprep.subr.mxu0 0.0
  %663 = vmatpush1.msra.mxu0 0.0
  %664 = vmatprep.subr.mxu0 0.0
  %665 = vmatpush1.msra.mxu0 0.0
  %666 = vmatprep.subr.mxu0 0.0
  %667 = vmatpush1.msra.mxu0 0.0
  %668 = vmatprep.subr.mxu0 0.0
  %669 = vmatpush1.msra.mxu0 0.0
  %670 = vmatprep.subr.mxu0 0.0
  %671 = vmatpush1.msra.mxu0 0.0
  %672 = vmatprep.subr.mxu0 0.0
  %673 = vmatpush1.msra.mxu0 0.0
  %674 = vmatprep.subr.mxu0 0.0
  %675 = vmatpush1.msra.mxu0 0.0
  %676 = vmatprep.subr.mxu0 0.0
  %677 = vmatpush1.msra.mxu0 0.0
  %678 = vmatprep.subr.mxu0 0.0
  %679 = vmatpush1.msra.mxu0 0.0
  %680 = vmatprep.subr.mxu0 0.0
  %681 = vmatpush1.msra.mxu0 0.0
  %682 = vmatprep.subr.mxu0 0.0
  %683 = vmatpush1.msra.mxu0 0.0
  %684 = vmatprep.subr.mxu0 0.0
  %685 = vmatpush1.msra.mxu0 0.0
  %686 = vmatprep.subr.mxu0 0.0
  %687 = vmatpush1.msra.mxu0 0.0
  %688 = vmatprep.subr.mxu0 0.0
  %689 = vmatpush1.msra.mxu0 0.0
  %690 = vmatprep.subr.mxu0 0.0
  %691 = vmatpush1.msra.mxu0 0.0
  %692 = vmatprep.subr.mxu0 0.0
  %693 = vmatpush1.msra.mxu0 0.0
  %694 = vmatprep.subr.mxu0 0.0
  %695 = vmatpush1.msra.mxu0 0.0
  %696 = vmatprep.subr.mxu0 0.0
  %697 = vmatpush1.msra.mxu0 0.0
  %698 = vmatprep.subr.mxu0 0.0
  %699 = vmatpush1.msra.mxu0 0.0
  %700 = vmatprep.subr.mxu0 0.0
  %701 = vmatpush1.msra.mxu0 0.0
  %702 = vmatprep.subr.mxu0 0.0
  %703 = vmatpush1.msra.mxu0 0.0
  %704 = vmatprep.mubr.f32.mxu0 0.0
  %705 = vmatmul.mubr.f32.gmra.mrb[0].mxu0 %v638
  %v706 = vpop.f32.mrb[0].mxu0
  %v707 = vadd.f32 0.0, %v706
  %v708 = vpop.f32.mrb[0].mxu0
  %709 = vdwg.mxu0
  %v710 = vadd.f32 %v637, %v707
  %v711 = vld [vmem:[#allocation4 + $0x58] sm:$0xff]
  %v712 = vsel %vm230, %v634, 0
  %714 = vmatprep.subr.mxu0 0.0
  %715 = vmatpush1.msra.mxu0 %v225
  %716 = vmatprep.subr.mxu0 0.0
  %717 = vmatpush1.msra.mxu0 %v226
  %718 = vmatprep.subr.mxu0 0.0
  %719 = vmatpush1.msra.mxu0 %v227
  %720 = vmatprep.subr.mxu0 0.0
  %721 = vmatpush1.msra.mxu0 %v228
  %722 = vmatprep.subr.mxu0 0.0
  %723 = vmatpush1.msra.mxu0 0.0
  %724 = vmatprep.subr.mxu0 0.0
  %725 = vmatpush1.msra.mxu0 0.0
  %726 = vmatprep.subr.mxu0 0.0
  %727 = vmatpush1.msra.mxu0 0.0
  %728 = vmatprep.subr.mxu0 0.0
  %729 = vmatpush1.msra.mxu0 0.0
  %730 = vmatprep.subr.mxu0 0.0
  %731 = vmatpush1.msra.mxu0 0.0
  %732 = vmatprep.subr.mxu0 0.0
  %733 = vmatpush1.msra.mxu0 0.0
  %734 = vmatprep.subr.mxu0 0.0
  %735 = vmatpush1.msra.mxu0 0.0
  %736 = vmatprep.subr.mxu0 0.0
  %737 = vmatpush1.msra.mxu0 0.0
  %738 = vmatprep.subr.mxu0 0.0
  %739 = vmatpush1.msra.mxu0 0.0
  %740 = vmatprep.subr.mxu0 0.0
  %741 = vmatpush1.msra.mxu0 0.0
  %742 = vmatprep.subr.mxu0 0.0
  %743 = vmatpush1.msra.mxu0 0.0
  %744 = vmatprep.subr.mxu0 0.0
  %745 = vmatpush1.msra.mxu0 0.0
  %746 = vmatprep.subr.mxu0 0.0
  %747 = vmatpush1.msra.mxu0 0.0
  %748 = vmatprep.subr.mxu0 0.0
  %749 = vmatpush1.msra.mxu0 0.0
  %750 = vmatprep.subr.mxu0 0.0
  %751 = vmatpush1.msra.mxu0 0.0
  %752 = vmatprep.subr.mxu0 0.0
  %753 = vmatpush1.msra.mxu0 0.0
  %754 = vmatprep.subr.mxu0 0.0
  %755 = vmatpush1.msra.mxu0 0.0
  %756 = vmatprep.subr.mxu0 0.0
  %757 = vmatpush1.msra.mxu0 0.0
  %758 = vmatprep.subr.mxu0 0.0
  %759 = vmatpush1.msra.mxu0 0.0
  %760 = vmatprep.subr.mxu0 0.0
  %761 = vmatpush1.msra.mxu0 0.0
  %762 = vmatprep.subr.mxu0 0.0
  %763 = vmatpush1.msra.mxu0 0.0
  %764 = vmatprep.subr.mxu0 0.0
  %765 = vmatpush1.msra.mxu0 0.0
  %766 = vmatprep.subr.mxu0 0.0
  %767 = vmatpush1.msra.mxu0 0.0
  %768 = vmatprep.subr.mxu0 0.0
  %769 = vmatpush1.msra.mxu0 0.0
  %770 = vmatprep.subr.mxu0 0.0
  %771 = vmatpush1.msra.mxu0 0.0
  %772 = vmatprep.subr.mxu0 0.0
  %773 = vmatpush1.msra.mxu0 0.0
  %774 = vmatprep.subr.mxu0 0.0
  %775 = vmatpush1.msra.mxu0 0.0
  %776 = vmatprep.subr.mxu0 0.0
  %777 = vmatpush1.msra.mxu0 0.0
  %778 = vmatprep.mubr.f32.mxu0 0.0
  %779 = vmatmul.mubr.f32.gmra.mrb[0].mxu0 %v712
  %v780 = vpop.f32.mrb[0].mxu0
  %v781 = vadd.f32 0.0, %v780
  %v782 = vpop.f32.mrb[0].mxu0
  %783 = vdwg.mxu0
  %v784 = vadd.f32 %v711, %v781
  %v785 = vmul.f32 %v710, 0.5
  %v786 = vsel %vm42, %v710, %v785
  %v787 = vtanh.pop %v786
  %v788 = vmul.f32 %v787, 0.5
  %v789 = vadd.f32 %v788, 0.5
  %v790 = vsel %vm42, %v787, %v789
  %v791 = vmul.f32 %v784, 0.5
  %v792 = vsel %vm42, %v784, %v791
  %v793 = vtanh.pop %v792
  %v794 = vmul.f32 %v793, 0.5
  %v795 = vadd.f32 %v794, 0.5
  %v796 = vsel %vm42, %v793, %v795
  %v797 = vmul.f32 %v790, %v603
  %799 = vrot.lane.b32.xlu0 %v790, 64
  %v800 = vpop.permute.xlu0 %799
  %v802 = vmul.f32 %v790, %v800
  %804 = vrot.lane.b32.xlu0 %v802, 32
  %v805 = vpop.permute.xlu0 %804
  %v807 = vadd.f32 %v797, %v805
  %v808 = vmul.f32 %v796, %v614
  %810 = vrot.lane.b32.xlu0 %v796, 64
  %v811 = vpop.permute.xlu0 %810
  %v813 = vmul.f32 %v796, %v811
  %815 = vrot.lane.b32.xlu0 %v813, 32
  %v816 = vpop.permute.xlu0 %815
  %v818 = vadd.f32 %v808, %v816
  %v819 = vtanh.pop %v807
  %821 = vrot.lane.b32.xlu0 %v819, 64
  %v822 = vpop.permute.xlu0 %821
  %v824 = vmul.f32 %v790, %v822
  %v825 = vtanh.pop %v818
  %827 = vrot.lane.b32.xlu0 %v825, 64
  %v828 = vpop.permute.xlu0 %827
  %v830 = vmul.f32 %v796, %v828
  %832 = vrot.lane.b32.xlu0 %v824, 32
  %v833 = vpop.permute.xlu0 %832
  %835 = vst.msk [vmem:[#allocation2 + $0x10] sm:$0xff] %vm230, %v833
  %837 = vrot.lane.b32.xlu0 %v830, 32
  %v838 = vpop.permute.xlu0 %837
  %840 = vst.msk [vmem:[#allocation3 + $0x28] sm:$0xff] %vm230, %v838
  %v841 = vld [vmem:[#allocation4 + $0x30] sm:$0xff]
  %v842 = vsel %vm230, %v833, 0
  %844 = vmatprep.subr.mxu0 0.0
  %845 = vmatpush1.msra.mxu0 %v221
  %846 = vmatprep.subr.mxu0 0.0
  %847 = vmatpush1.msra.mxu0 %v222
  %848 = vmatprep.subr.mxu0 0.0
  %849 = vmatpush1.msra.mxu0 %v223
  %850 = vmatprep.subr.mxu0 0.0
  %851 = vmatpush1.msra.mxu0 %v224
  %852 = vmatprep.subr.mxu0 0.0
  %853 = vmatpush1.msra.mxu0 0.0
  %854 = vmatprep.subr.mxu0 0.0
  %855 = vmatpush1.msra.mxu0 0.0
  %856 = vmatprep.subr.mxu0 0.0
  %857 = vmatpush1.msra.mxu0 0.0
  %858 = vmatprep.subr.mxu0 0.0
  %859 = vmatpush1.msra.mxu0 0.0
  %860 = vmatprep.subr.mxu0 0.0
  %861 = vmatpush1.msra.mxu0 0.0
  %862 = vmatprep.subr.mxu0 0.0
  %863 = vmatpush1.msra.mxu0 0.0
  %864 = vmatprep.subr.mxu0 0.0
  %865 = vmatpush1.msra.mxu0 0.0
  %866 = vmatprep.subr.mxu0 0.0
  %867 = vmatpush1.msra.mxu0 0.0
  %868 = vmatprep.subr.mxu0 0.0
  %869 = vmatpush1.msra.mxu0 0.0
  %870 = vmatprep.subr.mxu0 0.0
  %871 = vmatpush1.msra.mxu0 0.0
  %872 = vmatprep.subr.mxu0 0.0
  %873 = vmatpush1.msra.mxu0 0.0
  %874 = vmatprep.subr.mxu0 0.0
  %875 = vmatpush1.msra.mxu0 0.0
  %876 = vmatprep.subr.mxu0 0.0
  %877 = vmatpush1.msra.mxu0 0.0
  %878 = vmatprep.subr.mxu0 0.0
  %879 = vmatpush1.msra.mxu0 0.0
  %880 = vmatprep.subr.mxu0 0.0
  %881 = vmatpush1.msra.mxu0 0.0
  %882 = vmatprep.subr.mxu0 0.0
  %883 = vmatpush1.msra.mxu0 0.0
  %884 = vmatprep.subr.mxu0 0.0
  %885 = vmatpush1.msra.mxu0 0.0
  %886 = vmatprep.subr.mxu0 0.0
  %887 = vmatpush1.msra.mxu0 0.0
  %888 = vmatprep.subr.mxu0 0.0
  %889 = vmatpush1.msra.mxu0 0.0
  %890 = vmatprep.subr.mxu0 0.0
  %891 = vmatpush1.msra.mxu0 0.0
  %892 = vmatprep.subr.mxu0 0.0
  %893 = vmatpush1.msra.mxu0 0.0
  %894 = vmatprep.subr.mxu0 0.0
  %895 = vmatpush1.msra.mxu0 0.0
  %896 = vmatprep.subr.mxu0 0.0
  %897 = vmatpush1.msra.mxu0 0.0
  %898 = vmatprep.subr.mxu0 0.0
  %899 = vmatpush1.msra.mxu0 0.0
  %900 = vmatprep.subr.mxu0 0.0
  %901 = vmatpush1.msra.mxu0 0.0
  %902 = vmatprep.subr.mxu0 0.0
  %903 = vmatpush1.msra.mxu0 0.0
  %904 = vmatprep.subr.mxu0 0.0
  %905 = vmatpush1.msra.mxu0 0.0
  %906 = vmatprep.subr.mxu0 0.0
  %907 = vmatpush1.msra.mxu0 0.0
  %908 = vmatprep.mubr.f32.mxu0 0.0
  %909 = vmatmul.mubr.f32.gmra.mrb[0].mxu0 %v842
  %v910 = vpop.f32.mrb[0].mxu0
  %v911 = vadd.f32 0.0, %v910
  %v912 = vpop.f32.mrb[0].mxu0
  %913 = vdwg.mxu0
  %v914 = vadd.f32 %v841, %v911
  %v915 = vld [vmem:[#allocation4 + $0x48] sm:$0xff]
  %v916 = vsel %vm230, %v838, 0
  %918 = vmatprep.subr.mxu0 0.0
  %919 = vmatpush1.msra.mxu0 %v225
  %920 = vmatprep.subr.mxu0 0.0
  %921 = vmatpush1.msra.mxu0 %v226
  %922 = vmatprep.subr.mxu0 0.0
  %923 = vmatpush1.msra.mxu0 %v227
  %924 = vmatprep.subr.mxu0 0.0
  %925 = vmatpush1.msra.mxu0 %v228
  %926 = vmatprep.subr.mxu0 0.0
  %927 = vmatpush1.msra.mxu0 0.0
  %928 = vmatprep.subr.mxu0 0.0
  %929 = vmatpush1.msra.mxu0 0.0
  %930 = vmatprep.subr.mxu0 0.0
  %931 = vmatpush1.msra.mxu0 0.0
  %932 = vmatprep.subr.mxu0 0.0
  %933 = vmatpush1.msra.mxu0 0.0
  %934 = vmatprep.subr.mxu0 0.0
  %935 = vmatpush1.msra.mxu0 0.0
  %936 = vmatprep.subr.mxu0 0.0
  %937 = vmatpush1.msra.mxu0 0.0
  %938 = vmatprep.subr.mxu0 0.0
  %939 = vmatpush1.msra.mxu0 0.0
  %940 = vmatprep.subr.mxu0 0.0
  %941 = vmatpush1.msra.mxu0 0.0
  %942 = vmatprep.subr.mxu0 0.0
  %943 = vmatpush1.msra.mxu0 0.0
  %944 = vmatprep.subr.mxu0 0.0
  %945 = vmatpush1.msra.mxu0 0.0
  %946 = vmatprep.subr.mxu0 0.0
  %947 = vmatpush1.msra.mxu0 0.0
  %948 = vmatprep.subr.mxu0 0.0
  %949 = vmatpush1.msra.mxu0 0.0
  %950 = vmatprep.subr.mxu0 0.0
  %951 = vmatpush1.msra.mxu0 0.0
  %952 = vmatprep.subr.mxu0 0.0
  %953 = vmatpush1.msra.mxu0 0.0
  %954 = vmatprep.subr.mxu0 0.0
  %955 = vmatpush1.msra.mxu0 0.0
  %956 = vmatprep.subr.mxu0 0.0
  %957 = vmatpush1.msra.mxu0 0.0
  %958 = vmatprep.subr.mxu0 0.0
  %959 = vmatpush1.msra.mxu0 0.0
  %960 = vmatprep.subr.mxu0 0.0
  %961 = vmatpush1.msra.mxu0 0.0
  %962 = vmatprep.subr.mxu0 0.0
  %963 = vmatpush1.msra.mxu0 0.0
  %964 = vmatprep.subr.mxu0 0.0
  %965 = vmatpush1.msra.mxu0 0.0
  %966 = vmatprep.subr.mxu0 0.0
  %967 = vmatpush1.msra.mxu0 0.0
  %968 = vmatprep.subr.mxu0 0.0
  %969 = vmatpush1.msra.mxu0 0.0
  %970 = vmatprep.subr.mxu0 0.0
  %971 = vmatpush1.msra.mxu0 0.0
  %972 = vmatprep.subr.mxu0 0.0
  %973 = vmatpush1.msra.mxu0 0.0
  %974 = vmatprep.subr.mxu0 0.0
  %975 = vmatpush1.msra.mxu0 0.0
  %976 = vmatprep.subr.mxu0 0.0
  %977 = vmatpush1.msra.mxu0 0.0
  %978 = vmatprep.subr.mxu0 0.0
  %979 = vmatpush1.msra.mxu0 0.0
  %980 = vmatprep.subr.mxu0 0.0
  %981 = vmatpush1.msra.mxu0 0.0
  %982 = vmatprep.mubr.f32.mxu0 0.0
  %983 = vmatmul.mubr.f32.gmra.mrb[0].mxu0 %v916
  %v984 = vpop.f32.mrb[0].mxu0
  %v985 = vadd.f32 0.0, %v984
  %v986 = vpop.f32.mrb[0].mxu0
  %987 = vdwg.mxu0
  %v988 = vadd.f32 %v915, %v985
  %v989 = vmul.f32 %v914, 0.5
  %v990 = vsel %vm42, %v914, %v989
  %v991 = vtanh.pop %v990
  %v992 = vmul.f32 %v991, 0.5
  %v993 = vadd.f32 %v992, 0.5
  %v994 = vsel %vm42, %v991, %v993
  %v995 = vmul.f32 %v988, 0.5
  %v996 = vsel %vm42, %v988, %v995
  %v997 = vtanh.pop %v996
  %v998 = vmul.f32 %v997, 0.5
  %v999 = vadd.f32 %v998, 0.5
  %v1000 = vsel %vm42, %v997, %v999
  %v1001 = vmul.f32 %v994, %v807
  %1003 = vrot.lane.b32.xlu0 %v994, 64
  %v1004 = vpop.permute.xlu0 %1003
  %v1006 = vmul.f32 %v994, %v1004
  %1008 = vrot.lane.b32.xlu0 %v1006, 32
  %v1009 = vpop.permute.xlu0 %1008
  %v1011 = vadd.f32 %v1001, %v1009
  %v1012 = vmul.f32 %v1000, %v818
  %1014 = vrot.lane.b32.xlu0 %v1000, 64
  %v1015 = vpop.permute.xlu0 %1014
  %v1017 = vmul.f32 %v1000, %v1015
  %1019 = vrot.lane.b32.xlu0 %v1017, 32
  %v1020 = vpop.permute.xlu0 %1019
  %v1022 = vadd.f32 %v1012, %v1020
  %v1023 = vtanh.pop %v1011
  %1025 = vrot.lane.b32.xlu0 %v1023, 64
  %v1026 = vpop.permute.xlu0 %1025
  %v1028 = vmul.f32 %v994, %v1026
  %v1029 = vtanh.pop %v1022
  %1031 = vrot.lane.b32.xlu0 %v1029, 64
  %v1032 = vpop.permute.xlu0 %1031
  %v1034 = vmul.f32 %v1000, %v1032
  %1036 = vrot.lane.b32.xlu0 %v1028, 32
  %v1037 = vpop.permute.xlu0 %1036
  %1039 = vst.msk [vmem:[#allocation2 + $0x18] sm:$0xff] %vm230, %v1037
  %1041 = vrot.lane.b32.xlu0 %v1034, 32
  %v1042 = vpop.permute.xlu0 %1041
  %1044 = vst.msk [vmem:[#allocation3 + $0x20] sm:$0xff] %vm230, %v1042
  %v1045 = vld [vmem:[#allocation4 + $0x40] sm:$0xff]
  %v1046 = vsel %vm230, %v1037, 0
  %1048 = vmatprep.subr.mxu0 0.0
  %1049 = vmatpush1.msra.mxu0 %v221
  %1050 = vmatprep.subr.mxu0 0.0
  %1051 = vmatpush1.msra.mxu0 %v222
  %1052 = vmatprep.subr.mxu0 0.0
  %1053 = vmatpush1.msra.mxu0 %v223
  %1054 = vmatprep.subr.mxu0 0.0
  %1055 = vmatpush1.msra.mxu0 %v224
  %1056 = vmatprep.subr.mxu0 0.0
  %1057 = vmatpush1.msra.mxu0 0.0
  %1058 = vmatprep.subr.mxu0 0.0
  %1059 = vmatpush1.msra.mxu0 0.0
  %1060 = vmatprep.subr.mxu0 0.0
  %1061 = vmatpush1.msra.mxu0 0.0
  %1062 = vmatprep.subr.mxu0 0.0
  %1063 = vmatpush1.msra.mxu0 0.0
  %1064 = vmatprep.subr.mxu0 0.0
  %1065 = vmatpush1.msra.mxu0 0.0
  %1066 = vmatprep.subr.mxu0 0.0
  %1067 = vmatpush1.msra.mxu0 0.0
  %1068 = vmatprep.subr.mxu0 0.0
  %1069 = vmatpush1.msra.mxu0 0.0
  %1070 = vmatprep.subr.mxu0 0.0
  %1071 = vmatpush1.msra.mxu0 0.0
  %1072 = vmatprep.subr.mxu0 0.0
  %1073 = vmatpush1.msra.mxu0 0.0
  %1074 = vmatprep.subr.mxu0 0.0
  %1075 = vmatpush1.msra.mxu0 0.0
  %1076 = vmatprep.subr.mxu0 0.0
  %1077 = vmatpush1.msra.mxu0 0.0
  %1078 = vmatprep.subr.mxu0 0.0
  %1079 = vmatpush1.msra.mxu0 0.0
  %1080 = vmatprep.subr.mxu0 0.0
  %1081 = vmatpush1.msra.mxu0 0.0
  %1082 = vmatprep.subr.mxu0 0.0
  %1083 = vmatpush1.msra.mxu0 0.0
  %1084 = vmatprep.subr.mxu0 0.0
  %1085 = vmatpush1.msra.mxu0 0.0
  %1086 = vmatprep.subr.mxu0 0.0
  %1087 = vmatpush1.msra.mxu0 0.0
  %1088 = vmatprep.subr.mxu0 0.0
  %1089 = vmatpush1.msra.mxu0 0.0
  %1090 = vmatprep.subr.mxu0 0.0
  %1091 = vmatpush1.msra.mxu0 0.0
  %1092 = vmatprep.subr.mxu0 0.0
  %1093 = vmatpush1.msra.mxu0 0.0
  %1094 = vmatprep.subr.mxu0 0.0
  %1095 = vmatpush1.msra.mxu0 0.0
  %1096 = vmatprep.subr.mxu0 0.0
  %1097 = vmatpush1.msra.mxu0 0.0
  %1098 = vmatprep.subr.mxu0 0.0
  %1099 = vmatpush1.msra.mxu0 0.0
  %1100 = vmatprep.subr.mxu0 0.0
  %1101 = vmatpush1.msra.mxu0 0.0
  %1102 = vmatprep.subr.mxu0 0.0
  %1103 = vmatpush1.msra.mxu0 0.0
  %1104 = vmatprep.subr.mxu0 0.0
  %1105 = vmatpush1.msra.mxu0 0.0
  %1106 = vmatprep.subr.mxu0 0.0
  %1107 = vmatpush1.msra.mxu0 0.0
  %1108 = vmatprep.subr.mxu0 0.0
  %1109 = vmatpush1.msra.mxu0 0.0
  %1110 = vmatprep.subr.mxu0 0.0
  %1111 = vmatpush1.msra.mxu0 0.0
  %1112 = vmatprep.mubr.f32.mxu0 0.0
  %1113 = vmatmul.mubr.f32.gmra.mrb[0].mxu0 %v1046
  %v1114 = vpop.f32.mrb[0].mxu0
  %v1115 = vadd.f32 0.0, %v1114
  %v1116 = vpop.f32.mrb[0].mxu0
  %1117 = vdwg.mxu0
  %v1118 = vadd.f32 %v1045, %v1115
  %v1119 = vld [vmem:[#allocation4 + $0x38] sm:$0xff]
  %v1120 = vsel %vm230, %v1042, 0
  %1122 = vmatprep.subr.mxu0 0.0
  %1123 = vmatpush1.msra.mxu0 %v225
  %1124 = vmatprep.subr.mxu0 0.0
  %1125 = vmatpush1.msra.mxu0 %v226
  %1126 = vmatprep.subr.mxu0 0.0
  %1127 = vmatpush1.msra.mxu0 %v227
  %1128 = vmatprep.subr.mxu0 0.0
  %1129 = vmatpush1.msra.mxu0 %v228
  %1130 = vmatprep.subr.mxu0 0.0
  %1131 = vmatpush1.msra.mxu0 0.0
  %1132 = vmatprep.subr.mxu0 0.0
  %1133 = vmatpush1.msra.mxu0 0.0
  %1134 = vmatprep.subr.mxu0 0.0
  %1135 = vmatpush1.msra.mxu0 0.0
  %1136 = vmatprep.subr.mxu0 0.0
  %1137 = vmatpush1.msra.mxu0 0.0
  %1138 = vmatprep.subr.mxu0 0.0
  %1139 = vmatpush1.msra.mxu0 0.0
  %1140 = vmatprep.subr.mxu0 0.0
  %1141 = vmatpush1.msra.mxu0 0.0
  %1142 = vmatprep.subr.mxu0 0.0
  %1143 = vmatpush1.msra.mxu0 0.0
  %1144 = vmatprep.subr.mxu0 0.0
  %1145 = vmatpush1.msra.mxu0 0.0
  %1146 = vmatprep.subr.mxu0 0.0
  %1147 = vmatpush1.msra.mxu0 0.0
  %1148 = vmatprep.subr.mxu0 0.0
  %1149 = vmatpush1.msra.mxu0 0.0
  %1150 = vmatprep.subr.mxu0 0.0
  %1151 = vmatpush1.msra.mxu0 0.0
  %1152 = vmatprep.subr.mxu0 0.0
  %1153 = vmatpush1.msra.mxu0 0.0
  %1154 = vmatprep.subr.mxu0 0.0
  %1155 = vmatpush1.msra.mxu0 0.0
  %1156 = vmatprep.subr.mxu0 0.0
  %1157 = vmatpush1.msra.mxu0 0.0
  %1158 = vmatprep.subr.mxu0 0.0
  %1159 = vmatpush1.msra.mxu0 0.0
  %1160 = vmatprep.subr.mxu0 0.0
  %1161 = vmatpush1.msra.mxu0 0.0
  %1162 = vmatprep.subr.mxu0 0.0
  %1163 = vmatpush1.msra.mxu0 0.0
  %1164 = vmatprep.subr.mxu0 0.0
  %1165 = vmatpush1.msra.mxu0 0.0
  %1166 = vmatprep.subr.mxu0 0.0
  %1167 = vmatpush1.msra.mxu0 0.0
  %1168 = vmatprep.subr.mxu0 0.0
  %1169 = vmatpush1.msra.mxu0 0.0
  %1170 = vmatprep.subr.mxu0 0.0
  %1171 = vmatpush1.msra.mxu0 0.0
  %1172 = vmatprep.subr.mxu0 0.0
  %1173 = vmatpush1.msra.mxu0 0.0
  %1174 = vmatprep.subr.mxu0 0.0
  %1175 = vmatpush1.msra.mxu0 0.0
  %1176 = vmatprep.subr.mxu0 0.0
  %1177 = vmatpush1.msra.mxu0 0.0
  %1178 = vmatprep.subr.mxu0 0.0
  %1179 = vmatpush1.msra.mxu0 0.0
  %1180 = vmatprep.subr.mxu0 0.0
  %1181 = vmatpush1.msra.mxu0 0.0
  %1182 = vmatprep.subr.mxu0 0.0
  %1183 = vmatpush1.msra.mxu0 0.0
  %1184 = vmatprep.subr.mxu0 0.0
  %1185 = vmatpush1.msra.mxu0 0.0
  %1186 = vmatprep.mubr.f32.mxu0 0.0
  %1187 = vmatmul.mubr.f32.gmra.mrb[0].mxu0 %v1120
  %v1188 = vpop.f32.mrb[0].mxu0
  %v1189 = vadd.f32 0.0, %v1188
  %v1190 = vpop.f32.mrb[0].mxu0
  %1191 = vdwg.mxu0
  %v1192 = vadd.f32 %v1119, %v1189
  %v1193 = vmul.f32 %v1118, 0.5
  %v1194 = vsel %vm42, %v1118, %v1193
  %v1195 = vtanh.pop %v1194
  %v1196 = vmul.f32 %v1195, 0.5
  %v1197 = vadd.f32 %v1196, 0.5
  %v1198 = vsel %vm42, %v1195, %v1197
  %v1199 = vmul.f32 %v1192, 0.5
  %v1200 = vsel %vm42, %v1192, %v1199
  %v1201 = vtanh.pop %v1200
  %v1202 = vmul.f32 %v1201, 0.5
  %v1203 = vadd.f32 %v1202, 0.5
  %v1204 = vsel %vm42, %v1201, %v1203
  %v1205 = vmul.f32 %v1198, %v1011
  %1207 = vrot.lane.b32.xlu0 %v1198, 64
  %v1208 = vpop.permute.xlu0 %1207
  %v1210 = vmul.f32 %v1198, %v1208
  %1212 = vrot.lane.b32.xlu0 %v1210, 32
  %v1213 = vpop.permute.xlu0 %1212
  %v1215 = vadd.f32 %v1205, %v1213
  %v1216 = vmul.f32 %v1204, %v1022
  %1218 = vrot.lane.b32.xlu0 %v1204, 64
  %v1219 = vpop.permute.xlu0 %1218
  %v1221 = vmul.f32 %v1204, %v1219
  %1223 = vrot.lane.b32.xlu0 %v1221, 32
  %v1224 = vpop.permute.xlu0 %1223
  %v1226 = vadd.f32 %v1216, %v1224
  %v1227 = vtanh.pop %v1215
  %1229 = vrot.lane.b32.xlu0 %v1227, 64
  %v1230 = vpop.permute.xlu0 %1229
  %v1232 = vmul.f32 %v1198, %v1230
  %v1233 = vtanh.pop %v1226
  %1235 = vrot.lane.b32.xlu0 %v1233, 64
  %v1236 = vpop.permute.xlu0 %1235
  %v1238 = vmul.f32 %v1204, %v1236
  %1240 = vrot.lane.b32.xlu0 %v1232, 32
  %v1241 = vpop.permute.xlu0 %1240
  %1243 = vst.msk [vmem:[#allocation2 + $0x20] sm:$0xff] %vm230, %v1241
  %1245 = vrot.lane.b32.xlu0 %v1238, 32
  %v1246 = vpop.permute.xlu0 %1245
  %1248 = vst.msk [vmem:[#allocation3 + $0x18] sm:$0xff] %vm230, %v1246
  %v1249 = vld [vmem:[#allocation4 + $0x50] sm:$0xff]
  %v1250 = vsel %vm230, %v1241, 0
  %1252 = vmatprep.subr.mxu0 0.0
  %1253 = vmatpush1.msra.mxu0 %v221
  %1254 = vmatprep.subr.mxu0 0.0
  %1255 = vmatpush1.msra.mxu0 %v222
  %1256 = vmatprep.subr.mxu0 0.0
  %1257 = vmatpush1.msra.mxu0 %v223
  %1258 = vmatprep.subr.mxu0 0.0
  %1259 = vmatpush1.msra.mxu0 %v224
  %1260 = vmatprep.subr.mxu0 0.0
  %1261 = vmatpush1.msra.mxu0 0.0
  %1262 = vmatprep.subr.mxu0 0.0
  %1263 = vmatpush1.msra.mxu0 0.0
  %1264 = vmatprep.subr.mxu0 0.0
  %1265 = vmatpush1.msra.mxu0 0.0
  %1266 = vmatprep.subr.mxu0 0.0
  %1267 = vmatpush1.msra.mxu0 0.0
  %1268 = vmatprep.subr.mxu0 0.0
  %1269 = vmatpush1.msra.mxu0 0.0
  %1270 = vmatprep.subr.mxu0 0.0
  %1271 = vmatpush1.msra.mxu0 0.0
  %1272 = vmatprep.subr.mxu0 0.0
  %1273 = vmatpush1.msra.mxu0 0.0
  %1274 = vmatprep.subr.mxu0 0.0
  %1275 = vmatpush1.msra.mxu0 0.0
  %1276 = vmatprep.subr.mxu0 0.0
  %1277 = vmatpush1.msra.mxu0 0.0
  %1278 = vmatprep.subr.mxu0 0.0
  %1279 = vmatpush1.msra.mxu0 0.0
  %1280 = vmatprep.subr.mxu0 0.0
  %1281 = vmatpush1.msra.mxu0 0.0
  %1282 = vmatprep.subr.mxu0 0.0
  %1283 = vmatpush1.msra.mxu0 0.0
  %1284 = vmatprep.subr.mxu0 0.0
  %1285 = vmatpush1.msra.mxu0 0.0
  %1286 = vmatprep.subr.mxu0 0.0
  %1287 = vmatpush1.msra.mxu0 0.0
  %1288 = vmatprep.subr.mxu0 0.0
  %1289 = vmatpush1.msra.mxu0 0.0
  %1290 = vmatprep.subr.mxu0 0.0
  %1291 = vmatpush1.msra.mxu0 0.0
  %1292 = vmatprep.subr.mxu0 0.0
  %1293 = vmatpush1.msra.mxu0 0.0
  %1294 = vmatprep.subr.mxu0 0.0
  %1295 = vmatpush1.msra.mxu0 0.0
  %1296 = vmatprep.subr.mxu0 0.0
  %1297 = vmatpush1.msra.mxu0 0.0
  %1298 = vmatprep.subr.mxu0 0.0
  %1299 = vmatpush1.msra.mxu0 0.0
  %1300 = vmatprep.subr.mxu0 0.0
  %1301 = vmatpush1.msra.mxu0 0.0
  %1302 = vmatprep.subr.mxu0 0.0
  %1303 = vmatpush1.msra.mxu0 0.0
  %1304 = vmatprep.subr.mxu0 0.0
  %1305 = vmatpush1.msra.mxu0 0.0
  %1306 = vmatprep.subr.mxu0 0.0
  %1307 = vmatpush1.msra.mxu0 0.0
  %1308 = vmatprep.subr.mxu0 0.0
  %1309 = vmatpush1.msra.mxu0 0.0
  %1310 = vmatprep.subr.mxu0 0.0
  %1311 = vmatpush1.msra.mxu0 0.0
  %1312 = vmatprep.subr.mxu0 0.0
  %1313 = vmatpush1.msra.mxu0 0.0
  %1314 = vmatprep.subr.mxu0 0.0
  %1315 = vmatpush1.msra.mxu0 0.0
  %1316 = vmatprep.mubr.f32.mxu0 0.0
  %1317 = vmatmul.mubr.f32.gmra.mrb[0].mxu0 %v1250
  %v1318 = vpop.f32.mrb[0].mxu0
  %v1319 = vadd.f32 0.0, %v1318
  %v1320 = vpop.f32.mrb[0].mxu0
  %1321 = vdwg.mxu0
  %v1322 = vadd.f32 %v1249, %v1319
  %v1323 = vld [vmem:[#allocation4 + $0x28] sm:$0xff]
  %v1324 = vsel %vm230, %v1246, 0
  %1326 = vmatprep.subr.mxu0 0.0
  %1327 = vmatpush1.msra.mxu0 %v225
  %1328 = vmatprep.subr.mxu0 0.0
  %1329 = vmatpush1.msra.mxu0 %v226
  %1330 = vmatprep.subr.mxu0 0.0
  %1331 = vmatpush1.msra.mxu0 %v227
  %1332 = vmatprep.subr.mxu0 0.0
  %1333 = vmatpush1.msra.mxu0 %v228
  %1334 = vmatprep.subr.mxu0 0.0
  %1335 = vmatpush1.msra.mxu0 0.0
  %1336 = vmatprep.subr.mxu0 0.0
  %1337 = vmatpush1.msra.mxu0 0.0
  %1338 = vmatprep.subr.mxu0 0.0
  %1339 = vmatpush1.msra.mxu0 0.0
  %1340 = vmatprep.subr.mxu0 0.0
  %1341 = vmatpush1.msra.mxu0 0.0
  %1342 = vmatprep.subr.mxu0 0.0
  %1343 = vmatpush1.msra.mxu0 0.0
  %1344 = vmatprep.subr.mxu0 0.0
  %1345 = vmatpush1.msra.mxu0 0.0
  %1346 = vmatprep.subr.mxu0 0.0
  %1347 = vmatpush1.msra.mxu0 0.0
  %1348 = vmatprep.subr.mxu0 0.0
  %1349 = vmatpush1.msra.mxu0 0.0
  %1350 = vmatprep.subr.mxu0 0.0
  %1351 = vmatpush1.msra.mxu0 0.0
  %1352 = vmatprep.subr.mxu0 0.0
  %1353 = vmatpush1.msra.mxu0 0.0
  %1354 = vmatprep.subr.mxu0 0.0
  %1355 = vmatpush1.msra.mxu0 0.0
  %1356 = vmatprep.subr.mxu0 0.0
  %1357 = vmatpush1.msra.mxu0 0.0
  %1358 = vmatprep.subr.mxu0 0.0
  %1359 = vmatpush1.msra.mxu0 0.0
  %1360 = vmatprep.subr.mxu0 0.0
  %1361 = vmatpush1.msra.mxu0 0.0
  %1362 = vmatprep.subr.mxu0 0.0
  %1363 = vmatpush1.msra.mxu0 0.0
  %1364 = vmatprep.subr.mxu0 0.0
  %1365 = vmatpush1.msra.mxu0 0.0
  %1366 = vmatprep.subr.mxu0 0.0
  %1367 = vmatpush1.msra.mxu0 0.0
  %1368 = vmatprep.subr.mxu0 0.0
  %1369 = vmatpush1.msra.mxu0 0.0
  %1370 = vmatprep.subr.mxu0 0.0
  %1371 = vmatpush1.msra.mxu0 0.0
  %1372 = vmatprep.subr.mxu0 0.0
  %1373 = vmatpush1.msra.mxu0 0.0
  %1374 = vmatprep.subr.mxu0 0.0
  %1375 = vmatpush1.msra.mxu0 0.0
  %1376 = vmatprep.subr.mxu0 0.0
  %1377 = vmatpush1.msra.mxu0 0.0
  %1378 = vmatprep.subr.mxu0 0.0
  %1379 = vmatpush1.msra.mxu0 0.0
  %1380 = vmatprep.subr.mxu0 0.0
  %1381 = vmatpush1.msra.mxu0 0.0
  %1382 = vmatprep.subr.mxu0 0.0
  %1383 = vmatpush1.msra.mxu0 0.0
  %1384 = vmatprep.subr.mxu0 0.0
  %1385 = vmatpush1.msra.mxu0 0.0
  %1386 = vmatprep.subr.mxu0 0.0
  %1387 = vmatpush1.msra.mxu0 0.0
  %1388 = vmatprep.subr.mxu0 0.0
  %1389 = vmatpush1.msra.mxu0 0.0
  %1390 = vmatprep.mubr.f32.mxu0 0.0
  %1391 = vmatmul.mubr.f32.gmra.mrb[0].mxu0 %v1324
  %v1392 = vpop.f32.mrb[0].mxu0
  %v1393 = vadd.f32 0.0, %v1392
  %v1394 = vpop.f32.mrb[0].mxu0
  %1395 = vdwg.mxu0
  %v1396 = vadd.f32 %v1323, %v1393
  %v1397 = vmul.f32 %v1322, 0.5
  %v1398 = vsel %vm42, %v1322, %v1397
  %v1399 = vtanh.pop %v1398
  %v1400 = vmul.f32 %v1399, 0.5
  %v1401 = vadd.f32 %v1400, 0.5
  %v1402 = vsel %vm42, %v1399, %v1401
  %v1403 = vmul.f32 %v1396, 0.5
  %v1404 = vsel %vm42, %v1396, %v1403
  %v1405 = vtanh.pop %v1404
  %v1406 = vmul.f32 %v1405, 0.5
  %v1407 = vadd.f32 %v1406, 0.5
  %v1408 = vsel %vm42, %v1405, %v1407
  %v1409 = vmul.f32 %v1402, %v1215
  %1411 = vrot.lane.b32.xlu0 %v1402, 64
  %v1412 = vpop.permute.xlu0 %1411
  %v1414 = vmul.f32 %v1402, %v1412
  %1416 = vrot.lane.b32.xlu0 %v1414, 32
  %v1417 = vpop.permute.xlu0 %1416
  %v1419 = vadd.f32 %v1409, %v1417
  %v1420 = vmul.f32 %v1408, %v1226
  %1422 = vrot.lane.b32.xlu0 %v1408, 64
  %v1423 = vpop.permute.xlu0 %1422
  %v1425 = vmul.f32 %v1408, %v1423
  %1427 = vrot.lane.b32.xlu0 %v1425, 32
  %v1428 = vpop.permute.xlu0 %1427
  %v1430 = vadd.f32 %v1420, %v1428
  %v1431 = vtanh.pop %v1419
  %1433 = vrot.lane.b32.xlu0 %v1431, 64
  %v1434 = vpop.permute.xlu0 %1433
  %v1436 = vmul.f32 %v1402, %v1434
  %v1437 = vtanh.pop %v1430
  %1439 = vrot.lane.b32.xlu0 %v1437, 64
  %v1440 = vpop.permute.xlu0 %1439
  %v1442 = vmul.f32 %v1408, %v1440
  %1444 = vrot.lane.b32.xlu0 %v1436, 32
  %v1445 = vpop.permute.xlu0 %1444
  %1447 = vst.msk [vmem:[#allocation2 + $0x28] sm:$0xff] %vm230, %v1445
  %1449 = vrot.lane.b32.xlu0 %v1442, 32
  %v1450 = vpop.permute.xlu0 %1449
  %1452 = vst.msk [vmem:[#allocation3 + $0x10] sm:$0xff] %vm230, %v1450
  %v1453 = vld [vmem:[#allocation4 + $0x60] sm:$0xff]
  %v1454 = vsel %vm230, %v1445, 0
  %1456 = vmatprep.subr.mxu0 0.0
  %1457 = vmatpush1.msra.mxu0 %v221
  %1458 = vmatprep.subr.mxu0 0.0
  %1459 = vmatpush1.msra.mxu0 %v222
  %1460 = vmatprep.subr.mxu0 0.0
  %1461 = vmatpush1.msra.mxu0 %v223
  %1462 = vmatprep.subr.mxu0 0.0
  %1463 = vmatpush1.msra.mxu0 %v224
  %1464 = vmatprep.subr.mxu0 0.0
  %1465 = vmatpush1.msra.mxu0 0.0
  %1466 = vmatprep.subr.mxu0 0.0
  %1467 = vmatpush1.msra.mxu0 0.0
  %1468 = vmatprep.subr.mxu0 0.0
  %1469 = vmatpush1.msra.mxu0 0.0
  %1470 = vmatprep.subr.mxu0 0.0
  %1471 = vmatpush1.msra.mxu0 0.0
  %1472 = vmatprep.subr.mxu0 0.0
  %1473 = vmatpush1.msra.mxu0 0.0
  %1474 = vmatprep.subr.mxu0 0.0
  %1475 = vmatpush1.msra.mxu0 0.0
  %1476 = vmatprep.subr.mxu0 0.0
  %1477 = vmatpush1.msra.mxu0 0.0
  %1478 = vmatprep.subr.mxu0 0.0
  %1479 = vmatpush1.msra.mxu0 0.0
  %1480 = vmatprep.subr.mxu0 0.0
  %1481 = vmatpush1.msra.mxu0 0.0
  %1482 = vmatprep.subr.mxu0 0.0
  %1483 = vmatpush1.msra.mxu0 0.0
  %1484 = vmatprep.subr.mxu0 0.0
  %1485 = vmatpush1.msra.mxu0 0.0
  %1486 = vmatprep.subr.mxu0 0.0
  %1487 = vmatpush1.msra.mxu0 0.0
  %1488 = vmatprep.subr.mxu0 0.0
  %1489 = vmatpush1.msra.mxu0 0.0
  %1490 = vmatprep.subr.mxu0 0.0
  %1491 = vmatpush1.msra.mxu0 0.0
  %1492 = vmatprep.subr.mxu0 0.0
  %1493 = vmatpush1.msra.mxu0 0.0
  %1494 = vmatprep.subr.mxu0 0.0
  %1495 = vmatpush1.msra.mxu0 0.0
  %1496 = vmatprep.subr.mxu0 0.0
  %1497 = vmatpush1.msra.mxu0 0.0
  %1498 = vmatprep.subr.mxu0 0.0
  %1499 = vmatpush1.msra.mxu0 0.0
  %1500 = vmatprep.subr.mxu0 0.0
  %1501 = vmatpush1.msra.mxu0 0.0
  %1502 = vmatprep.subr.mxu0 0.0
  %1503 = vmatpush1.msra.mxu0 0.0
  %1504 = vmatprep.subr.mxu0 0.0
  %1505 = vmatpush1.msra.mxu0 0.0
  %1506 = vmatprep.subr.mxu0 0.0
  %1507 = vmatpush1.msra.mxu0 0.0
  %1508 = vmatprep.subr.mxu0 0.0
  %1509 = vmatpush1.msra.mxu0 0.0
  %1510 = vmatprep.subr.mxu0 0.0
  %1511 = vmatpush1.msra.mxu0 0.0
  %1512 = vmatprep.subr.mxu0 0.0
  %1513 = vmatpush1.msra.mxu0 0.0
  %1514 = vmatprep.subr.mxu0 0.0
  %1515 = vmatpush1.msra.mxu0 0.0
  %1516 = vmatprep.subr.mxu0 0.0
  %1517 = vmatpush1.msra.mxu0 0.0
  %1518 = vmatprep.subr.mxu0 0.0
  %1519 = vmatpush1.msra.mxu0 0.0
  %1520 = vmatprep.mubr.f32.mxu0 0.0
  %1521 = vmatmul.mubr.f32.gmra.mrb[0].mxu0 %v1454
  %v1522 = vpop.f32.mrb[0].mxu0
  %v1523 = vadd.f32 0.0, %v1522
  %v1524 = vpop.f32.mrb[0].mxu0
  %1525 = vdwg.mxu0
  %v1526 = vadd.f32 %v1453, %v1523
  %v1527 = vld [vmem:[#allocation4 + $0x18] sm:$0xff]
  %v1528 = vsel %vm230, %v1450, 0
  %1530 = vmatprep.subr.mxu0 0.0
  %1531 = vmatpush1.msra.mxu0 %v225
  %1532 = vmatprep.subr.mxu0 0.0
  %1533 = vmatpush1.msra.mxu0 %v226
  %1534 = vmatprep.subr.mxu0 0.0
  %1535 = vmatpush1.msra.mxu0 %v227
  %1536 = vmatprep.subr.mxu0 0.0
  %1537 = vmatpush1.msra.mxu0 %v228
  %1538 = vmatprep.subr.mxu0 0.0
  %1539 = vmatpush1.msra.mxu0 0.0
  %1540 = vmatprep.subr.mxu0 0.0
  %1541 = vmatpush1.msra.mxu0 0.0
  %1542 = vmatprep.subr.mxu0 0.0
  %1543 = vmatpush1.msra.mxu0 0.0
  %1544 = vmatprep.subr.mxu0 0.0
  %1545 = vmatpush1.msra.mxu0 0.0
  %1546 = vmatprep.subr.mxu0 0.0
  %1547 = vmatpush1.msra.mxu0 0.0
  %1548 = vmatprep.subr.mxu0 0.0
  %1549 = vmatpush1.msra.mxu0 0.0
  %1550 = vmatprep.subr.mxu0 0.0
  %1551 = vmatpush1.msra.mxu0 0.0
  %1552 = vmatprep.subr.mxu0 0.0
  %1553 = vmatpush1.msra.mxu0 0.0
  %1554 = vmatprep.subr.mxu0 0.0
  %1555 = vmatpush1.msra.mxu0 0.0
  %1556 = vmatprep.subr.mxu0 0.0
  %1557 = vmatpush1.msra.mxu0 0.0
  %1558 = vmatprep.subr.mxu0 0.0
  %1559 = vmatpush1.msra.mxu0 0.0
  %1560 = vmatprep.subr.mxu0 0.0
  %1561 = vmatpush1.msra.mxu0 0.0
  %1562 = vmatprep.subr.mxu0 0.0
  %1563 = vmatpush1.msra.mxu0 0.0
  %1564 = vmatprep.subr.mxu0 0.0
  %1565 = vmatpush1.msra.mxu0 0.0
  %1566 = vmatprep.subr.mxu0 0.0
  %1567 = vmatpush1.msra.mxu0 0.0
  %1568 = vmatprep.subr.mxu0 0.0
  %1569 = vmatpush1.msra.mxu0 0.0
  %1570 = vmatprep.subr.mxu0 0.0
  %1571 = vmatpush1.msra.mxu0 0.0
  %1572 = vmatprep.subr.mxu0 0.0
  %1573 = vmatpush1.msra.mxu0 0.0
  %1574 = vmatprep.subr.mxu0 0.0
  %1575 = vmatpush1.msra.mxu0 0.0
  %1576 = vmatprep.subr.mxu0 0.0
  %1577 = vmatpush1.msra.mxu0 0.0
  %1578 = vmatprep.subr.mxu0 0.0
  %1579 = vmatpush1.msra.mxu0 0.0
  %1580 = vmatprep.subr.mxu0 0.0
  %1581 = vmatpush1.msra.mxu0 0.0
  %1582 = vmatprep.subr.mxu0 0.0
  %1583 = vmatpush1.msra.mxu0 0.0
  %1584 = vmatprep.subr.mxu0 0.0
  %1585 = vmatpush1.msra.mxu0 0.0
  %1586 = vmatprep.subr.mxu0 0.0
  %1587 = vmatpush1.msra.mxu0 0.0
  %1588 = vmatprep.subr.mxu0 0.0
  %1589 = vmatpush1.msra.mxu0 0.0
  %1590 = vmatprep.subr.mxu0 0.0
  %1591 = vmatpush1.msra.mxu0 0.0
  %1592 = vmatprep.subr.mxu0 0.0
  %1593 = vmatpush1.msra.mxu0 0.0
  %1594 = vmatprep.mubr.f32.mxu0 0.0
  %1595 = vmatmul.mubr.f32.gmra.mrb[0].mxu0 %v1528
  %v1596 = vpop.f32.mrb[0].mxu0
  %v1597 = vadd.f32 0.0, %v1596
  %v1598 = vpop.f32.mrb[0].mxu0
  %1599 = vdwg.mxu0
  %v1600 = vadd.f32 %v1527, %v1597
  %v1601 = vmul.f32 %v1526, 0.5
  %v1602 = vsel %vm42, %v1526, %v1601
  %v1603 = vtanh.pop %v1602
  %v1604 = vmul.f32 %v1603, 0.5
  %v1605 = vadd.f32 %v1604, 0.5
  %v1606 = vsel %vm42, %v1603, %v1605
  %v1607 = vmul.f32 %v1600, 0.5
  %v1608 = vsel %vm42, %v1600, %v1607
  %v1609 = vtanh.pop %v1608
  %v1610 = vmul.f32 %v1609, 0.5
  %v1611 = vadd.f32 %v1610, 0.5
  %v1612 = vsel %vm42, %v1609, %v1611
  %v1613 = vmul.f32 %v1606, %v1419
  %1615 = vrot.lane.b32.xlu0 %v1606, 64
  %v1616 = vpop.permute.xlu0 %1615
  %v1618 = vmul.f32 %v1606, %v1616
  %1620 = vrot.lane.b32.xlu0 %v1618, 32
  %v1621 = vpop.permute.xlu0 %1620
  %v1623 = vadd.f32 %v1613, %v1621
  %v1624 = vmul.f32 %v1612, %v1430
  %1626 = vrot.lane.b32.xlu0 %v1612, 64
  %v1627 = vpop.permute.xlu0 %1626
  %v1629 = vmul.f32 %v1612, %v1627
  %1631 = vrot.lane.b32.xlu0 %v1629, 32
  %v1632 = vpop.permute.xlu0 %1631
  %v1634 = vadd.f32 %v1624, %v1632
  %v1635 = vtanh.pop %v1623
  %1637 = vrot.lane.b32.xlu0 %v1635, 64
  %v1638 = vpop.permute.xlu0 %1637
  %v1640 = vmul.f32 %v1606, %v1638
  %v1641 = vtanh.pop %v1634
  %1643 = vrot.lane.b32.xlu0 %v1641, 64
  %v1644 = vpop.permute.xlu0 %1643
  %v1646 = vmul.f32 %v1612, %v1644
  %1648 = vrot.lane.b32.xlu0 %v1640, 32
  %v1649 = vpop.permute.xlu0 %1648
  %1651 = vst.msk [vmem:[#allocation2 + $0x30] sm:$0xff] %vm230, %v1649
  %1653 = vrot.lane.b32.xlu0 %v1646, 32
  %v1654 = vpop.permute.xlu0 %1653
  %1656 = vst.msk [vmem:[#allocation3 + $0x8] sm:$0xff] %vm230, %v1654
  %v1657 = vld [vmem:[#allocation4 + $0x70] sm:$0xff]
  %v1658 = vsel %vm230, %v1649, 0
  %1660 = vmatprep.subr.mxu0 0.0
  %1661 = vmatpush1.msra.mxu0 %v221
  %1662 = vmatprep.subr.mxu0 0.0
  %1663 = vmatpush1.msra.mxu0 %v222
  %1664 = vmatprep.subr.mxu0 0.0
  %1665 = vmatpush1.msra.mxu0 %v223
  %1666 = vmatprep.subr.mxu0 0.0
  %1667 = vmatpush1.msra.mxu0 %v224
  %1668 = vmatprep.subr.mxu0 0.0
  %1669 = vmatpush1.msra.mxu0 0.0
  %1670 = vmatprep.subr.mxu0 0.0
  %1671 = vmatpush1.msra.mxu0 0.0
  %1672 = vmatprep.subr.mxu0 0.0
  %1673 = vmatpush1.msra.mxu0 0.0
  %1674 = vmatprep.subr.mxu0 0.0
  %1675 = vmatpush1.msra.mxu0 0.0
  %1676 = vmatprep.subr.mxu0 0.0
  %1677 = vmatpush1.msra.mxu0 0.0
  %1678 = vmatprep.subr.mxu0 0.0
  %1679 = vmatpush1.msra.mxu0 0.0
  %1680 = vmatprep.subr.mxu0 0.0
  %1681 = vmatpush1.msra.mxu0 0.0
  %1682 = vmatprep.subr.mxu0 0.0
  %1683 = vmatpush1.msra.mxu0 0.0
  %1684 = vmatprep.subr.mxu0 0.0
  %1685 = vmatpush1.msra.mxu0 0.0
  %1686 = vmatprep.subr.mxu0 0.0
  %1687 = vmatpush1.msra.mxu0 0.0
  %1688 = vmatprep.subr.mxu0 0.0
  %1689 = vmatpush1.msra.mxu0 0.0
  %1690 = vmatprep.subr.mxu0 0.0
  %1691 = vmatpush1.msra.mxu0 0.0
  %1692 = vmatprep.subr.mxu0 0.0
  %1693 = vmatpush1.msra.mxu0 0.0
  %1694 = vmatprep.subr.mxu0 0.0
  %1695 = vmatpush1.msra.mxu0 0.0
  %1696 = vmatprep.subr.mxu0 0.0
  %1697 = vmatpush1.msra.mxu0 0.0
  %1698 = vmatprep.subr.mxu0 0.0
  %1699 = vmatpush1.msra.mxu0 0.0
  %1700 = vmatprep.subr.mxu0 0.0
  %1701 = vmatpush1.msra.mxu0 0.0
  %1702 = vmatprep.subr.mxu0 0.0
  %1703 = vmatpush1.msra.mxu0 0.0
  %1704 = vmatprep.subr.mxu0 0.0
  %1705 = vmatpush1.msra.mxu0 0.0
  %1706 = vmatprep.subr.mxu0 0.0
  %1707 = vmatpush1.msra.mxu0 0.0
  %1708 = vmatprep.subr.mxu0 0.0
  %1709 = vmatpush1.msra.mxu0 0.0
  %1710 = vmatprep.subr.mxu0 0.0
  %1711 = vmatpush1.msra.mxu0 0.0
  %1712 = vmatprep.subr.mxu0 0.0
  %1713 = vmatpush1.msra.mxu0 0.0
  %1714 = vmatprep.subr.mxu0 0.0
  %1715 = vmatpush1.msra.mxu0 0.0
  %1716 = vmatprep.subr.mxu0 0.0
  %1717 = vmatpush1.msra.mxu0 0.0
  %1718 = vmatprep.subr.mxu0 0.0
  %1719 = vmatpush1.msra.mxu0 0.0
  %1720 = vmatprep.subr.mxu0 0.0
  %1721 = vmatpush1.msra.mxu0 0.0
  %1722 = vmatprep.subr.mxu0 0.0
  %1723 = vmatpush1.msra.mxu0 0.0
  %1724 = vmatprep.mubr.f32.mxu0 0.0
  %1725 = vmatmul.mubr.f32.gmra.mrb[0].mxu0 %v1658
  %v1726 = vpop.f32.mrb[0].mxu0
  %v1727 = vadd.f32 0.0, %v1726
  %v1728 = vpop.f32.mrb[0].mxu0
  %1729 = vdwg.mxu0
  %v1730 = vadd.f32 %v1657, %v1727
  %v1731 = vld [vmem:[#allocation4 + $0x8] sm:$0xff]
  %v1732 = vsel %vm230, %v1654, 0
  %1734 = vmatprep.subr.mxu0 0.0
  %1735 = vmatpush1.msra.mxu0 %v225
  %1736 = vmatprep.subr.mxu0 0.0
  %1737 = vmatpush1.msra.mxu0 %v226
  %1738 = vmatprep.subr.mxu0 0.0
  %1739 = vmatpush1.msra.mxu0 %v227
  %1740 = vmatprep.subr.mxu0 0.0
  %1741 = vmatpush1.msra.mxu0 %v228
  %1742 = vmatprep.subr.mxu0 0.0
  %1743 = vmatpush1.msra.mxu0 0.0
  %1744 = vmatprep.subr.mxu0 0.0
  %1745 = vmatpush1.msra.mxu0 0.0
  %1746 = vmatprep.subr.mxu0 0.0
  %1747 = vmatpush1.msra.mxu0 0.0
  %1748 = vmatprep.subr.mxu0 0.0
  %1749 = vmatpush1.msra.mxu0 0.0
  %1750 = vmatprep.subr.mxu0 0.0
  %1751 = vmatpush1.msra.mxu0 0.0
  %1752 = vmatprep.subr.mxu0 0.0
  %1753 = vmatpush1.msra.mxu0 0.0
  %1754 = vmatprep.subr.mxu0 0.0
  %1755 = vmatpush1.msra.mxu0 0.0
  %1756 = vmatprep.subr.mxu0 0.0
  %1757 = vmatpush1.msra.mxu0 0.0
  %1758 = vmatprep.subr.mxu0 0.0
  %1759 = vmatpush1.msra.mxu0 0.0
  %1760 = vmatprep.subr.mxu0 0.0
  %1761 = vmatpush1.msra.mxu0 0.0
  %1762 = vmatprep.subr.mxu0 0.0
  %1763 = vmatpush1.msra.mxu0 0.0
  %1764 = vmatprep.subr.mxu0 0.0
  %1765 = vmatpush1.msra.mxu0 0.0
  %1766 = vmatprep.subr.mxu0 0.0
  %1767 = vmatpush1.msra.mxu0 0.0
  %1768 = vmatprep.subr.mxu0 0.0
  %1769 = vmatpush1.msra.mxu0 0.0
  %1770 = vmatprep.subr.mxu0 0.0
  %1771 = vmatpush1.msra.mxu0 0.0
  %1772 = vmatprep.subr.mxu0 0.0
  %1773 = vmatpush1.msra.mxu0 0.0
  %1774 = vmatprep.subr.mxu0 0.0
  %1775 = vmatpush1.msra.mxu0 0.0
  %1776 = vmatprep.subr.mxu0 0.0
  %1777 = vmatpush1.msra.mxu0 0.0
  %1778 = vmatprep.subr.mxu0 0.0
  %1779 = vmatpush1.msra.mxu0 0.0
  %1780 = vmatprep.subr.mxu0 0.0
  %1781 = vmatpush1.msra.mxu0 0.0
  %1782 = vmatprep.subr.mxu0 0.0
  %1783 = vmatpush1.msra.mxu0 0.0
  %1784 = vmatprep.subr.mxu0 0.0
  %1785 = vmatpush1.msra.mxu0 0.0
  %1786 = vmatprep.subr.mxu0 0.0
  %1787 = vmatpush1.msra.mxu0 0.0
  %1788 = vmatprep.subr.mxu0 0.0
  %1789 = vmatpush1.msra.mxu0 0.0
  %1790 = vmatprep.subr.mxu0 0.0
  %1791 = vmatpush1.msra.mxu0 0.0
  %1792 = vmatprep.subr.mxu0 0.0
  %1793 = vmatpush1.msra.mxu0 0.0
  %1794 = vmatprep.subr.mxu0 0.0
  %1795 = vmatpush1.msra.mxu0 0.0
  %1796 = vmatprep.subr.mxu0 0.0
  %1797 = vmatpush1.msra.mxu0 0.0
  %1798 = vmatprep.mubr.f32.mxu0 0.0
  %1799 = vmatmul.mubr.f32.gmra.mrb[0].mxu0 %v1732
  %v1800 = vpop.f32.mrb[0].mxu0
  %v1801 = vadd.f32 0.0, %v1800
  %v1802 = vpop.f32.mrb[0].mxu0
  %1803 = vdwg.mxu0
  %v1804 = vadd.f32 %v1731, %v1801
  %v1805 = vmul.f32 %v1730, 0.5
  %v1806 = vsel %vm42, %v1730, %v1805
  %v1807 = vtanh.pop %v1806
  %v1808 = vmul.f32 %v1807, 0.5
  %v1809 = vadd.f32 %v1808, 0.5
  %v1810 = vsel %vm42, %v1807, %v1809
  %v1811 = vmul.f32 %v1804, 0.5
  %v1812 = vsel %vm42, %v1804, %v1811
  %v1813 = vtanh.pop %v1812
  %v1814 = vmul.f32 %v1813, 0.5
  %v1815 = vadd.f32 %v1814, 0.5
  %v1816 = vsel %vm42, %v1813, %v1815
  %v1817 = vmul.f32 %v1810, %v1623
  %1819 = vrot.lane.b32.xlu0 %v1810, 64
  %v1820 = vpop.permute.xlu0 %1819
  %v1822 = vmul.f32 %v1810, %v1820
  %1824 = vrot.lane.b32.xlu0 %v1822, 32
  %v1825 = vpop.permute.xlu0 %1824
  %v1827 = vadd.f32 %v1817, %v1825
  %v1828 = vmul.f32 %v1816, %v1634
  %1830 = vrot.lane.b32.xlu0 %v1816, 64
  %v1831 = vpop.permute.xlu0 %1830
  %v1833 = vmul.f32 %v1816, %v1831
  %1835 = vrot.lane.b32.xlu0 %v1833, 32
  %v1836 = vpop.permute.xlu0 %1835
  %v1838 = vadd.f32 %v1828, %v1836
  %v1839 = vtanh.pop %v1827
  %1841 = vrot.lane.b32.xlu0 %v1839, 64
  %v1842 = vpop.permute.xlu0 %1841
  %v1844 = vmul.f32 %v1810, %v1842
  %v1845 = vtanh.pop %v1838
  %1847 = vrot.lane.b32.xlu0 %v1845, 64
  %v1848 = vpop.permute.xlu0 %1847
  %v1850 = vmul.f32 %v1816, %v1848
  %1852 = vrot.lane.b32.xlu0 %v1844, 32
  %v1853 = vpop.permute.xlu0 %1852
  %1855 = vst.msk [vmem:[#allocation2 + $0x38] sm:$0xff] %vm230, %v1853
  %1857 = vrot.lane.b32.xlu0 %v1850, 32
  %v1858 = vpop.permute.xlu0 %1857
  %1860 = vst.msk [vmem:[#allocation3] sm:$0xff] %vm230, %v1858
  %v1861 = vld [vmem:[#allocation2] sm:$0xff]
  %v1862 = vld [vmem:[#allocation2 + $0x8] sm:$0xff]
  %v1863 = vld [vmem:[#allocation2 + $0x10] sm:$0xff]
  %v1864 = vld [vmem:[#allocation2 + $0x18] sm:$0xff]
  %v1865 = vld [vmem:[#allocation2 + $0x20] sm:$0xff]
  %v1866 = vld [vmem:[#allocation2 + $0x28] sm:$0xff]
  %v1867 = vld [vmem:[#allocation2 + $0x30] sm:$0xff]
  %v1868 = vld [vmem:[#allocation2 + $0x38] sm:$0xff]
  %v1869 = vld [vmem:[%s5] sm:$0xff]
  %v1870 = vld [vmem:[%s5 + $0x8] sm:$0xff]
  %v1871 = vld [vmem:[%s5 + $0x10] sm:$0xff]
  %v1872 = vld [vmem:[%s5 + $0x18] sm:$0xff]
  %v1873 = vld [vmem:[%s5 + $0x20] sm:$0xff]
  %v1874 = vld [vmem:[%s5 + $0x28] sm:$0xff]
  %v1875 = vld [vmem:[%s5 + $0x30] sm:$0xff]
  %v1876 = vld [vmem:[%s5 + $0x38] sm:$0xff]
  %v1877 = vld [vmem:[#allocation3] sm:$0xff]
  %v1878 = vld [vmem:[#allocation3 + $0x8] sm:$0xff]
  %v1879 = vld [vmem:[#allocation3 + $0x10] sm:$0xff]
  %v1880 = vld [vmem:[#allocation3 + $0x18] sm:$0xff]
  %v1881 = vld [vmem:[#allocation3 + $0x20] sm:$0xff]
  %v1882 = vld [vmem:[#allocation3 + $0x28] sm:$0xff]
  %v1883 = vld [vmem:[#allocation3 + $0x30] sm:$0xff]
  %v1884 = vld [vmem:[#allocation3 + $0x38] sm:$0xff]
  %v1885 = vld [vmem:[%s5 + $0x40] sm:$0xff]
  %v1886 = vld [vmem:[%s5 + $0x48] sm:$0xff]
  %v1887 = vld [vmem:[%s5 + $0x50] sm:$0xff]
  %v1888 = vld [vmem:[%s5 + $0x58] sm:$0xff]
  %v1889 = vld [vmem:[%s5 + $0x60] sm:$0xff]
  %v1890 = vld [vmem:[%s5 + $0x68] sm:$0xff]
  %v1891 = vld [vmem:[%s5 + $0x70] sm:$0xff]
  %v1892 = vld [vmem:[%s5 + $0x78] sm:$0xff]
  %v1894 = vsel %vm230, %v1877, 0
  %v1897 = vsel %vm230, %v1878, 0
  %v1900 = vsel %vm230, %v1879, 0
  %v1903 = vsel %vm230, %v1880, 0
  %v1906 = vsel %vm230, %v1881, 0
  %v1909 = vsel %vm230, %v1882, 0
  %v1912 = vsel %vm230, %v1883, 0
  %v1915 = vsel %vm230, %v1884, 0
  %1917 = vmatprep.subr.mxu0 %v1886
  %1918 = vmatpush1.msra.mxu0 %v1885
  %1919 = vmatprep.subr.mxu0 %v1888
  %1920 = vmatpush1.msra.mxu0 %v1887
  %1921 = vmatprep.subr.mxu0 %v1890
  %1922 = vmatpush1.msra.mxu0 %v1889
  %1923 = vmatprep.subr.mxu0 %v1892
  %1924 = vmatpush1.msra.mxu0 %v1891
  %1925 = vmatprep.subr.mxu0 0.0
  %1926 = vmatpush1.msra.mxu0 0.0
  %1927 = vmatprep.subr.mxu0 0.0
  %1928 = vmatpush1.msra.mxu0 0.0
  %1929 = vmatprep.subr.mxu0 0.0
  %1930 = vmatpush1.msra.mxu0 0.0
  %1931 = vmatprep.subr.mxu0 0.0
  %1932 = vmatpush1.msra.mxu0 0.0
  %1933 = vmatprep.subr.mxu0 0.0
  %1934 = vmatpush1.msra.mxu0 0.0
  %1935 = vmatprep.subr.mxu0 0.0
  %1936 = vmatpush1.msra.mxu0 0.0
  %1937 = vmatprep.subr.mxu0 0.0
  %1938 = vmatpush1.msra.mxu0 0.0
  %1939 = vmatprep.subr.mxu0 0.0
  %1940 = vmatpush1.msra.mxu0 0.0
  %1941 = vmatprep.subr.mxu0 0.0
  %1942 = vmatpush1.msra.mxu0 0.0
  %1943 = vmatprep.subr.mxu0 0.0
  %1944 = vmatpush1.msra.mxu0 0.0
  %1945 = vmatprep.subr.mxu0 0.0
  %1946 = vmatpush1.msra.mxu0 0.0
  %1947 = vmatprep.subr.mxu0 0.0
  %1948 = vmatpush1.msra.mxu0 0.0
  %1949 = vmatprep.subr.mxu0 0.0
  %1950 = vmatpush1.msra.mxu0 0.0
  %1951 = vmatprep.subr.mxu0 0.0
  %1952 = vmatpush1.msra.mxu0 0.0
  %1953 = vmatprep.subr.mxu0 0.0
  %1954 = vmatpush1.msra.mxu0 0.0
  %1955 = vmatprep.subr.mxu0 0.0
  %1956 = vmatpush1.msra.mxu0 0.0
  %1957 = vmatprep.subr.mxu0 0.0
  %1958 = vmatpush1.msra.mxu0 0.0
  %1959 = vmatprep.subr.mxu0 0.0
  %1960 = vmatpush1.msra.mxu0 0.0
  %1961 = vmatprep.subr.mxu0 0.0
  %1962 = vmatpush1.msra.mxu0 0.0
  %1963 = vmatprep.subr.mxu0 0.0
  %1964 = vmatpush1.msra.mxu0 0.0
  %1965 = vmatprep.subr.mxu0 0.0
  %1966 = vmatpush1.msra.mxu0 0.0
  %1967 = vmatprep.subr.mxu0 0.0
  %1968 = vmatpush1.msra.mxu0 0.0
  %1969 = vmatprep.subr.mxu0 0.0
  %1970 = vmatpush1.msra.mxu0 0.0
  %1971 = vmatprep.subr.mxu0 0.0
  %1972 = vmatpush1.msra.mxu0 0.0
  %1973 = vmatprep.subr.mxu0 0.0
  %1974 = vmatpush1.msra.mxu0 0.0
  %1975 = vmatprep.subr.mxu0 0.0
  %1976 = vmatpush1.msra.mxu0 0.0
  %1977 = vmatprep.subr.mxu0 0.0
  %1978 = vmatpush1.msra.mxu0 0.0
  %1979 = vmatprep.subr.mxu0 0.0
  %1980 = vmatpush1.msra.mxu0 0.0
  %1981 = vmatprep.mubr.f32.mxu0 0.0
  %1982 = vmatmul.mubr.f32.gmra.mrb[0].mxu0 %v1894
  %v1983 = vpop.f32.mrb[0].mxu0
  %v1984 = vadd.f32 0.0, %v1983
  %v1985 = vpop.f32.mrb[0].mxu0
  %v1986 = vadd.f32 0.0, %v1985
  %1987 = vmatprep.mubr.f32.mxu0 0.0
  %1988 = vmatmul.mubr.f32.gmra.mrb[0].mxu0 %v1897
  %v1989 = vpop.f32.mrb[0].mxu0
  %v1990 = vadd.f32 0.0, %v1989
  %v1991 = vpop.f32.mrb[0].mxu0
  %v1992 = vadd.f32 0.0, %v1991
  %1993 = vmatprep.mubr.f32.mxu0 0.0
  %1994 = vmatmul.mubr.f32.gmra.mrb[0].mxu0 %v1900
  %v1995 = vpop.f32.mrb[0].mxu0
  %v1996 = vadd.f32 0.0, %v1995
  %v1997 = vpop.f32.mrb[0].mxu0
  %v1998 = vadd.f32 0.0, %v1997
  %1999 = vmatprep.mubr.f32.mxu0 0.0
  %2000 = vmatmul.mubr.f32.gmra.mrb[0].mxu0 %v1903
  %v2001 = vpop.f32.mrb[0].mxu0
  %v2002 = vadd.f32 0.0, %v2001
  %v2003 = vpop.f32.mrb[0].mxu0
  %v2004 = vadd.f32 0.0, %v2003
  %2005 = vmatprep.mubr.f32.mxu0 0.0
  %2006 = vmatmul.mubr.f32.gmra.mrb[0].mxu0 %v1906
  %v2007 = vpop.f32.mrb[0].mxu0
  %v2008 = vadd.f32 0.0, %v2007
  %v2009 = vpop.f32.mrb[0].mxu0
  %v2010 = vadd.f32 0.0, %v2009
  %2011 = vmatprep.mubr.f32.mxu0 0.0
  %2012 = vmatmul.mubr.f32.gmra.mrb[0].mxu0 %v1909
  %v2013 = vpop.f32.mrb[0].mxu0
  %v2014 = vadd.f32 0.0, %v2013
  %v2015 = vpop.f32.mrb[0].mxu0
  %v2016 = vadd.f32 0.0, %v2015
  %2017 = vmatprep.mubr.f32.mxu0 0.0
  %2018 = vmatmul.mubr.f32.gmra.mrb[0].mxu0 %v1912
  %v2019 = vpop.f32.mrb[0].mxu0
  %v2020 = vadd.f32 0.0, %v2019
  %v2021 = vpop.f32.mrb[0].mxu0
  %v2022 = vadd.f32 0.0, %v2021
  %2023 = vmatprep.mubr.f32.mxu0 0.0
  %2024 = vmatmul.mubr.f32.gmra.mrb[0].mxu0 %v1915
  %v2025 = vpop.f32.mrb[0].mxu0
  %v2026 = vadd.f32 0.0, %v2025
  %v2027 = vpop.f32.mrb[0].mxu0
  %v2028 = vadd.f32 0.0, %v2027
  %2029 = vdwg.mxu0
  %v2031 = vsel %vm230, %v1861, 0
  %v2034 = vsel %vm230, %v1862, 0
  %v2037 = vsel %vm230, %v1863, 0
  %v2040 = vsel %vm230, %v1864, 0
  %v2043 = vsel %vm230, %v1865, 0
  %v2046 = vsel %vm230, %v1866, 0
  %v2049 = vsel %vm230, %v1867, 0
  %v2052 = vsel %vm230, %v1868, 0
  %2054 = vmatprep.subr.mxu0 %v1870
  %2055 = vmatpush1.msra.mxu0 %v1869
  %2056 = vmatprep.subr.mxu0 %v1872
  %2057 = vmatpush1.msra.mxu0 %v1871
  %2058 = vmatprep.subr.mxu0 %v1874
  %2059 = vmatpush1.msra.mxu0 %v1873
  %2060 = vmatprep.subr.mxu0 %v1876
  %2061 = vmatpush1.msra.mxu0 %v1875
  %2062 = vmatprep.subr.mxu0 0.0
  %2063 = vmatpush1.msra.mxu0 0.0
  %2064 = vmatprep.subr.mxu0 0.0
  %2065 = vmatpush1.msra.mxu0 0.0
  %2066 = vmatprep.subr.mxu0 0.0
  %2067 = vmatpush1.msra.mxu0 0.0
  %2068 = vmatprep.subr.mxu0 0.0
  %2069 = vmatpush1.msra.mxu0 0.0
  %2070 = vmatprep.subr.mxu0 0.0
  %2071 = vmatpush1.msra.mxu0 0.0
  %2072 = vmatprep.subr.mxu0 0.0
  %2073 = vmatpush1.msra.mxu0 0.0
  %2074 = vmatprep.subr.mxu0 0.0
  %2075 = vmatpush1.msra.mxu0 0.0
  %2076 = vmatprep.subr.mxu0 0.0
  %2077 = vmatpush1.msra.mxu0 0.0
  %2078 = vmatprep.subr.mxu0 0.0
  %2079 = vmatpush1.msra.mxu0 0.0
  %2080 = vmatprep.subr.mxu0 0.0
  %2081 = vmatpush1.msra.mxu0 0.0
  %2082 = vmatprep.subr.mxu0 0.0
  %2083 = vmatpush1.msra.mxu0 0.0
  %2084 = vmatprep.subr.mxu0 0.0
  %2085 = vmatpush1.msra.mxu0 0.0
  %2086 = vmatprep.subr.mxu0 0.0
  %2087 = vmatpush1.msra.mxu0 0.0
  %2088 = vmatprep.subr.mxu0 0.0
  %2089 = vmatpush1.msra.mxu0 0.0
  %2090 = vmatprep.subr.mxu0 0.0
  %2091 = vmatpush1.msra.mxu0 0.0
  %2092 = vmatprep.subr.mxu0 0.0
  %2093 = vmatpush1.msra.mxu0 0.0
  %2094 = vmatprep.subr.mxu0 0.0
  %2095 = vmatpush1.msra.mxu0 0.0
  %2096 = vmatprep.subr.mxu0 0.0
  %2097 = vmatpush1.msra.mxu0 0.0
  %2098 = vmatprep.subr.mxu0 0.0
  %2099 = vmatpush1.msra.mxu0 0.0
  %2100 = vmatprep.subr.mxu0 0.0
  %2101 = vmatpush1.msra.mxu0 0.0
  %2102 = vmatprep.subr.mxu0 0.0
  %2103 = vmatpush1.msra.mxu0 0.0
  %2104 = vmatprep.subr.mxu0 0.0
  %2105 = vmatpush1.msra.mxu0 0.0
  %2106 = vmatprep.subr.mxu0 0.0
  %2107 = vmatpush1.msra.mxu0 0.0
  %2108 = vmatprep.subr.mxu0 0.0
  %2109 = vmatpush1.msra.mxu0 0.0
  %2110 = vmatprep.subr.mxu0 0.0
  %2111 = vmatpush1.msra.mxu0 0.0
  %2112 = vmatprep.subr.mxu0 0.0
  %2113 = vmatpush1.msra.mxu0 0.0
  %2114 = vmatprep.subr.mxu0 0.0
  %2115 = vmatpush1.msra.mxu0 0.0
  %2116 = vmatprep.subr.mxu0 0.0
  %2117 = vmatpush1.msra.mxu0 0.0
  %2118 = vmatprep.mubr.f32.mxu0 0.0
  %2119 = vmatmul.mubr.f32.gmra.mrb[0].mxu0 %v2031
  %v2120 = vpop.f32.mrb[0].mxu0
  %v2121 = vadd.f32 %v1984, %v2120
  %v2122 = vpop.f32.mrb[0].mxu0
  %v2123 = vadd.f32 %v1986, %v2122
  %2124 = vmatprep.mubr.f32.mxu0 0.0
  %2125 = vmatmul.mubr.f32.gmra.mrb[0].mxu0 %v2034
  %v2126 = vpop.f32.mrb[0].mxu0
  %v2127 = vadd.f32 %v1990, %v2126
  %v2128 = vpop.f32.mrb[0].mxu0
  %v2129 = vadd.f32 %v1992, %v2128
  %2130 = vmatprep.mubr.f32.mxu0 0.0
  %2131 = vmatmul.mubr.f32.gmra.mrb[0].mxu0 %v2037
  %v2132 = vpop.f32.mrb[0].mxu0
  %v2133 = vadd.f32 %v1996, %v2132
  %v2134 = vpop.f32.mrb[0].mxu0
  %v2135 = vadd.f32 %v1998, %v2134
  %2136 = vmatprep.mubr.f32.mxu0 0.0
  %2137 = vmatmul.mubr.f32.gmra.mrb[0].mxu0 %v2040
  %v2138 = vpop.f32.mrb[0].mxu0
  %v2139 = vadd.f32 %v2002, %v2138
  %v2140 = vpop.f32.mrb[0].mxu0
  %v2141 = vadd.f32 %v2004, %v2140
  %2142 = vmatprep.mubr.f32.mxu0 0.0
  %2143 = vmatmul.mubr.f32.gmra.mrb[0].mxu0 %v2043
  %v2144 = vpop.f32.mrb[0].mxu0
  %v2145 = vadd.f32 %v2008, %v2144
  %v2146 = vpop.f32.mrb[0].mxu0
  %v2147 = vadd.f32 %v2010, %v2146
  %2148 = vmatprep.mubr.f32.mxu0 0.0
  %2149 = vmatmul.mubr.f32.gmra.mrb[0].mxu0 %v2046
  %v2150 = vpop.f32.mrb[0].mxu0
  %v2151 = vadd.f32 %v2014, %v2150
  %v2152 = vpop.f32.mrb[0].mxu0
  %v2153 = vadd.f32 %v2016, %v2152
  %2154 = vmatprep.mubr.f32.mxu0 0.0
  %2155 = vmatmul.mubr.f32.gmra.mrb[0].mxu0 %v2049
  %v2156 = vpop.f32.mrb[0].mxu0
  %v2157 = vadd.f32 %v2020, %v2156
  %v2158 = vpop.f32.mrb[0].mxu0
  %v2159 = vadd.f32 %v2022, %v2158
  %2160 = vmatprep.mubr.f32.mxu0 0.0
  %2161 = vmatmul.mubr.f32.gmra.mrb[0].mxu0 %v2052
  %v2162 = vpop.f32.mrb[0].mxu0
  %v2163 = vadd.f32 %v2026, %v2162
  %v2164 = vpop.f32.mrb[0].mxu0
  %v2165 = vadd.f32 %v2028, %v2164
  %2166 = vdwg.mxu0
  %v2167 = vld [vmem:[%s8] sm:$0x3]
  %v2169 = vlaneseq
  %v2170 = vshrl.u32 %v2169, 7
  %v2171 = vsub.s32 0, %v2170
  %v2172 = vrot.slane %v2167, %v2171
  %v2173 = vlaneseq
  %v2174 = vshrl.u32 %v2173, 7
  %v2175 = vsub.s32 1, %v2174
  %v2176 = vrot.slane %v2167, %v2175
  %v2179 = vadd.f32 %v2121, %v2172
  %v2180 = vadd.f32 %v2123, %v2176
  %v2181 = vadd.f32 %v2127, %v2172
  %v2182 = vadd.f32 %v2129, %v2176
  %v2183 = vadd.f32 %v2133, %v2172
  %v2184 = vadd.f32 %v2135, %v2176
  %v2185 = vadd.f32 %v2139, %v2172
  %v2186 = vadd.f32 %v2141, %v2176
  %v2187 = vadd.f32 %v2145, %v2172
  %v2188 = vadd.f32 %v2147, %v2176
  %v2189 = vadd.f32 %v2151, %v2172
  %v2190 = vadd.f32 %v2153, %v2176
  %v2191 = vadd.f32 %v2157, %v2172
  %v2192 = vadd.f32 %v2159, %v2176
  %v2193 = vadd.f32 %v2163, %v2172
  %v2194 = vadd.f32 %v2165, %v2176
  %2195 = vst [vmem:[#allocation4] sm:$0xff] %v2179
  %2196 = vst [vmem:[#allocation4 + $0x8] sm:$0xff] %v2180
  %2197 = vst [vmem:[#allocation4 + $0x10] sm:$0xff] %v2181
  %2198 = vst [vmem:[#allocation4 + $0x18] sm:$0xff] %v2182
  %2199 = vst [vmem:[#allocation4 + $0x20] sm:$0xff] %v2183
  %2200 = vst [vmem:[#allocation4 + $0x28] sm:$0xff] %v2184
  %2201 = vst [vmem:[#allocation4 + $0x30] sm:$0xff] %v2185
  %2202 = vst [vmem:[#allocation4 + $0x38] sm:$0xff] %v2186
  %2203 = vst [vmem:[#allocation4 + $0x40] sm:$0xff] %v2187
  %2204 = vst [vmem:[#allocation4 + $0x48] sm:$0xff] %v2188
  %2205 = vst [vmem:[#allocation4 + $0x50] sm:$0xff] %v2189
  %2206 = vst [vmem:[#allocation4 + $0x58] sm:$0xff] %v2190
  %2207 = vst [vmem:[#allocation4 + $0x60] sm:$0xff] %v2191
  %2208 = vst [vmem:[#allocation4 + $0x68] sm:$0xff] %v2192
  %2209 = vst [vmem:[#allocation4 + $0x70] sm:$0xff] %v2193
  %2210 = vst [vmem:[#allocation4 + $0x78] sm:$0xff] %v2194
  %v2211 = vld [vmem:[%s6] sm:$0xff]
  %v2212 = vld [vmem:[%s6 + $0x8] sm:$0xff]
  %v2213 = vld [vmem:[%s6 + $0x10] sm:$0xff]
  %v2214 = vld [vmem:[%s6 + $0x18] sm:$0xff]
  %v2215 = vld [vmem:[%s7] sm:$0xff]
  %v2216 = vld [vmem:[%s7 + $0x8] sm:$0xff]
  %v2217 = vld [vmem:[%s7 + $0x10] sm:$0xff]
  %v2218 = vld [vmem:[%s7 + $0x18] sm:$0xff]
  %v2219 = vld [vmem:[#allocation4] sm:$0xff]
  %2220 = vmatprep.subr.mxu0 0.0
  %2221 = vmatpush1.msra.mxu0 %v2211
  %2222 = vmatprep.subr.mxu0 0.0
  %2223 = vmatpush1.msra.mxu0 %v2212
  %2224 = vmatprep.subr.mxu0 0.0
  %2225 = vmatpush1.msra.mxu0 %v2213
  %2226 = vmatprep.subr.mxu0 0.0
  %2227 = vmatpush1.msra.mxu0 %v2214
  %2228 = vmatprep.subr.mxu0 0.0
  %2229 = vmatpush1.msra.mxu0 0.0
  %2230 = vmatprep.subr.mxu0 0.0
  %2231 = vmatpush1.msra.mxu0 0.0
  %2232 = vmatprep.subr.mxu0 0.0
  %2233 = vmatpush1.msra.mxu0 0.0
  %2234 = vmatprep.subr.mxu0 0.0
  %2235 = vmatpush1.msra.mxu0 0.0
  %2236 = vmatprep.subr.mxu0 0.0
  %2237 = vmatpush1.msra.mxu0 0.0
  %2238 = vmatprep.subr.mxu0 0.0
  %2239 = vmatpush1.msra.mxu0 0.0
  %2240 = vmatprep.subr.mxu0 0.0
  %2241 = vmatpush1.msra.mxu0 0.0
  %2242 = vmatprep.subr.mxu0 0.0
  %2243 = vmatpush1.msra.mxu0 0.0
  %2244 = vmatprep.subr.mxu0 0.0
  %2245 = vmatpush1.msra.mxu0 0.0
  %2246 = vmatprep.subr.mxu0 0.0
  %2247 = vmatpush1.msra.mxu0 0.0
  %2248 = vmatprep.subr.mxu0 0.0
  %2249 = vmatpush1.msra.mxu0 0.0
  %2250 = vmatprep.subr.mxu0 0.0
  %2251 = vmatpush1.msra.mxu0 0.0
  %2252 = vmatprep.subr.mxu0 0.0
  %2253 = vmatpush1.msra.mxu0 0.0
  %2254 = vmatprep.subr.mxu0 0.0
  %2255 = vmatpush1.msra.mxu0 0.0
  %2256 = vmatprep.subr.mxu0 0.0
  %2257 = vmatpush1.msra.mxu0 0.0
  %2258 = vmatprep.subr.mxu0 0.0
  %2259 = vmatpush1.msra.mxu0 0.0
  %2260 = vmatprep.subr.mxu0 0.0
  %2261 = vmatpush1.msra.mxu0 0.0
  %2262 = vmatprep.subr.mxu0 0.0
  %2263 = vmatpush1.msra.mxu0 0.0
  %2264 = vmatprep.subr.mxu0 0.0
  %2265 = vmatpush1.msra.mxu0 0.0
  %2266 = vmatprep.subr.mxu0 0.0
  %2267 = vmatpush1.msra.mxu0 0.0
  %2268 = vmatprep.subr.mxu0 0.0
  %2269 = vmatpush1.msra.mxu0 0.0
  %2270 = vmatprep.subr.mxu0 0.0
  %2271 = vmatpush1.msra.mxu0 0.0
  %2272 = vmatprep.subr.mxu0 0.0
  %2273 = vmatpush1.msra.mxu0 0.0
  %2274 = vmatprep.subr.mxu0 0.0
  %2275 = vmatpush1.msra.mxu0 0.0
  %2276 = vmatprep.subr.mxu0 0.0
  %2277 = vmatpush1.msra.mxu0 0.0
  %2278 = vmatprep.subr.mxu0 0.0
  %2279 = vmatpush1.msra.mxu0 0.0
  %2280 = vmatprep.subr.mxu0 0.0
  %2281 = vmatpush1.msra.mxu0 0.0
  %2282 = vmatprep.subr.mxu0 0.0
  %2283 = vmatpush1.msra.mxu0 0.0
  %2284 = vmatprep.mubr.f32.mxu0 0.0
  %2285 = vmatmul.mubr.f32.gmra.mrb[0].mxu0 %v232
  %v2286 = vpop.f32.mrb[0].mxu0
  %v2287 = vadd.f32 0.0, %v2286
  %v2288 = vpop.f32.mrb[0].mxu0
  %2289 = vdwg.mxu0
  %v2290 = vadd.f32 %v2219, %v2287
  %v2291 = vld [vmem:[#allocation4 + $0x78] sm:$0xff]
  %2292 = vmatprep.subr.mxu0 0.0
  %2293 = vmatpush1.msra.mxu0 %v2215
  %2294 = vmatprep.subr.mxu0 0.0
  %2295 = vmatpush1.msra.mxu0 %v2216
  %2296 = vmatprep.subr.mxu0 0.0
  %2297 = vmatpush1.msra.mxu0 %v2217
  %2298 = vmatprep.subr.mxu0 0.0
  %2299 = vmatpush1.msra.mxu0 %v2218
  %2300 = vmatprep.subr.mxu0 0.0
  %2301 = vmatpush1.msra.mxu0 0.0
  %2302 = vmatprep.subr.mxu0 0.0
  %2303 = vmatpush1.msra.mxu0 0.0
  %2304 = vmatprep.subr.mxu0 0.0
  %2305 = vmatpush1.msra.mxu0 0.0
  %2306 = vmatprep.subr.mxu0 0.0
  %2307 = vmatpush1.msra.mxu0 0.0
  %2308 = vmatprep.subr.mxu0 0.0
  %2309 = vmatpush1.msra.mxu0 0.0
  %2310 = vmatprep.subr.mxu0 0.0
  %2311 = vmatpush1.msra.mxu0 0.0
  %2312 = vmatprep.subr.mxu0 0.0
  %2313 = vmatpush1.msra.mxu0 0.0
  %2314 = vmatprep.subr.mxu0 0.0
  %2315 = vmatpush1.msra.mxu0 0.0
  %2316 = vmatprep.subr.mxu0 0.0
  %2317 = vmatpush1.msra.mxu0 0.0
  %2318 = vmatprep.subr.mxu0 0.0
  %2319 = vmatpush1.msra.mxu0 0.0
  %2320 = vmatprep.subr.mxu0 0.0
  %2321 = vmatpush1.msra.mxu0 0.0
  %2322 = vmatprep.subr.mxu0 0.0
  %2323 = vmatpush1.msra.mxu0 0.0
  %2324 = vmatprep.subr.mxu0 0.0
  %2325 = vmatpush1.msra.mxu0 0.0
  %2326 = vmatprep.subr.mxu0 0.0
  %2327 = vmatpush1.msra.mxu0 0.0
  %2328 = vmatprep.subr.mxu0 0.0
  %2329 = vmatpush1.msra.mxu0 0.0
  %2330 = vmatprep.subr.mxu0 0.0
  %2331 = vmatpush1.msra.mxu0 0.0
  %2332 = vmatprep.subr.mxu0 0.0
  %2333 = vmatpush1.msra.mxu0 0.0
  %2334 = vmatprep.subr.mxu0 0.0
  %2335 = vmatpush1.msra.mxu0 0.0
  %2336 = vmatprep.subr.mxu0 0.0
  %2337 = vmatpush1.msra.mxu0 0.0
  %2338 = vmatprep.subr.mxu0 0.0
  %2339 = vmatpush1.msra.mxu0 0.0
  %2340 = vmatprep.subr.mxu0 0.0
  %2341 = vmatpush1.msra.mxu0 0.0
  %2342 = vmatprep.subr.mxu0 0.0
  %2343 = vmatpush1.msra.mxu0 0.0
  %2344 = vmatprep.subr.mxu0 0.0
  %2345 = vmatpush1.msra.mxu0 0.0
  %2346 = vmatprep.subr.mxu0 0.0
  %2347 = vmatpush1.msra.mxu0 0.0
  %2348 = vmatprep.subr.mxu0 0.0
  %2349 = vmatpush1.msra.mxu0 0.0
  %2350 = vmatprep.subr.mxu0 0.0
  %2351 = vmatpush1.msra.mxu0 0.0
  %2352 = vmatprep.subr.mxu0 0.0
  %2353 = vmatpush1.msra.mxu0 0.0
  %2354 = vmatprep.subr.mxu0 0.0
  %2355 = vmatpush1.msra.mxu0 0.0
  %2356 = vmatprep.mubr.f32.mxu0 0.0
  %2357 = vmatmul.mubr.f32.gmra.mrb[0].mxu0 %v232
  %v2358 = vpop.f32.mrb[0].mxu0
  %v2359 = vadd.f32 0.0, %v2358
  %v2360 = vpop.f32.mrb[0].mxu0
  %2361 = vdwg.mxu0
  %v2362 = vadd.f32 %v2291, %v2359
  %v2363 = vmul.f32 %v2290, 0.5
  %v2364 = vsel %vm42, %v2290, %v2363
  %v2365 = vtanh.pop %v2364
  %v2366 = vmul.f32 %v2365, 0.5
  %v2367 = vadd.f32 %v2366, 0.5
  %v2368 = vsel %vm42, %v2365, %v2367
  %v2369 = vmul.f32 %v2362, 0.5
  %v2370 = vsel %vm42, %v2362, %v2369
  %v2371 = vtanh.pop %v2370
  %v2372 = vmul.f32 %v2371, 0.5
  %v2373 = vadd.f32 %v2372, 0.5
  %v2374 = vsel %vm42, %v2371, %v2373
  %v2375 = vmul.f32 %v2368, 0.0
  %2377 = vrot.lane.b32.xlu0 %v2368, 64
  %v2378 = vpop.permute.xlu0 %2377
  %v2380 = vmul.f32 %v2368, %v2378
  %2382 = vrot.lane.b32.xlu0 %v2380, 32
  %v2383 = vpop.permute.xlu0 %2382
  %v2385 = vadd.f32 %v2375, %v2383
  %v2386 = vmul.f32 %v2374, 0.0
  %2388 = vrot.lane.b32.xlu0 %v2374, 64
  %v2389 = vpop.permute.xlu0 %2388
  %v2391 = vmul.f32 %v2374, %v2389
  %2393 = vrot.lane.b32.xlu0 %v2391, 32
  %v2394 = vpop.permute.xlu0 %2393
  %v2396 = vadd.f32 %v2386, %v2394
  %v2397 = vtanh.pop %v2385
  %2399 = vrot.lane.b32.xlu0 %v2397, 64
  %v2400 = vpop.permute.xlu0 %2399
  %v2402 = vmul.f32 %v2368, %v2400
  %v2403 = vtanh.pop %v2396
  %2405 = vrot.lane.b32.xlu0 %v2403, 64
  %v2406 = vpop.permute.xlu0 %2405
  %v2408 = vmul.f32 %v2374, %v2406
  %2410 = vrot.lane.b32.xlu0 %v2402, 32
  %v2411 = vpop.permute.xlu0 %2410
  %2413 = vst.msk [vmem:[#allocation2] sm:$0xff] %vm230, %v2411
  %2415 = vrot.lane.b32.xlu0 %v2408, 32
  %v2416 = vpop.permute.xlu0 %2415
  %2418 = vst.msk [vmem:[#allocation3 + $0x38] sm:$0xff] %vm230, %v2416
  %v2419 = vld [vmem:[#allocation4 + $0x10] sm:$0xff]
  %v2420 = vsel %vm230, %v2411, 0
  %2422 = vmatprep.subr.mxu0 0.0
  %2423 = vmatpush1.msra.mxu0 %v2211
  %2424 = vmatprep.subr.mxu0 0.0
  %2425 = vmatpush1.msra.mxu0 %v2212
  %2426 = vmatprep.subr.mxu0 0.0
  %2427 = vmatpush1.msra.mxu0 %v2213
  %2428 = vmatprep.subr.mxu0 0.0
  %2429 = vmatpush1.msra.mxu0 %v2214
  %2430 = vmatprep.subr.mxu0 0.0
  %2431 = vmatpush1.msra.mxu0 0.0
  %2432 = vmatprep.subr.mxu0 0.0
  %2433 = vmatpush1.msra.mxu0 0.0
  %2434 = vmatprep.subr.mxu0 0.0
  %2435 = vmatpush1.msra.mxu0 0.0
  %2436 = vmatprep.subr.mxu0 0.0
  %2437 = vmatpush1.msra.mxu0 0.0
  %2438 = vmatprep.subr.mxu0 0.0
  %2439 = vmatpush1.msra.mxu0 0.0
  %2440 = vmatprep.subr.mxu0 0.0
  %2441 = vmatpush1.msra.mxu0 0.0
  %2442 = vmatprep.subr.mxu0 0.0
  %2443 = vmatpush1.msra.mxu0 0.0
  %2444 = vmatprep.subr.mxu0 0.0
  %2445 = vmatpush1.msra.mxu0 0.0
  %2446 = vmatprep.subr.mxu0 0.0
  %2447 = vmatpush1.msra.mxu0 0.0
  %2448 = vmatprep.subr.mxu0 0.0
  %2449 = vmatpush1.msra.mxu0 0.0
  %2450 = vmatprep.subr.mxu0 0.0
  %2451 = vmatpush1.msra.mxu0 0.0
  %2452 = vmatprep.subr.mxu0 0.0
  %2453 = vmatpush1.msra.mxu0 0.0
  %2454 = vmatprep.subr.mxu0 0.0
  %2455 = vmatpush1.msra.mxu0 0.0
  %2456 = vmatprep.subr.mxu0 0.0
  %2457 = vmatpush1.msra.mxu0 0.0
  %2458 = vmatprep.subr.mxu0 0.0
  %2459 = vmatpush1.msra.mxu0 0.0
  %2460 = vmatprep.subr.mxu0 0.0
  %2461 = vmatpush1.msra.mxu0 0.0
  %2462 = vmatprep.subr.mxu0 0.0
  %2463 = vmatpush1.msra.mxu0 0.0
  %2464 = vmatprep.subr.mxu0 0.0
  %2465 = vmatpush1.msra.mxu0 0.0
  %2466 = vmatprep.subr.mxu0 0.0
  %2467 = vmatpush1.msra.mxu0 0.0
  %2468 = vmatprep.subr.mxu0 0.0
  %2469 = vmatpush1.msra.mxu0 0.0
  %2470 = vmatprep.subr.mxu0 0.0
  %2471 = vmatpush1.msra.mxu0 0.0
  %2472 = vmatprep.subr.mxu0 0.0
  %2473 = vmatpush1.msra.mxu0 0.0
  %2474 = vmatprep.subr.mxu0 0.0
  %2475 = vmatpush1.msra.mxu0 0.0
  %2476 = vmatprep.subr.mxu0 0.0
  %2477 = vmatpush1.msra.mxu0 0.0
  %2478 = vmatprep.subr.mxu0 0.0
  %2479 = vmatpush1.msra.mxu0 0.0
  %2480 = vmatprep.subr.mxu0 0.0
  %2481 = vmatpush1.msra.mxu0 0.0
  %2482 = vmatprep.subr.mxu0 0.0
  %2483 = vmatpush1.msra.mxu0 0.0
  %2484 = vmatprep.subr.mxu0 0.0
  %2485 = vmatpush1.msra.mxu0 0.0
  %2486 = vmatprep.mubr.f32.mxu0 0.0
  %2487 = vmatmul.mubr.f32.gmra.mrb[0].mxu0 %v2420
  %v2488 = vpop.f32.mrb[0].mxu0
  %v2489 = vadd.f32 0.0, %v2488
  %v2490 = vpop.f32.mrb[0].mxu0
  %2491 = vdwg.mxu0
  %v2492 = vadd.f32 %v2419, %v2489
  %v2493 = vld [vmem:[#allocation4 + $0x68] sm:$0xff]
  %v2494 = vsel %vm230, %v2416, 0
  %2496 = vmatprep.subr.mxu0 0.0
  %2497 = vmatpush1.msra.mxu0 %v2215
  %2498 = vmatprep.subr.mxu0 0.0
  %2499 = vmatpush1.msra.mxu0 %v2216
  %2500 = vmatprep.subr.mxu0 0.0
  %2501 = vmatpush1.msra.mxu0 %v2217
  %2502 = vmatprep.subr.mxu0 0.0
  %2503 = vmatpush1.msra.mxu0 %v2218
  %2504 = vmatprep.subr.mxu0 0.0
  %2505 = vmatpush1.msra.mxu0 0.0
  %2506 = vmatprep.subr.mxu0 0.0
  %2507 = vmatpush1.msra.mxu0 0.0
  %2508 = vmatprep.subr.mxu0 0.0
  %2509 = vmatpush1.msra.mxu0 0.0
  %2510 = vmatprep.subr.mxu0 0.0
  %2511 = vmatpush1.msra.mxu0 0.0
  %2512 = vmatprep.subr.mxu0 0.0
  %2513 = vmatpush1.msra.mxu0 0.0
  %2514 = vmatprep.subr.mxu0 0.0
  %2515 = vmatpush1.msra.mxu0 0.0
  %2516 = vmatprep.subr.mxu0 0.0
  %2517 = vmatpush1.msra.mxu0 0.0
  %2518 = vmatprep.subr.mxu0 0.0
  %2519 = vmatpush1.msra.mxu0 0.0
  %2520 = vmatprep.subr.mxu0 0.0
  %2521 = vmatpush1.msra.mxu0 0.0
  %2522 = vmatprep.subr.mxu0 0.0
  %2523 = vmatpush1.msra.mxu0 0.0
  %2524 = vmatprep.subr.mxu0 0.0
  %2525 = vmatpush1.msra.mxu0 0.0
  %2526 = vmatprep.subr.mxu0 0.0
  %2527 = vmatpush1.msra.mxu0 0.0
  %2528 = vmatprep.subr.mxu0 0.0
  %2529 = vmatpush1.msra.mxu0 0.0
  %2530 = vmatprep.subr.mxu0 0.0
  %2531 = vmatpush1.msra.mxu0 0.0
  %2532 = vmatprep.subr.mxu0 0.0
  %2533 = vmatpush1.msra.mxu0 0.0
  %2534 = vmatprep.subr.mxu0 0.0
  %2535 = vmatpush1.msra.mxu0 0.0
  %2536 = vmatprep.subr.mxu0 0.0
  %2537 = vmatpush1.msra.mxu0 0.0
  %2538 = vmatprep.subr.mxu0 0.0
  %2539 = vmatpush1.msra.mxu0 0.0
  %2540 = vmatprep.subr.mxu0 0.0
  %2541 = vmatpush1.msra.mxu0 0.0
  %2542 = vmatprep.subr.mxu0 0.0
  %2543 = vmatpush1.msra.mxu0 0.0
  %2544 = vmatprep.subr.mxu0 0.0
  %2545 = vmatpush1.msra.mxu0 0.0
  %2546 = vmatprep.subr.mxu0 0.0
  %2547 = vmatpush1.msra.mxu0 0.0
  %2548 = vmatprep.subr.mxu0 0.0
  %2549 = vmatpush1.msra.mxu0 0.0
  %2550 = vmatprep.subr.mxu0 0.0
  %2551 = vmatpush1.msra.mxu0 0.0
  %2552 = vmatprep.subr.mxu0 0.0
  %2553 = vmatpush1.msra.mxu0 0.0
  %2554 = vmatprep.subr.mxu0 0.0
  %2555 = vmatpush1.msra.mxu0 0.0
  %2556 = vmatprep.subr.mxu0 0.0
  %2557 = vmatpush1.msra.mxu0 0.0
  %2558 = vmatprep.subr.mxu0 0.0
  %2559 = vmatpush1.msra.mxu0 0.0
  %2560 = vmatprep.mubr.f32.mxu0 0.0
  %2561 = vmatmul.mubr.f32.gmra.mrb[0].mxu0 %v2494
  %v2562 = vpop.f32.mrb[0].mxu0
  %v2563 = vadd.f32 0.0, %v2562
  %v2564 = vpop.f32.mrb[0].mxu0
  %2565 = vdwg.mxu0
  %v2566 = vadd.f32 %v2493, %v2563
  %v2567 = vmul.f32 %v2492, 0.5
  %v2568 = vsel %vm42, %v2492, %v2567
  %v2569 = vtanh.pop %v2568
  %v2570 = vmul.f32 %v2569, 0.5
  %v2571 = vadd.f32 %v2570, 0.5
  %v2572 = vsel %vm42, %v2569, %v2571
  %v2573 = vmul.f32 %v2566, 0.5
  %v2574 = vsel %vm42, %v2566, %v2573
  %v2575 = vtanh.pop %v2574
  %v2576 = vmul.f32 %v2575, 0.5
  %v2577 = vadd.f32 %v2576, 0.5
  %v2578 = vsel %vm42, %v2575, %v2577
  %v2579 = vmul.f32 %v2572, %v2385
  %2581 = vrot.lane.b32.xlu0 %v2572, 64
  %v2582 = vpop.permute.xlu0 %2581
  %v2584 = vmul.f32 %v2572, %v2582
  %2586 = vrot.lane.b32.xlu0 %v2584, 32
  %v2587 = vpop.permute.xlu0 %2586
  %v2589 = vadd.f32 %v2579, %v2587
  %v2590 = vmul.f32 %v2578, %v2396
  %2592 = vrot.lane.b32.xlu0 %v2578, 64
  %v2593 = vpop.permute.xlu0 %2592
  %v2595 = vmul.f32 %v2578, %v2593
  %2597 = vrot.lane.b32.xlu0 %v2595, 32
  %v2598 = vpop.permute.xlu0 %2597
  %v2600 = vadd.f32 %v2590, %v2598
  %v2601 = vtanh.pop %v2589
  %2603 = vrot.lane.b32.xlu0 %v2601, 64
  %v2604 = vpop.permute.xlu0 %2603
  %v2606 = vmul.f32 %v2572, %v2604
  %v2607 = vtanh.pop %v2600
  %2609 = vrot.lane.b32.xlu0 %v2607, 64
  %v2610 = vpop.permute.xlu0 %2609
  %v2612 = vmul.f32 %v2578, %v2610
  %2614 = vrot.lane.b32.xlu0 %v2606, 32
  %v2615 = vpop.permute.xlu0 %2614
  %2617 = vst.msk [vmem:[#allocation2 + $0x8] sm:$0xff] %vm230, %v2615
  %2619 = vrot.lane.b32.xlu0 %v2612, 32
  %v2620 = vpop.permute.xlu0 %2619
  %2622 = vst.msk [vmem:[#allocation3 + $0x30] sm:$0xff] %vm230, %v2620
  %v2623 = vld [vmem:[#allocation4 + $0x20] sm:$0xff]
  %v2624 = vsel %vm230, %v2615, 0
  %2626 = vmatprep.subr.mxu0 0.0
  %2627 = vmatpush1.msra.mxu0 %v2211
  %2628 = vmatprep.subr.mxu0 0.0
  %2629 = vmatpush1.msra.mxu0 %v2212
  %2630 = vmatprep.subr.mxu0 0.0
  %2631 = vmatpush1.msra.mxu0 %v2213
  %2632 = vmatprep.subr.mxu0 0.0
  %2633 = vmatpush1.msra.mxu0 %v2214
  %2634 = vmatprep.subr.mxu0 0.0
  %2635 = vmatpush1.msra.mxu0 0.0
  %2636 = vmatprep.subr.mxu0 0.0
  %2637 = vmatpush1.msra.mxu0 0.0
  %2638 = vmatprep.subr.mxu0 0.0
  %2639 = vmatpush1.msra.mxu0 0.0
  %2640 = vmatprep.subr.mxu0 0.0
  %2641 = vmatpush1.msra.mxu0 0.0
  %2642 = vmatprep.subr.mxu0 0.0
  %2643 = vmatpush1.msra.mxu0 0.0
  %2644 = vmatprep.subr.mxu0 0.0
  %2645 = vmatpush1.msra.mxu0 0.0
  %2646 = vmatprep.subr.mxu0 0.0
  %2647 = vmatpush1.msra.mxu0 0.0
  %2648 = vmatprep.subr.mxu0 0.0
  %2649 = vmatpush1.msra.mxu0 0.0
  %2650 = vmatprep.subr.mxu0 0.0
  %2651 = vmatpush1.msra.mxu0 0.0
  %2652 = vmatprep.subr.mxu0 0.0
  %2653 = vmatpush1.msra.mxu0 0.0
  %2654 = vmatprep.subr.mxu0 0.0
  %2655 = vmatpush1.msra.mxu0 0.0
  %2656 = vmatprep.subr.mxu0 0.0
  %2657 = vmatpush1.msra.mxu0 0.0
  %2658 = vmatprep.subr.mxu0 0.0
  %2659 = vmatpush1.msra.mxu0 0.0
  %2660 = vmatprep.subr.mxu0 0.0
  %2661 = vmatpush1.msra.mxu0 0.0
  %2662 = vmatprep.subr.mxu0 0.0
  %2663 = vmatpush1.msra.mxu0 0.0
  %2664 = vmatprep.subr.mxu0 0.0
  %2665 = vmatpush1.msra.mxu0 0.0
  %2666 = vmatprep.subr.mxu0 0.0
  %2667 = vmatpush1.msra.mxu0 0.0
  %2668 = vmatprep.subr.mxu0 0.0
  %2669 = vmatpush1.msra.mxu0 0.0
  %2670 = vmatprep.subr.mxu0 0.0
  %2671 = vmatpush1.msra.mxu0 0.0
  %2672 = vmatprep.subr.mxu0 0.0
  %2673 = vmatpush1.msra.mxu0 0.0
  %2674 = vmatprep.subr.mxu0 0.0
  %2675 = vmatpush1.msra.mxu0 0.0
  %2676 = vmatprep.subr.mxu0 0.0
  %2677 = vmatpush1.msra.mxu0 0.0
  %2678 = vmatprep.subr.mxu0 0.0
  %2679 = vmatpush1.msra.mxu0 0.0
  %2680 = vmatprep.subr.mxu0 0.0
  %2681 = vmatpush1.msra.mxu0 0.0
  %2682 = vmatprep.subr.mxu0 0.0
  %2683 = vmatpush1.msra.mxu0 0.0
  %2684 = vmatprep.subr.mxu0 0.0
  %2685 = vmatpush1.msra.mxu0 0.0
  %2686 = vmatprep.subr.mxu0 0.0
  %2687 = vmatpush1.msra.mxu0 0.0
  %2688 = vmatprep.subr.mxu0 0.0
  %2689 = vmatpush1.msra.mxu0 0.0
  %2690 = vmatprep.mubr.f32.mxu0 0.0
  %2691 = vmatmul.mubr.f32.gmra.mrb[0].mxu0 %v2624
  %v2692 = vpop.f32.mrb[0].mxu0
  %v2693 = vadd.f32 0.0, %v2692
  %v2694 = vpop.f32.mrb[0].mxu0
  %2695 = vdwg.mxu0
  %v2696 = vadd.f32 %v2623, %v2693
  %v2697 = vld [vmem:[#allocation4 + $0x58] sm:$0xff]
  %v2698 = vsel %vm230, %v2620, 0
  %2700 = vmatprep.subr.mxu0 0.0
  %2701 = vmatpush1.msra.mxu0 %v2215
  %2702 = vmatprep.subr.mxu0 0.0
  %2703 = vmatpush1.msra.mxu0 %v2216
  %2704 = vmatprep.subr.mxu0 0.0
  %2705 = vmatpush1.msra.mxu0 %v2217
  %2706 = vmatprep.subr.mxu0 0.0
  %2707 = vmatpush1.msra.mxu0 %v2218
  %2708 = vmatprep.subr.mxu0 0.0
  %2709 = vmatpush1.msra.mxu0 0.0
  %2710 = vmatprep.subr.mxu0 0.0
  %2711 = vmatpush1.msra.mxu0 0.0
  %2712 = vmatprep.subr.mxu0 0.0
  %2713 = vmatpush1.msra.mxu0 0.0
  %2714 = vmatprep.subr.mxu0 0.0
  %2715 = vmatpush1.msra.mxu0 0.0
  %2716 = vmatprep.subr.mxu0 0.0
  %2717 = vmatpush1.msra.mxu0 0.0
  %2718 = vmatprep.subr.mxu0 0.0
  %2719 = vmatpush1.msra.mxu0 0.0
  %2720 = vmatprep.subr.mxu0 0.0
  %2721 = vmatpush1.msra.mxu0 0.0
  %2722 = vmatprep.subr.mxu0 0.0
  %2723 = vmatpush1.msra.mxu0 0.0
  %2724 = vmatprep.subr.mxu0 0.0
  %2725 = vmatpush1.msra.mxu0 0.0
  %2726 = vmatprep.subr.mxu0 0.0
  %2727 = vmatpush1.msra.mxu0 0.0
  %2728 = vmatprep.subr.mxu0 0.0
  %2729 = vmatpush1.msra.mxu0 0.0
  %2730 = vmatprep.subr.mxu0 0.0
  %2731 = vmatpush1.msra.mxu0 0.0
  %2732 = vmatprep.subr.mxu0 0.0
  %2733 = vmatpush1.msra.mxu0 0.0
  %2734 = vmatprep.subr.mxu0 0.0
  %2735 = vmatpush1.msra.mxu0 0.0
  %2736 = vmatprep.subr.mxu0 0.0
  %2737 = vmatpush1.msra.mxu0 0.0
  %2738 = vmatprep.subr.mxu0 0.0
  %2739 = vmatpush1.msra.mxu0 0.0
  %2740 = vmatprep.subr.mxu0 0.0
  %2741 = vmatpush1.msra.mxu0 0.0
  %2742 = vmatprep.subr.mxu0 0.0
  %2743 = vmatpush1.msra.mxu0 0.0
  %2744 = vmatprep.subr.mxu0 0.0
  %2745 = vmatpush1.msra.mxu0 0.0
  %2746 = vmatprep.subr.mxu0 0.0
  %2747 = vmatpush1.msra.mxu0 0.0
  %2748 = vmatprep.subr.mxu0 0.0
  %2749 = vmatpush1.msra.mxu0 0.0
  %2750 = vmatprep.subr.mxu0 0.0
  %2751 = vmatpush1.msra.mxu0 0.0
  %2752 = vmatprep.subr.mxu0 0.0
  %2753 = vmatpush1.msra.mxu0 0.0
  %2754 = vmatprep.subr.mxu0 0.0
  %2755 = vmatpush1.msra.mxu0 0.0
  %2756 = vmatprep.subr.mxu0 0.0
  %2757 = vmatpush1.msra.mxu0 0.0
  %2758 = vmatprep.subr.mxu0 0.0
  %2759 = vmatpush1.msra.mxu0 0.0
  %2760 = vmatprep.subr.mxu0 0.0
  %2761 = vmatpush1.msra.mxu0 0.0
  %2762 = vmatprep.subr.mxu0 0.0
  %2763 = vmatpush1.msra.mxu0 0.0
  %2764 = vmatprep.mubr.f32.mxu0 0.0
  %2765 = vmatmul.mubr.f32.gmra.mrb[0].mxu0 %v2698
  %v2766 = vpop.f32.mrb[0].mxu0
  %v2767 = vadd.f32 0.0, %v2766
  %v2768 = vpop.f32.mrb[0].mxu0
  %2769 = vdwg.mxu0
  %v2770 = vadd.f32 %v2697, %v2767
  %v2771 = vmul.f32 %v2696, 0.5
  %v2772 = vsel %vm42, %v2696, %v2771
  %v2773 = vtanh.pop %v2772
  %v2774 = vmul.f32 %v2773, 0.5
  %v2775 = vadd.f32 %v2774, 0.5
  %v2776 = vsel %vm42, %v2773, %v2775
  %v2777 = vmul.f32 %v2770, 0.5
  %v2778 = vsel %vm42, %v2770, %v2777
  %v2779 = vtanh.pop %v2778
  %v2780 = vmul.f32 %v2779, 0.5
  %v2781 = vadd.f32 %v2780, 0.5
  %v2782 = vsel %vm42, %v2779, %v2781
  %v2783 = vmul.f32 %v2776, %v2589
  %2785 = vrot.lane.b32.xlu0 %v2776, 64
  %v2786 = vpop.permute.xlu0 %2785
  %v2788 = vmul.f32 %v2776, %v2786
  %2790 = vrot.lane.b32.xlu0 %v2788, 32
  %v2791 = vpop.permute.xlu0 %2790
  %v2793 = vadd.f32 %v2783, %v2791
  %v2794 = vmul.f32 %v2782, %v2600
  %2796 = vrot.lane.b32.xlu0 %v2782, 64
  %v2797 = vpop.permute.xlu0 %2796
  %v2799 = vmul.f32 %v2782, %v2797
  %2801 = vrot.lane.b32.xlu0 %v2799, 32
  %v2802 = vpop.permute.xlu0 %2801
  %v2804 = vadd.f32 %v2794, %v2802
  %v2805 = vtanh.pop %v2793
  %2807 = vrot.lane.b32.xlu0 %v2805, 64
  %v2808 = vpop.permute.xlu0 %2807
  %v2810 = vmul.f32 %v2776, %v2808
  %v2811 = vtanh.pop %v2804
  %2813 = vrot.lane.b32.xlu0 %v2811, 64
  %v2814 = vpop.permute.xlu0 %2813
  %v2816 = vmul.f32 %v2782, %v2814
  %2818 = vrot.lane.b32.xlu0 %v2810, 32
  %v2819 = vpop.permute.xlu0 %2818
  %2821 = vst.msk [vmem:[#allocation2 + $0x10] sm:$0xff] %vm230, %v2819
  %2823 = vrot.lane.b32.xlu0 %v2816, 32
  %v2824 = vpop.permute.xlu0 %2823
  %2826 = vst.msk [vmem:[#allocation3 + $0x28] sm:$0xff] %vm230, %v2824
  %v2827 = vld [vmem:[#allocation4 + $0x30] sm:$0xff]
  %v2828 = vsel %vm230, %v2819, 0
  %2830 = vmatprep.subr.mxu0 0.0
  %2831 = vmatpush1.msra.mxu0 %v2211
  %2832 = vmatprep.subr.mxu0 0.0
  %2833 = vmatpush1.msra.mxu0 %v2212
  %2834 = vmatprep.subr.mxu0 0.0
  %2835 = vmatpush1.msra.mxu0 %v2213
  %2836 = vmatprep.subr.mxu0 0.0
  %2837 = vmatpush1.msra.mxu0 %v2214
  %2838 = vmatprep.subr.mxu0 0.0
  %2839 = vmatpush1.msra.mxu0 0.0
  %2840 = vmatprep.subr.mxu0 0.0
  %2841 = vmatpush1.msra.mxu0 0.0
  %2842 = vmatprep.subr.mxu0 0.0
  %2843 = vmatpush1.msra.mxu0 0.0
  %2844 = vmatprep.subr.mxu0 0.0
  %2845 = vmatpush1.msra.mxu0 0.0
  %2846 = vmatprep.subr.mxu0 0.0
  %2847 = vmatpush1.msra.mxu0 0.0
  %2848 = vmatprep.subr.mxu0 0.0
  %2849 = vmatpush1.msra.mxu0 0.0
  %2850 = vmatprep.subr.mxu0 0.0
  %2851 = vmatpush1.msra.mxu0 0.0
  %2852 = vmatprep.subr.mxu0 0.0
  %2853 = vmatpush1.msra.mxu0 0.0
  %2854 = vmatprep.subr.mxu0 0.0
  %2855 = vmatpush1.msra.mxu0 0.0
  %2856 = vmatprep.subr.mxu0 0.0
  %2857 = vmatpush1.msra.mxu0 0.0
  %2858 = vmatprep.subr.mxu0 0.0
  %2859 = vmatpush1.msra.mxu0 0.0
  %2860 = vmatprep.subr.mxu0 0.0
  %2861 = vmatpush1.msra.mxu0 0.0
  %2862 = vmatprep.subr.mxu0 0.0
  %2863 = vmatpush1.msra.mxu0 0.0
  %2864 = vmatprep.subr.mxu0 0.0
  %2865 = vmatpush1.msra.mxu0 0.0
  %2866 = vmatprep.subr.mxu0 0.0
  %2867 = vmatpush1.msra.mxu0 0.0
  %2868 = vmatprep.subr.mxu0 0.0
  %2869 = vmatpush1.msra.mxu0 0.0
  %2870 = vmatprep.subr.mxu0 0.0
  %2871 = vmatpush1.msra.mxu0 0.0
  %2872 = vmatprep.subr.mxu0 0.0
  %2873 = vmatpush1.msra.mxu0 0.0
  %2874 = vmatprep.subr.mxu0 0.0
  %2875 = vmatpush1.msra.mxu0 0.0
  %2876 = vmatprep.subr.mxu0 0.0
  %2877 = vmatpush1.msra.mxu0 0.0
  %2878 = vmatprep.subr.mxu0 0.0
  %2879 = vmatpush1.msra.mxu0 0.0
  %2880 = vmatprep.subr.mxu0 0.0
  %2881 = vmatpush1.msra.mxu0 0.0
  %2882 = vmatprep.subr.mxu0 0.0
  %2883 = vmatpush1.msra.mxu0 0.0
  %2884 = vmatprep.subr.mxu0 0.0
  %2885 = vmatpush1.msra.mxu0 0.0
  %2886 = vmatprep.subr.mxu0 0.0
  %2887 = vmatpush1.msra.mxu0 0.0
  %2888 = vmatprep.subr.mxu0 0.0
  %2889 = vmatpush1.msra.mxu0 0.0
  %2890 = vmatprep.subr.mxu0 0.0
  %2891 = vmatpush1.msra.mxu0 0.0
  %2892 = vmatprep.subr.mxu0 0.0
  %2893 = vmatpush1.msra.mxu0 0.0
  %2894 = vmatprep.mubr.f32.mxu0 0.0
  %2895 = vmatmul.mubr.f32.gmra.mrb[0].mxu0 %v2828
  %v2896 = vpop.f32.mrb[0].mxu0
  %v2897 = vadd.f32 0.0, %v2896
  %v2898 = vpop.f32.mrb[0].mxu0
  %2899 = vdwg.mxu0
  %v2900 = vadd.f32 %v2827, %v2897
  %v2901 = vld [vmem:[#allocation4 + $0x48] sm:$0xff]
  %v2902 = vsel %vm230, %v2824, 0
  %2904 = vmatprep.subr.mxu0 0.0
  %2905 = vmatpush1.msra.mxu0 %v2215
  %2906 = vmatprep.subr.mxu0 0.0
  %2907 = vmatpush1.msra.mxu0 %v2216
  %2908 = vmatprep.subr.mxu0 0.0
  %2909 = vmatpush1.msra.mxu0 %v2217
  %2910 = vmatprep.subr.mxu0 0.0
  %2911 = vmatpush1.msra.mxu0 %v2218
  %2912 = vmatprep.subr.mxu0 0.0
  %2913 = vmatpush1.msra.mxu0 0.0
  %2914 = vmatprep.subr.mxu0 0.0
  %2915 = vmatpush1.msra.mxu0 0.0
  %2916 = vmatprep.subr.mxu0 0.0
  %2917 = vmatpush1.msra.mxu0 0.0
  %2918 = vmatprep.subr.mxu0 0.0
  %2919 = vmatpush1.msra.mxu0 0.0
  %2920 = vmatprep.subr.mxu0 0.0
  %2921 = vmatpush1.msra.mxu0 0.0
  %2922 = vmatprep.subr.mxu0 0.0
  %2923 = vmatpush1.msra.mxu0 0.0
  %2924 = vmatprep.subr.mxu0 0.0
  %2925 = vmatpush1.msra.mxu0 0.0
  %2926 = vmatprep.subr.mxu0 0.0
  %2927 = vmatpush1.msra.mxu0 0.0
  %2928 = vmatprep.subr.mxu0 0.0
  %2929 = vmatpush1.msra.mxu0 0.0
  %2930 = vmatprep.subr.mxu0 0.0
  %2931 = vmatpush1.msra.mxu0 0.0
  %2932 = vmatprep.subr.mxu0 0.0
  %2933 = vmatpush1.msra.mxu0 0.0
  %2934 = vmatprep.subr.mxu0 0.0
  %2935 = vmatpush1.msra.mxu0 0.0
  %2936 = vmatprep.subr.mxu0 0.0
  %2937 = vmatpush1.msra.mxu0 0.0
  %2938 = vmatprep.subr.mxu0 0.0
  %2939 = vmatpush1.msra.mxu0 0.0
  %2940 = vmatprep.subr.mxu0 0.0
  %2941 = vmatpush1.msra.mxu0 0.0
  %2942 = vmatprep.subr.mxu0 0.0
  %2943 = vmatpush1.msra.mxu0 0.0
  %2944 = vmatprep.subr.mxu0 0.0
  %2945 = vmatpush1.msra.mxu0 0.0
  %2946 = vmatprep.subr.mxu0 0.0
  %2947 = vmatpush1.msra.mxu0 0.0
  %2948 = vmatprep.subr.mxu0 0.0
  %2949 = vmatpush1.msra.mxu0 0.0
  %2950 = vmatprep.subr.mxu0 0.0
  %2951 = vmatpush1.msra.mxu0 0.0
  %2952 = vmatprep.subr.mxu0 0.0
  %2953 = vmatpush1.msra.mxu0 0.0
  %2954 = vmatprep.subr.mxu0 0.0
  %2955 = vmatpush1.msra.mxu0 0.0
  %2956 = vmatprep.subr.mxu0 0.0
  %2957 = vmatpush1.msra.mxu0 0.0
  %2958 = vmatprep.subr.mxu0 0.0
  %2959 = vmatpush1.msra.mxu0 0.0
  %2960 = vmatprep.subr.mxu0 0.0
  %2961 = vmatpush1.msra.mxu0 0.0
  %2962 = vmatprep.subr.mxu0 0.0
  %2963 = vmatpush1.msra.mxu0 0.0
  %2964 = vmatprep.subr.mxu0 0.0
  %2965 = vmatpush1.msra.mxu0 0.0
  %2966 = vmatprep.subr.mxu0 0.0
  %2967 = vmatpush1.msra.mxu0 0.0
  %2968 = vmatprep.mubr.f32.mxu0 0.0
  %2969 = vmatmul.mubr.f32.gmra.mrb[0].mxu0 %v2902
  %v2970 = vpop.f32.mrb[0].mxu0
  %v2971 = vadd.f32 0.0, %v2970
  %v2972 = vpop.f32.mrb[0].mxu0
  %2973 = vdwg.mxu0
  %v2974 = vadd.f32 %v2901, %v2971
  %v2975 = vmul.f32 %v2900, 0.5
  %v2976 = vsel %vm42, %v2900, %v2975
  %v2977 = vtanh.pop %v2976
  %v2978 = vmul.f32 %v2977, 0.5
  %v2979 = vadd.f32 %v2978, 0.5
  %v2980 = vsel %vm42, %v2977, %v2979
  %v2981 = vmul.f32 %v2974, 0.5
  %v2982 = vsel %vm42, %v2974, %v2981
  %v2983 = vtanh.pop %v2982
  %v2984 = vmul.f32 %v2983, 0.5
  %v2985 = vadd.f32 %v2984, 0.5
  %v2986 = vsel %vm42, %v2983, %v2985
  %v2987 = vmul.f32 %v2980, %v2793
  %2989 = vrot.lane.b32.xlu0 %v2980, 64
  %v2990 = vpop.permute.xlu0 %2989
  %v2992 = vmul.f32 %v2980, %v2990
  %2994 = vrot.lane.b32.xlu0 %v2992, 32
  %v2995 = vpop.permute.xlu0 %2994
  %v2997 = vadd.f32 %v2987, %v2995
  %v2998 = vmul.f32 %v2986, %v2804
  %3000 = vrot.lane.b32.xlu0 %v2986, 64
  %v3001 = vpop.permute.xlu0 %3000
  %v3003 = vmul.f32 %v2986, %v3001
  %3005 = vrot.lane.b32.xlu0 %v3003, 32
  %v3006 = vpop.permute.xlu0 %3005
  %v3008 = vadd.f32 %v2998, %v3006
  %v3009 = vtanh.pop %v2997
  %3011 = vrot.lane.b32.xlu0 %v3009, 64
  %v3012 = vpop.permute.xlu0 %3011
  %v3014 = vmul.f32 %v2980, %v3012
  %v3015 = vtanh.pop %v3008
  %3017 = vrot.lane.b32.xlu0 %v3015, 64
  %v3018 = vpop.permute.xlu0 %3017
  %v3020 = vmul.f32 %v2986, %v3018
  %3022 = vrot.lane.b32.xlu0 %v3014, 32
  %v3023 = vpop.permute.xlu0 %3022
  %3025 = vst.msk [vmem:[#allocation2 + $0x18] sm:$0xff] %vm230, %v3023
  %3027 = vrot.lane.b32.xlu0 %v3020, 32
  %v3028 = vpop.permute.xlu0 %3027
  %3030 = vst.msk [vmem:[#allocation3 + $0x20] sm:$0xff] %vm230, %v3028
  %v3031 = vld [vmem:[#allocation4 + $0x40] sm:$0xff]
  %v3032 = vsel %vm230, %v3023, 0
  %3034 = vmatprep.subr.mxu0 0.0
  %3035 = vmatpush1.msra.mxu0 %v2211
  %3036 = vmatprep.subr.mxu0 0.0
  %3037 = vmatpush1.msra.mxu0 %v2212
  %3038 = vmatprep.subr.mxu0 0.0
  %3039 = vmatpush1.msra.mxu0 %v2213
  %3040 = vmatprep.subr.mxu0 0.0
  %3041 = vmatpush1.msra.mxu0 %v2214
  %3042 = vmatprep.subr.mxu0 0.0
  %3043 = vmatpush1.msra.mxu0 0.0
  %3044 = vmatprep.subr.mxu0 0.0
  %3045 = vmatpush1.msra.mxu0 0.0
  %3046 = vmatprep.subr.mxu0 0.0
  %3047 = vmatpush1.msra.mxu0 0.0
  %3048 = vmatprep.subr.mxu0 0.0
  %3049 = vmatpush1.msra.mxu0 0.0
  %3050 = vmatprep.subr.mxu0 0.0
  %3051 = vmatpush1.msra.mxu0 0.0
  %3052 = vmatprep.subr.mxu0 0.0
  %3053 = vmatpush1.msra.mxu0 0.0
  %3054 = vmatprep.subr.mxu0 0.0
  %3055 = vmatpush1.msra.mxu0 0.0
  %3056 = vmatprep.subr.mxu0 0.0
  %3057 = vmatpush1.msra.mxu0 0.0
  %3058 = vmatprep.subr.mxu0 0.0
  %3059 = vmatpush1.msra.mxu0 0.0
  %3060 = vmatprep.subr.mxu0 0.0
  %3061 = vmatpush1.msra.mxu0 0.0
  %3062 = vmatprep.subr.mxu0 0.0
  %3063 = vmatpush1.msra.mxu0 0.0
  %3064 = vmatprep.subr.mxu0 0.0
  %3065 = vmatpush1.msra.mxu0 0.0
  %3066 = vmatprep.subr.mxu0 0.0
  %3067 = vmatpush1.msra.mxu0 0.0
  %3068 = vmatprep.subr.mxu0 0.0
  %3069 = vmatpush1.msra.mxu0 0.0
  %3070 = vmatprep.subr.mxu0 0.0
  %3071 = vmatpush1.msra.mxu0 0.0
  %3072 = vmatprep.subr.mxu0 0.0
  %3073 = vmatpush1.msra.mxu0 0.0
  %3074 = vmatprep.subr.mxu0 0.0
  %3075 = vmatpush1.msra.mxu0 0.0
  %3076 = vmatprep.subr.mxu0 0.0
  %3077 = vmatpush1.msra.mxu0 0.0
  %3078 = vmatprep.subr.mxu0 0.0
  %3079 = vmatpush1.msra.mxu0 0.0
  %3080 = vmatprep.subr.mxu0 0.0
  %3081 = vmatpush1.msra.mxu0 0.0
  %3082 = vmatprep.subr.mxu0 0.0
  %3083 = vmatpush1.msra.mxu0 0.0
  %3084 = vmatprep.subr.mxu0 0.0
  %3085 = vmatpush1.msra.mxu0 0.0
  %3086 = vmatprep.subr.mxu0 0.0
  %3087 = vmatpush1.msra.mxu0 0.0
  %3088 = vmatprep.subr.mxu0 0.0
  %3089 = vmatpush1.msra.mxu0 0.0
  %3090 = vmatprep.subr.mxu0 0.0
  %3091 = vmatpush1.msra.mxu0 0.0
  %3092 = vmatprep.subr.mxu0 0.0
  %3093 = vmatpush1.msra.mxu0 0.0
  %3094 = vmatprep.subr.mxu0 0.0
  %3095 = vmatpush1.msra.mxu0 0.0
  %3096 = vmatprep.subr.mxu0 0.0
  %3097 = vmatpush1.msra.mxu0 0.0
  %3098 = vmatprep.mubr.f32.mxu0 0.0
  %3099 = vmatmul.mubr.f32.gmra.mrb[0].mxu0 %v3032
  %v3100 = vpop.f32.mrb[0].mxu0
  %v3101 = vadd.f32 0.0, %v3100
  %v3102 = vpop.f32.mrb[0].mxu0
  %3103 = vdwg.mxu0
  %v3104 = vadd.f32 %v3031, %v3101
  %v3105 = vld [vmem:[#allocation4 + $0x38] sm:$0xff]
  %v3106 = vsel %vm230, %v3028, 0
  %3108 = vmatprep.subr.mxu0 0.0
  %3109 = vmatpush1.msra.mxu0 %v2215
  %3110 = vmatprep.subr.mxu0 0.0
  %3111 = vmatpush1.msra.mxu0 %v2216
  %3112 = vmatprep.subr.mxu0 0.0
  %3113 = vmatpush1.msra.mxu0 %v2217
  %3114 = vmatprep.subr.mxu0 0.0
  %3115 = vmatpush1.msra.mxu0 %v2218
  %3116 = vmatprep.subr.mxu0 0.0
  %3117 = vmatpush1.msra.mxu0 0.0
  %3118 = vmatprep.subr.mxu0 0.0
  %3119 = vmatpush1.msra.mxu0 0.0
  %3120 = vmatprep.subr.mxu0 0.0
  %3121 = vmatpush1.msra.mxu0 0.0
  %3122 = vmatprep.subr.mxu0 0.0
  %3123 = vmatpush1.msra.mxu0 0.0
  %3124 = vmatprep.subr.mxu0 0.0
  %3125 = vmatpush1.msra.mxu0 0.0
  %3126 = vmatprep.subr.mxu0 0.0
  %3127 = vmatpush1.msra.mxu0 0.0
  %3128 = vmatprep.subr.mxu0 0.0
  %3129 = vmatpush1.msra.mxu0 0.0
  %3130 = vmatprep.subr.mxu0 0.0
  %3131 = vmatpush1.msra.mxu0 0.0
  %3132 = vmatprep.subr.mxu0 0.0
  %3133 = vmatpush1.msra.mxu0 0.0
  %3134 = vmatprep.subr.mxu0 0.0
  %3135 = vmatpush1.msra.mxu0 0.0
  %3136 = vmatprep.subr.mxu0 0.0
  %3137 = vmatpush1.msra.mxu0 0.0
  %3138 = vmatprep.subr.mxu0 0.0
  %3139 = vmatpush1.msra.mxu0 0.0
  %3140 = vmatprep.subr.mxu0 0.0
  %3141 = vmatpush1.msra.mxu0 0.0
  %3142 = vmatprep.subr.mxu0 0.0
  %3143 = vmatpush1.msra.mxu0 0.0
  %3144 = vmatprep.subr.mxu0 0.0
  %3145 = vmatpush1.msra.mxu0 0.0
  %3146 = vmatprep.subr.mxu0 0.0
  %3147 = vmatpush1.msra.mxu0 0.0
  %3148 = vmatprep.subr.mxu0 0.0
  %3149 = vmatpush1.msra.mxu0 0.0
  %3150 = vmatprep.subr.mxu0 0.0
  %3151 = vmatpush1.msra.mxu0 0.0
  %3152 = vmatprep.subr.mxu0 0.0
  %3153 = vmatpush1.msra.mxu0 0.0
  %3154 = vmatprep.subr.mxu0 0.0
  %3155 = vmatpush1.msra.mxu0 0.0
  %3156 = vmatprep.subr.mxu0 0.0
  %3157 = vmatpush1.msra.mxu0 0.0
  %3158 = vmatprep.subr.mxu0 0.0
  %3159 = vmatpush1.msra.mxu0 0.0
  %3160 = vmatprep.subr.mxu0 0.0
  %3161 = vmatpush1.msra.mxu0 0.0
  %3162 = vmatprep.subr.mxu0 0.0
  %3163 = vmatpush1.msra.mxu0 0.0
  %3164 = vmatprep.subr.mxu0 0.0
  %3165 = vmatpush1.msra.mxu0 0.0
  %3166 = vmatprep.subr.mxu0 0.0
  %3167 = vmatpush1.msra.mxu0 0.0
  %3168 = vmatprep.subr.mxu0 0.0
  %3169 = vmatpush1.msra.mxu0 0.0
  %3170 = vmatprep.subr.mxu0 0.0
  %3171 = vmatpush1.msra.mxu0 0.0
  %3172 = vmatprep.mubr.f32.mxu0 0.0
  %3173 = vmatmul.mubr.f32.gmra.mrb[0].mxu0 %v3106
  %v3174 = vpop.f32.mrb[0].mxu0
  %v3175 = vadd.f32 0.0, %v3174
  %v3176 = vpop.f32.mrb[0].mxu0
  %3177 = vdwg.mxu0
  %v3178 = vadd.f32 %v3105, %v3175
  %v3179 = vmul.f32 %v3104, 0.5
  %v3180 = vsel %vm42, %v3104, %v3179
  %v3181 = vtanh.pop %v3180
  %v3182 = vmul.f32 %v3181, 0.5
  %v3183 = vadd.f32 %v3182, 0.5
  %v3184 = vsel %vm42, %v3181, %v3183
  %v3185 = vmul.f32 %v3178, 0.5
  %v3186 = vsel %vm42, %v3178, %v3185
  %v3187 = vtanh.pop %v3186
  %v3188 = vmul.f32 %v3187, 0.5
  %v3189 = vadd.f32 %v3188, 0.5
  %v3190 = vsel %vm42, %v3187, %v3189
  %v3191 = vmul.f32 %v3184, %v2997
  %3193 = vrot.lane.b32.xlu0 %v3184, 64
  %v3194 = vpop.permute.xlu0 %3193
  %v3196 = vmul.f32 %v3184, %v3194
  %3198 = vrot.lane.b32.xlu0 %v3196, 32
  %v3199 = vpop.permute.xlu0 %3198
  %v3201 = vadd.f32 %v3191, %v3199
  %v3202 = vmul.f32 %v3190, %v3008
  %3204 = vrot.lane.b32.xlu0 %v3190, 64
  %v3205 = vpop.permute.xlu0 %3204
  %v3207 = vmul.f32 %v3190, %v3205
  %3209 = vrot.lane.b32.xlu0 %v3207, 32
  %v3210 = vpop.permute.xlu0 %3209
  %v3212 = vadd.f32 %v3202, %v3210
  %v3213 = vtanh.pop %v3201
  %3215 = vrot.lane.b32.xlu0 %v3213, 64
  %v3216 = vpop.permute.xlu0 %3215
  %v3218 = vmul.f32 %v3184, %v3216
  %v3219 = vtanh.pop %v3212
  %3221 = vrot.lane.b32.xlu0 %v3219, 64
  %v3222 = vpop.permute.xlu0 %3221
  %v3224 = vmul.f32 %v3190, %v3222
  %3226 = vrot.lane.b32.xlu0 %v3218, 32
  %v3227 = vpop.permute.xlu0 %3226
  %3229 = vst.msk [vmem:[#allocation2 + $0x20] sm:$0xff] %vm230, %v3227
  %3231 = vrot.lane.b32.xlu0 %v3224, 32
  %v3232 = vpop.permute.xlu0 %3231
  %3234 = vst.msk [vmem:[#allocation3 + $0x18] sm:$0xff] %vm230, %v3232
  %v3235 = vld [vmem:[#allocation4 + $0x50] sm:$0xff]
  %v3236 = vsel %vm230, %v3227, 0
  %3238 = vmatprep.subr.mxu0 0.0
  %3239 = vmatpush1.msra.mxu0 %v2211
  %3240 = vmatprep.subr.mxu0 0.0
  %3241 = vmatpush1.msra.mxu0 %v2212
  %3242 = vmatprep.subr.mxu0 0.0
  %3243 = vmatpush1.msra.mxu0 %v2213
  %3244 = vmatprep.subr.mxu0 0.0
  %3245 = vmatpush1.msra.mxu0 %v2214
  %3246 = vmatprep.subr.mxu0 0.0
  %3247 = vmatpush1.msra.mxu0 0.0
  %3248 = vmatprep.subr.mxu0 0.0
  %3249 = vmatpush1.msra.mxu0 0.0
  %3250 = vmatprep.subr.mxu0 0.0
  %3251 = vmatpush1.msra.mxu0 0.0
  %3252 = vmatprep.subr.mxu0 0.0
  %3253 = vmatpush1.msra.mxu0 0.0
  %3254 = vmatprep.subr.mxu0 0.0
  %3255 = vmatpush1.msra.mxu0 0.0
  %3256 = vmatprep.subr.mxu0 0.0
  %3257 = vmatpush1.msra.mxu0 0.0
  %3258 = vmatprep.subr.mxu0 0.0
  %3259 = vmatpush1.msra.mxu0 0.0
  %3260 = vmatprep.subr.mxu0 0.0
  %3261 = vmatpush1.msra.mxu0 0.0
  %3262 = vmatprep.subr.mxu0 0.0
  %3263 = vmatpush1.msra.mxu0 0.0
  %3264 = vmatprep.subr.mxu0 0.0
  %3265 = vmatpush1.msra.mxu0 0.0
  %3266 = vmatprep.subr.mxu0 0.0
  %3267 = vmatpush1.msra.mxu0 0.0
  %3268 = vmatprep.subr.mxu0 0.0
  %3269 = vmatpush1.msra.mxu0 0.0
  %3270 = vmatprep.subr.mxu0 0.0
  %3271 = vmatpush1.msra.mxu0 0.0
  %3272 = vmatprep.subr.mxu0 0.0
  %3273 = vmatpush1.msra.mxu0 0.0
  %3274 = vmatprep.subr.mxu0 0.0
  %3275 = vmatpush1.msra.mxu0 0.0
  %3276 = vmatprep.subr.mxu0 0.0
  %3277 = vmatpush1.msra.mxu0 0.0
  %3278 = vmatprep.subr.mxu0 0.0
  %3279 = vmatpush1.msra.mxu0 0.0
  %3280 = vmatprep.subr.mxu0 0.0
  %3281 = vmatpush1.msra.mxu0 0.0
  %3282 = vmatprep.subr.mxu0 0.0
  %3283 = vmatpush1.msra.mxu0 0.0
  %3284 = vmatprep.subr.mxu0 0.0
  %3285 = vmatpush1.msra.mxu0 0.0
  %3286 = vmatprep.subr.mxu0 0.0
  %3287 = vmatpush1.msra.mxu0 0.0
  %3288 = vmatprep.subr.mxu0 0.0
  %3289 = vmatpush1.msra.mxu0 0.0
  %3290 = vmatprep.subr.mxu0 0.0
  %3291 = vmatpush1.msra.mxu0 0.0
  %3292 = vmatprep.subr.mxu0 0.0
  %3293 = vmatpush1.msra.mxu0 0.0
  %3294 = vmatprep.subr.mxu0 0.0
  %3295 = vmatpush1.msra.mxu0 0.0
  %3296 = vmatprep.subr.mxu0 0.0
  %3297 = vmatpush1.msra.mxu0 0.0
  %3298 = vmatprep.subr.mxu0 0.0
  %3299 = vmatpush1.msra.mxu0 0.0
  %3300 = vmatprep.subr.mxu0 0.0
  %3301 = vmatpush1.msra.mxu0 0.0
  %3302 = vmatprep.mubr.f32.mxu0 0.0
  %3303 = vmatmul.mubr.f32.gmra.mrb[0].mxu0 %v3236
  %v3304 = vpop.f32.mrb[0].mxu0
  %v3305 = vadd.f32 0.0, %v3304
  %v3306 = vpop.f32.mrb[0].mxu0
  %3307 = vdwg.mxu0
  %v3308 = vadd.f32 %v3235, %v3305
  %v3309 = vld [vmem:[#allocation4 + $0x28] sm:$0xff]
  %v3310 = vsel %vm230, %v3232, 0
  %3312 = vmatprep.subr.mxu0 0.0
  %3313 = vmatpush1.msra.mxu0 %v2215
  %3314 = vmatprep.subr.mxu0 0.0
  %3315 = vmatpush1.msra.mxu0 %v2216
  %3316 = vmatprep.subr.mxu0 0.0
  %3317 = vmatpush1.msra.mxu0 %v2217
  %3318 = vmatprep.subr.mxu0 0.0
  %3319 = vmatpush1.msra.mxu0 %v2218
  %3320 = vmatprep.subr.mxu0 0.0
  %3321 = vmatpush1.msra.mxu0 0.0
  %3322 = vmatprep.subr.mxu0 0.0
  %3323 = vmatpush1.msra.mxu0 0.0
  %3324 = vmatprep.subr.mxu0 0.0
  %3325 = vmatpush1.msra.mxu0 0.0
  %3326 = vmatprep.subr.mxu0 0.0
  %3327 = vmatpush1.msra.mxu0 0.0
  %3328 = vmatprep.subr.mxu0 0.0
  %3329 = vmatpush1.msra.mxu0 0.0
  %3330 = vmatprep.subr.mxu0 0.0
  %3331 = vmatpush1.msra.mxu0 0.0
  %3332 = vmatprep.subr.mxu0 0.0
  %3333 = vmatpush1.msra.mxu0 0.0
  %3334 = vmatprep.subr.mxu0 0.0
  %3335 = vmatpush1.msra.mxu0 0.0
  %3336 = vmatprep.subr.mxu0 0.0
  %3337 = vmatpush1.msra.mxu0 0.0
  %3338 = vmatprep.subr.mxu0 0.0
  %3339 = vmatpush1.msra.mxu0 0.0
  %3340 = vmatprep.subr.mxu0 0.0
  %3341 = vmatpush1.msra.mxu0 0.0
  %3342 = vmatprep.subr.mxu0 0.0
  %3343 = vmatpush1.msra.mxu0 0.0
  %3344 = vmatprep.subr.mxu0 0.0
  %3345 = vmatpush1.msra.mxu0 0.0
  %3346 = vmatprep.subr.mxu0 0.0
  %3347 = vmatpush1.msra.mxu0 0.0
  %3348 = vmatprep.subr.mxu0 0.0
  %3349 = vmatpush1.msra.mxu0 0.0
  %3350 = vmatprep.subr.mxu0 0.0
  %3351 = vmatpush1.msra.mxu0 0.0
  %3352 = vmatprep.subr.mxu0 0.0
  %3353 = vmatpush1.msra.mxu0 0.0
  %3354 = vmatprep.subr.mxu0 0.0
  %3355 = vmatpush1.msra.mxu0 0.0
  %3356 = vmatprep.subr.mxu0 0.0
  %3357 = vmatpush1.msra.mxu0 0.0
  %3358 = vmatprep.subr.mxu0 0.0
  %3359 = vmatpush1.msra.mxu0 0.0
  %3360 = vmatprep.subr.mxu0 0.0
  %3361 = vmatpush1.msra.mxu0 0.0
  %3362 = vmatprep.subr.mxu0 0.0
  %3363 = vmatpush1.msra.mxu0 0.0
  %3364 = vmatprep.subr.mxu0 0.0
  %3365 = vmatpush1.msra.mxu0 0.0
  %3366 = vmatprep.subr.mxu0 0.0
  %3367 = vmatpush1.msra.mxu0 0.0
  %3368 = vmatprep.subr.mxu0 0.0
  %3369 = vmatpush1.msra.mxu0 0.0
  %3370 = vmatprep.subr.mxu0 0.0
  %3371 = vmatpush1.msra.mxu0 0.0
  %3372 = vmatprep.subr.mxu0 0.0
  %3373 = vmatpush1.msra.mxu0 0.0
  %3374 = vmatprep.subr.mxu0 0.0
  %3375 = vmatpush1.msra.mxu0 0.0
  %3376 = vmatprep.mubr.f32.mxu0 0.0
  %3377 = vmatmul.mubr.f32.gmra.mrb[0].mxu0 %v3310
  %v3378 = vpop.f32.mrb[0].mxu0
  %v3379 = vadd.f32 0.0, %v3378
  %v3380 = vpop.f32.mrb[0].mxu0
  %3381 = vdwg.mxu0
  %v3382 = vadd.f32 %v3309, %v3379
  %v3383 = vmul.f32 %v3308, 0.5
  %v3384 = vsel %vm42, %v3308, %v3383
  %v3385 = vtanh.pop %v3384
  %v3386 = vmul.f32 %v3385, 0.5
  %v3387 = vadd.f32 %v3386, 0.5
  %v3388 = vsel %vm42, %v3385, %v3387
  %v3389 = vmul.f32 %v3382, 0.5
  %v3390 = vsel %vm42, %v3382, %v3389
  %v3391 = vtanh.pop %v3390
  %v3392 = vmul.f32 %v3391, 0.5
  %v3393 = vadd.f32 %v3392, 0.5
  %v3394 = vsel %vm42, %v3391, %v3393
  %v3395 = vmul.f32 %v3388, %v3201
  %3397 = vrot.lane.b32.xlu0 %v3388, 64
  %v3398 = vpop.permute.xlu0 %3397
  %v3400 = vmul.f32 %v3388, %v3398
  %3402 = vrot.lane.b32.xlu0 %v3400, 32
  %v3403 = vpop.permute.xlu0 %3402
  %v3405 = vadd.f32 %v3395, %v3403
  %v3406 = vmul.f32 %v3394, %v3212
  %3408 = vrot.lane.b32.xlu0 %v3394, 64
  %v3409 = vpop.permute.xlu0 %3408
  %v3411 = vmul.f32 %v3394, %v3409
  %3413 = vrot.lane.b32.xlu0 %v3411, 32
  %v3414 = vpop.permute.xlu0 %3413
  %v3416 = vadd.f32 %v3406, %v3414
  %v3417 = vtanh.pop %v3405
  %3419 = vrot.lane.b32.xlu0 %v3417, 64
  %v3420 = vpop.permute.xlu0 %3419
  %v3422 = vmul.f32 %v3388, %v3420
  %v3423 = vtanh.pop %v3416
  %3425 = vrot.lane.b32.xlu0 %v3423, 64
  %v3426 = vpop.permute.xlu0 %3425
  %v3428 = vmul.f32 %v3394, %v3426
  %3430 = vrot.lane.b32.xlu0 %v3422, 32
  %v3431 = vpop.permute.xlu0 %3430
  %3433 = vst.msk [vmem:[#allocation2 + $0x28] sm:$0xff] %vm230, %v3431
  %3435 = vrot.lane.b32.xlu0 %v3428, 32
  %v3436 = vpop.permute.xlu0 %3435
  %3438 = vst.msk [vmem:[#allocation3 + $0x10] sm:$0xff] %vm230, %v3436
  %v3439 = vld [vmem:[#allocation4 + $0x60] sm:$0xff]
  %v3440 = vsel %vm230, %v3431, 0
  %3442 = vmatprep.subr.mxu0 0.0
  %3443 = vmatpush1.msra.mxu0 %v2211
  %3444 = vmatprep.subr.mxu0 0.0
  %3445 = vmatpush1.msra.mxu0 %v2212
  %3446 = vmatprep.subr.mxu0 0.0
  %3447 = vmatpush1.msra.mxu0 %v2213
  %3448 = vmatprep.subr.mxu0 0.0
  %3449 = vmatpush1.msra.mxu0 %v2214
  %3450 = vmatprep.subr.mxu0 0.0
  %3451 = vmatpush1.msra.mxu0 0.0
  %3452 = vmatprep.subr.mxu0 0.0
  %3453 = vmatpush1.msra.mxu0 0.0
  %3454 = vmatprep.subr.mxu0 0.0
  %3455 = vmatpush1.msra.mxu0 0.0
  %3456 = vmatprep.subr.mxu0 0.0
  %3457 = vmatpush1.msra.mxu0 0.0
  %3458 = vmatprep.subr.mxu0 0.0
  %3459 = vmatpush1.msra.mxu0 0.0
  %3460 = vmatprep.subr.mxu0 0.0
  %3461 = vmatpush1.msra.mxu0 0.0
  %3462 = vmatprep.subr.mxu0 0.0
  %3463 = vmatpush1.msra.mxu0 0.0
  %3464 = vmatprep.subr.mxu0 0.0
  %3465 = vmatpush1.msra.mxu0 0.0
  %3466 = vmatprep.subr.mxu0 0.0
  %3467 = vmatpush1.msra.mxu0 0.0
  %3468 = vmatprep.subr.mxu0 0.0
  %3469 = vmatpush1.msra.mxu0 0.0
  %3470 = vmatprep.subr.mxu0 0.0
  %3471 = vmatpush1.msra.mxu0 0.0
  %3472 = vmatprep.subr.mxu0 0.0
  %3473 = vmatpush1.msra.mxu0 0.0
  %3474 = vmatprep.subr.mxu0 0.0
  %3475 = vmatpush1.msra.mxu0 0.0
  %3476 = vmatprep.subr.mxu0 0.0
  %3477 = vmatpush1.msra.mxu0 0.0
  %3478 = vmatprep.subr.mxu0 0.0
  %3479 = vmatpush1.msra.mxu0 0.0
  %3480 = vmatprep.subr.mxu0 0.0
  %3481 = vmatpush1.msra.mxu0 0.0
  %3482 = vmatprep.subr.mxu0 0.0
  %3483 = vmatpush1.msra.mxu0 0.0
  %3484 = vmatprep.subr.mxu0 0.0
  %3485 = vmatpush1.msra.mxu0 0.0
  %3486 = vmatprep.subr.mxu0 0.0
  %3487 = vmatpush1.msra.mxu0 0.0
  %3488 = vmatprep.subr.mxu0 0.0
  %3489 = vmatpush1.msra.mxu0 0.0
  %3490 = vmatprep.subr.mxu0 0.0
  %3491 = vmatpush1.msra.mxu0 0.0
  %3492 = vmatprep.subr.mxu0 0.0
  %3493 = vmatpush1.msra.mxu0 0.0
  %3494 = vmatprep.subr.mxu0 0.0
  %3495 = vmatpush1.msra.mxu0 0.0
  %3496 = vmatprep.subr.mxu0 0.0
  %3497 = vmatpush1.msra.mxu0 0.0
  %3498 = vmatprep.subr.mxu0 0.0
  %3499 = vmatpush1.msra.mxu0 0.0
  %3500 = vmatprep.subr.mxu0 0.0
  %3501 = vmatpush1.msra.mxu0 0.0
  %3502 = vmatprep.subr.mxu0 0.0
  %3503 = vmatpush1.msra.mxu0 0.0
  %3504 = vmatprep.subr.mxu0 0.0
  %3505 = vmatpush1.msra.mxu0 0.0
  %3506 = vmatprep.mubr.f32.mxu0 0.0
  %3507 = vmatmul.mubr.f32.gmra.mrb[0].mxu0 %v3440
  %v3508 = vpop.f32.mrb[0].mxu0
  %v3509 = vadd.f32 0.0, %v3508
  %v3510 = vpop.f32.mrb[0].mxu0
  %3511 = vdwg.mxu0
  %v3512 = vadd.f32 %v3439, %v3509
  %v3513 = vld [vmem:[#allocation4 + $0x18] sm:$0xff]
  %v3514 = vsel %vm230, %v3436, 0
  %3516 = vmatprep.subr.mxu0 0.0
  %3517 = vmatpush1.msra.mxu0 %v2215
  %3518 = vmatprep.subr.mxu0 0.0
  %3519 = vmatpush1.msra.mxu0 %v2216
  %3520 = vmatprep.subr.mxu0 0.0
  %3521 = vmatpush1.msra.mxu0 %v2217
  %3522 = vmatprep.subr.mxu0 0.0
  %3523 = vmatpush1.msra.mxu0 %v2218
  %3524 = vmatprep.subr.mxu0 0.0
  %3525 = vmatpush1.msra.mxu0 0.0
  %3526 = vmatprep.subr.mxu0 0.0
  %3527 = vmatpush1.msra.mxu0 0.0
  %3528 = vmatprep.subr.mxu0 0.0
  %3529 = vmatpush1.msra.mxu0 0.0
  %3530 = vmatprep.subr.mxu0 0.0
  %3531 = vmatpush1.msra.mxu0 0.0
  %3532 = vmatprep.subr.mxu0 0.0
  %3533 = vmatpush1.msra.mxu0 0.0
  %3534 = vmatprep.subr.mxu0 0.0
  %3535 = vmatpush1.msra.mxu0 0.0
  %3536 = vmatprep.subr.mxu0 0.0
  %3537 = vmatpush1.msra.mxu0 0.0
  %3538 = vmatprep.subr.mxu0 0.0
  %3539 = vmatpush1.msra.mxu0 0.0
  %3540 = vmatprep.subr.mxu0 0.0
  %3541 = vmatpush1.msra.mxu0 0.0
  %3542 = vmatprep.subr.mxu0 0.0
  %3543 = vmatpush1.msra.mxu0 0.0
  %3544 = vmatprep.subr.mxu0 0.0
  %3545 = vmatpush1.msra.mxu0 0.0
  %3546 = vmatprep.subr.mxu0 0.0
  %3547 = vmatpush1.msra.mxu0 0.0
  %3548 = vmatprep.subr.mxu0 0.0
  %3549 = vmatpush1.msra.mxu0 0.0
  %3550 = vmatprep.subr.mxu0 0.0
  %3551 = vmatpush1.msra.mxu0 0.0
  %3552 = vmatprep.subr.mxu0 0.0
  %3553 = vmatpush1.msra.mxu0 0.0
  %3554 = vmatprep.subr.mxu0 0.0
  %3555 = vmatpush1.msra.mxu0 0.0
  %3556 = vmatprep.subr.mxu0 0.0
  %3557 = vmatpush1.msra.mxu0 0.0
  %3558 = vmatprep.subr.mxu0 0.0
  %3559 = vmatpush1.msra.mxu0 0.0
  %3560 = vmatprep.subr.mxu0 0.0
  %3561 = vmatpush1.msra.mxu0 0.0
  %3562 = vmatprep.subr.mxu0 0.0
  %3563 = vmatpush1.msra.mxu0 0.0
  %3564 = vmatprep.subr.mxu0 0.0
  %3565 = vmatpush1.msra.mxu0 0.0
  %3566 = vmatprep.subr.mxu0 0.0
  %3567 = vmatpush1.msra.mxu0 0.0
  %3568 = vmatprep.subr.mxu0 0.0
  %3569 = vmatpush1.msra.mxu0 0.0
  %3570 = vmatprep.subr.mxu0 0.0
  %3571 = vmatpush1.msra.mxu0 0.0
  %3572 = vmatprep.subr.mxu0 0.0
  %3573 = vmatpush1.msra.mxu0 0.0
  %3574 = vmatprep.subr.mxu0 0.0
  %3575 = vmatpush1.msra.mxu0 0.0
  %3576 = vmatprep.subr.mxu0 0.0
  %3577 = vmatpush1.msra.mxu0 0.0
  %3578 = vmatprep.subr.mxu0 0.0
  %3579 = vmatpush1.msra.mxu0 0.0
  %3580 = vmatprep.mubr.f32.mxu0 0.0
  %3581 = vmatmul.mubr.f32.gmra.mrb[0].mxu0 %v3514
  %v3582 = vpop.f32.mrb[0].mxu0
  %v3583 = vadd.f32 0.0, %v3582
  %v3584 = vpop.f32.mrb[0].mxu0
  %3585 = vdwg.mxu0
  %v3586 = vadd.f32 %v3513, %v3583
  %v3587 = vmul.f32 %v3512, 0.5
  %v3588 = vsel %vm42, %v3512, %v3587
  %v3589 = vtanh.pop %v3588
  %v3590 = vmul.f32 %v3589, 0.5
  %v3591 = vadd.f32 %v3590, 0.5
  %v3592 = vsel %vm42, %v3589, %v3591
  %v3593 = vmul.f32 %v3586, 0.5
  %v3594 = vsel %vm42, %v3586, %v3593
  %v3595 = vtanh.pop %v3594
  %v3596 = vmul.f32 %v3595, 0.5
  %v3597 = vadd.f32 %v3596, 0.5
  %v3598 = vsel %vm42, %v3595, %v3597
  %v3599 = vmul.f32 %v3592, %v3405
  %3601 = vrot.lane.b32.xlu0 %v3592, 64
  %v3602 = vpop.permute.xlu0 %3601
  %v3604 = vmul.f32 %v3592, %v3602
  %3606 = vrot.lane.b32.xlu0 %v3604, 32
  %v3607 = vpop.permute.xlu0 %3606
  %v3609 = vadd.f32 %v3599, %v3607
  %v3610 = vmul.f32 %v3598, %v3416
  %3612 = vrot.lane.b32.xlu0 %v3598, 64
  %v3613 = vpop.permute.xlu0 %3612
  %v3615 = vmul.f32 %v3598, %v3613
  %3617 = vrot.lane.b32.xlu0 %v3615, 32
  %v3618 = vpop.permute.xlu0 %3617
  %v3620 = vadd.f32 %v3610, %v3618
  %v3621 = vtanh.pop %v3609
  %3623 = vrot.lane.b32.xlu0 %v3621, 64
  %v3624 = vpop.permute.xlu0 %3623
  %v3626 = vmul.f32 %v3592, %v3624
  %v3627 = vtanh.pop %v3620
  %3629 = vrot.lane.b32.xlu0 %v3627, 64
  %v3630 = vpop.permute.xlu0 %3629
  %v3632 = vmul.f32 %v3598, %v3630
  %3634 = vrot.lane.b32.xlu0 %v3626, 32
  %v3635 = vpop.permute.xlu0 %3634
  %3637 = vst.msk [vmem:[#allocation2 + $0x30] sm:$0xff] %vm230, %v3635
  %3639 = vrot.lane.b32.xlu0 %v3632, 32
  %v3640 = vpop.permute.xlu0 %3639
  %3642 = vst.msk [vmem:[#allocation3 + $0x8] sm:$0xff] %vm230, %v3640
  %v3643 = vld [vmem:[#allocation4 + $0x70] sm:$0xff]
  %v3644 = vsel %vm230, %v3635, 0
  %3646 = vmatprep.subr.mxu0 0.0
  %3647 = vmatpush1.msra.mxu0 %v2211
  %3648 = vmatprep.subr.mxu0 0.0
  %3649 = vmatpush1.msra.mxu0 %v2212
  %3650 = vmatprep.subr.mxu0 0.0
  %3651 = vmatpush1.msra.mxu0 %v2213
  %3652 = vmatprep.subr.mxu0 0.0
  %3653 = vmatpush1.msra.mxu0 %v2214
  %3654 = vmatprep.subr.mxu0 0.0
  %3655 = vmatpush1.msra.mxu0 0.0
  %3656 = vmatprep.subr.mxu0 0.0
  %3657 = vmatpush1.msra.mxu0 0.0
  %3658 = vmatprep.subr.mxu0 0.0
  %3659 = vmatpush1.msra.mxu0 0.0
  %3660 = vmatprep.subr.mxu0 0.0
  %3661 = vmatpush1.msra.mxu0 0.0
  %3662 = vmatprep.subr.mxu0 0.0
  %3663 = vmatpush1.msra.mxu0 0.0
  %3664 = vmatprep.subr.mxu0 0.0
  %3665 = vmatpush1.msra.mxu0 0.0
  %3666 = vmatprep.subr.mxu0 0.0
  %3667 = vmatpush1.msra.mxu0 0.0
  %3668 = vmatprep.subr.mxu0 0.0
  %3669 = vmatpush1.msra.mxu0 0.0
  %3670 = vmatprep.subr.mxu0 0.0
  %3671 = vmatpush1.msra.mxu0 0.0
  %3672 = vmatprep.subr.mxu0 0.0
  %3673 = vmatpush1.msra.mxu0 0.0
  %3674 = vmatprep.subr.mxu0 0.0
  %3675 = vmatpush1.msra.mxu0 0.0
  %3676 = vmatprep.subr.mxu0 0.0
  %3677 = vmatpush1.msra.mxu0 0.0
  %3678 = vmatprep.subr.mxu0 0.0
  %3679 = vmatpush1.msra.mxu0 0.0
  %3680 = vmatprep.subr.mxu0 0.0
  %3681 = vmatpush1.msra.mxu0 0.0
  %3682 = vmatprep.subr.mxu0 0.0
  %3683 = vmatpush1.msra.mxu0 0.0
  %3684 = vmatprep.subr.mxu0 0.0
  %3685 = vmatpush1.msra.mxu0 0.0
  %3686 = vmatprep.subr.mxu0 0.0
  %3687 = vmatpush1.msra.mxu0 0.0
  %3688 = vmatprep.subr.mxu0 0.0
  %3689 = vmatpush1.msra.mxu0 0.0
  %3690 = vmatprep.subr.mxu0 0.0
  %3691 = vmatpush1.msra.mxu0 0.0
  %3692 = vmatprep.subr.mxu0 0.0
  %3693 = vmatpush1.msra.mxu0 0.0
  %3694 = vmatprep.subr.mxu0 0.0
  %3695 = vmatpush1.msra.mxu0 0.0
  %3696 = vmatprep.subr.mxu0 0.0
  %3697 = vmatpush1.msra.mxu0 0.0
  %3698 = vmatprep.subr.mxu0 0.0
  %3699 = vmatpush1.msra.mxu0 0.0
  %3700 = vmatprep.subr.mxu0 0.0
  %3701 = vmatpush1.msra.mxu0 0.0
  %3702 = vmatprep.subr.mxu0 0.0
  %3703 = vmatpush1.msra.mxu0 0.0
  %3704 = vmatprep.subr.mxu0 0.0
  %3705 = vmatpush1.msra.mxu0 0.0
  %3706 = vmatprep.subr.mxu0 0.0
  %3707 = vmatpush1.msra.mxu0 0.0
  %3708 = vmatprep.subr.mxu0 0.0
  %3709 = vmatpush1.msra.mxu0 0.0
  %3710 = vmatprep.mubr.f32.mxu0 0.0
  %3711 = vmatmul.mubr.f32.gmra.mrb[0].mxu0 %v3644
  %v3712 = vpop.f32.mrb[0].mxu0
  %v3713 = vadd.f32 0.0, %v3712
  %v3714 = vpop.f32.mrb[0].mxu0
  %3715 = vdwg.mxu0
  %v3716 = vadd.f32 %v3643, %v3713
  %v3717 = vld [vmem:[#allocation4 + $0x8] sm:$0xff]
  %v3718 = vsel %vm230, %v3640, 0
  %3720 = vmatprep.subr.mxu0 0.0
  %3721 = vmatpush1.msra.mxu0 %v2215
  %3722 = vmatprep.subr.mxu0 0.0
  %3723 = vmatpush1.msra.mxu0 %v2216
  %3724 = vmatprep.subr.mxu0 0.0
  %3725 = vmatpush1.msra.mxu0 %v2217
  %3726 = vmatprep.subr.mxu0 0.0
  %3727 = vmatpush1.msra.mxu0 %v2218
  %3728 = vmatprep.subr.mxu0 0.0
  %3729 = vmatpush1.msra.mxu0 0.0
  %3730 = vmatprep.subr.mxu0 0.0
  %3731 = vmatpush1.msra.mxu0 0.0
  %3732 = vmatprep.subr.mxu0 0.0
  %3733 = vmatpush1.msra.mxu0 0.0
  %3734 = vmatprep.subr.mxu0 0.0
  %3735 = vmatpush1.msra.mxu0 0.0
  %3736 = vmatprep.subr.mxu0 0.0
  %3737 = vmatpush1.msra.mxu0 0.0
  %3738 = vmatprep.subr.mxu0 0.0
  %3739 = vmatpush1.msra.mxu0 0.0
  %3740 = vmatprep.subr.mxu0 0.0
  %3741 = vmatpush1.msra.mxu0 0.0
  %3742 = vmatprep.subr.mxu0 0.0
  %3743 = vmatpush1.msra.mxu0 0.0
  %3744 = vmatprep.subr.mxu0 0.0
  %3745 = vmatpush1.msra.mxu0 0.0
  %3746 = vmatprep.subr.mxu0 0.0
  %3747 = vmatpush1.msra.mxu0 0.0
  %3748 = vmatprep.subr.mxu0 0.0
  %3749 = vmatpush1.msra.mxu0 0.0
  %3750 = vmatprep.subr.mxu0 0.0
  %3751 = vmatpush1.msra.mxu0 0.0
  %3752 = vmatprep.subr.mxu0 0.0
  %3753 = vmatpush1.msra.mxu0 0.0
  %3754 = vmatprep.subr.mxu0 0.0
  %3755 = vmatpush1.msra.mxu0 0.0
  %3756 = vmatprep.subr.mxu0 0.0
  %3757 = vmatpush1.msra.mxu0 0.0
  %3758 = vmatprep.subr.mxu0 0.0
  %3759 = vmatpush1.msra.mxu0 0.0
  %3760 = vmatprep.subr.mxu0 0.0
  %3761 = vmatpush1.msra.mxu0 0.0
  %3762 = vmatprep.subr.mxu0 0.0
  %3763 = vmatpush1.msra.mxu0 0.0
  %3764 = vmatprep.subr.mxu0 0.0
  %3765 = vmatpush1.msra.mxu0 0.0
  %3766 = vmatprep.subr.mxu0 0.0
  %3767 = vmatpush1.msra.mxu0 0.0
  %3768 = vmatprep.subr.mxu0 0.0
  %3769 = vmatpush1.msra.mxu0 0.0
  %3770 = vmatprep.subr.mxu0 0.0
  %3771 = vmatpush1.msra.mxu0 0.0
  %3772 = vmatprep.subr.mxu0 0.0
  %3773 = vmatpush1.msra.mxu0 0.0
  %3774 = vmatprep.subr.mxu0 0.0
  %3775 = vmatpush1.msra.mxu0 0.0
  %3776 = vmatprep.subr.mxu0 0.0
  %3777 = vmatpush1.msra.mxu0 0.0
  %3778 = vmatprep.subr.mxu0 0.0
  %3779 = vmatpush1.msra.mxu0 0.0
  %3780 = vmatprep.subr.mxu0 0.0
  %3781 = vmatpush1.msra.mxu0 0.0
  %3782 = vmatprep.subr.mxu0 0.0
  %3783 = vmatpush1.msra.mxu0 0.0
  %3784 = vmatprep.mubr.f32.mxu0 0.0
  %3785 = vmatmul.mubr.f32.gmra.mrb[0].mxu0 %v3718
  %v3786 = vpop.f32.mrb[0].mxu0
  %v3787 = vadd.f32 0.0, %v3786
  %v3788 = vpop.f32.mrb[0].mxu0
  %3789 = vdwg.mxu0
  %v3790 = vadd.f32 %v3717, %v3787
  %v3791 = vmul.f32 %v3716, 0.5
  %v3792 = vsel %vm42, %v3716, %v3791
  %v3793 = vtanh.pop %v3792
  %v3794 = vmul.f32 %v3793, 0.5
  %v3795 = vadd.f32 %v3794, 0.5
  %v3796 = vsel %vm42, %v3793, %v3795
  %v3797 = vmul.f32 %v3790, 0.5
  %v3798 = vsel %vm42, %v3790, %v3797
  %v3799 = vtanh.pop %v3798
  %v3800 = vmul.f32 %v3799, 0.5
  %v3801 = vadd.f32 %v3800, 0.5
  %v3802 = vsel %vm42, %v3799, %v3801
  %v3803 = vmul.f32 %v3796, %v3609
  %3805 = vrot.lane.b32.xlu0 %v3796, 64
  %v3806 = vpop.permute.xlu0 %3805
  %v3808 = vmul.f32 %v3796, %v3806
  %3810 = vrot.lane.b32.xlu0 %v3808, 32
  %v3811 = vpop.permute.xlu0 %3810
  %v3813 = vadd.f32 %v3803, %v3811
  %v3814 = vmul.f32 %v3802, %v3620
  %3816 = vrot.lane.b32.xlu0 %v3802, 64
  %v3817 = vpop.permute.xlu0 %3816
  %v3819 = vmul.f32 %v3802, %v3817
  %3821 = vrot.lane.b32.xlu0 %v3819, 32
  %v3822 = vpop.permute.xlu0 %3821
  %v3824 = vadd.f32 %v3814, %v3822
  %v3825 = vtanh.pop %v3813
  %3827 = vrot.lane.b32.xlu0 %v3825, 64
  %v3828 = vpop.permute.xlu0 %3827
  %v3830 = vmul.f32 %v3796, %v3828
  %v3831 = vtanh.pop %v3824
  %3833 = vrot.lane.b32.xlu0 %v3831, 64
  %v3834 = vpop.permute.xlu0 %3833
  %v3836 = vmul.f32 %v3802, %v3834
  %3838 = vrot.lane.b32.xlu0 %v3830, 32
  %v3839 = vpop.permute.xlu0 %3838
  %3841 = vst.msk [vmem:[#allocation2 + $0x38] sm:$0xff] %vm230, %v3839
  %3843 = vrot.lane.b32.xlu0 %v3836, 32
  %v3844 = vpop.permute.xlu0 %3843
  %3846 = vst.msk [vmem:[#allocation3] sm:$0xff] %vm230, %v3844
  %v3847 = vld [vmem:[#allocation2] sm:$0xff]
  %v3848 = vld [vmem:[#allocation2 + $0x8] sm:$0xff]
  %v3849 = vld [vmem:[#allocation2 + $0x10] sm:$0xff]
  %v3850 = vld [vmem:[#allocation2 + $0x18] sm:$0xff]
  %v3851 = vld [vmem:[#allocation2 + $0x20] sm:$0xff]
  %v3852 = vld [vmem:[#allocation2 + $0x28] sm:$0xff]
  %v3853 = vld [vmem:[#allocation2 + $0x30] sm:$0xff]
  %v3854 = vld [vmem:[#allocation2 + $0x38] sm:$0xff]
  %v3855 = vld [vmem:[%s9] sm:$0xff]
  %v3856 = vld [vmem:[%s9 + $0x8] sm:$0xff]
  %v3857 = vld [vmem:[%s9 + $0x10] sm:$0xff]
  %v3858 = vld [vmem:[%s9 + $0x18] sm:$0xff]
  %v3859 = vld [vmem:[#allocation3] sm:$0xff]
  %v3860 = vld [vmem:[#allocation3 + $0x8] sm:$0xff]
  %v3861 = vld [vmem:[#allocation3 + $0x10] sm:$0xff]
  %v3862 = vld [vmem:[#allocation3 + $0x18] sm:$0xff]
  %v3863 = vld [vmem:[#allocation3 + $0x20] sm:$0xff]
  %v3864 = vld [vmem:[#allocation3 + $0x28] sm:$0xff]
  %v3865 = vld [vmem:[#allocation3 + $0x30] sm:$0xff]
  %v3866 = vld [vmem:[#allocation3 + $0x38] sm:$0xff]
  %v3867 = vld [vmem:[%s9 + $0x20] sm:$0xff]
  %v3868 = vld [vmem:[%s9 + $0x28] sm:$0xff]
  %v3869 = vld [vmem:[%s9 + $0x30] sm:$0xff]
  %v3870 = vld [vmem:[%s9 + $0x38] sm:$0xff]
  %v3872 = vsel %vm230, %v3859, 0
  %v3875 = vsel %vm230, %v3860, 0
  %v3878 = vsel %vm230, %v3861, 0
  %v3881 = vsel %vm230, %v3862, 0
  %v3884 = vsel %vm230, %v3863, 0
  %v3887 = vsel %vm230, %v3864, 0
  %v3890 = vsel %vm230, %v3865, 0
  %v3893 = vsel %vm230, %v3866, 0
  %3895 = vmatprep.subr.mxu0 0.0
  %3896 = vmatpush1.msra.mxu0 %v3867
  %3897 = vmatprep.subr.mxu0 0.0
  %3898 = vmatpush1.msra.mxu0 %v3868
  %3899 = vmatprep.subr.mxu0 0.0
  %3900 = vmatpush1.msra.mxu0 %v3869
  %3901 = vmatprep.subr.mxu0 0.0
  %3902 = vmatpush1.msra.mxu0 %v3870
  %3903 = vmatprep.subr.mxu0 0.0
  %3904 = vmatpush1.msra.mxu0 0.0
  %3905 = vmatprep.subr.mxu0 0.0
  %3906 = vmatpush1.msra.mxu0 0.0
  %3907 = vmatprep.subr.mxu0 0.0
  %3908 = vmatpush1.msra.mxu0 0.0
  %3909 = vmatprep.subr.mxu0 0.0
  %3910 = vmatpush1.msra.mxu0 0.0
  %3911 = vmatprep.subr.mxu0 0.0
  %3912 = vmatpush1.msra.mxu0 0.0
  %3913 = vmatprep.subr.mxu0 0.0
  %3914 = vmatpush1.msra.mxu0 0.0
  %3915 = vmatprep.subr.mxu0 0.0
  %3916 = vmatpush1.msra.mxu0 0.0
  %3917 = vmatprep.subr.mxu0 0.0
  %3918 = vmatpush1.msra.mxu0 0.0
  %3919 = vmatprep.subr.mxu0 0.0
  %3920 = vmatpush1.msra.mxu0 0.0
  %3921 = vmatprep.subr.mxu0 0.0
  %3922 = vmatpush1.msra.mxu0 0.0
  %3923 = vmatprep.subr.mxu0 0.0
  %3924 = vmatpush1.msra.mxu0 0.0
  %3925 = vmatprep.subr.mxu0 0.0
  %3926 = vmatpush1.msra.mxu0 0.0
  %3927 = vmatprep.subr.mxu0 0.0
  %3928 = vmatpush1.msra.mxu0 0.0
  %3929 = vmatprep.subr.mxu0 0.0
  %3930 = vmatpush1.msra.mxu0 0.0
  %3931 = vmatprep.subr.mxu0 0.0
  %3932 = vmatpush1.msra.mxu0 0.0
  %3933 = vmatprep.subr.mxu0 0.0
  %3934 = vmatpush1.msra.mxu0 0.0
  %3935 = vmatprep.subr.mxu0 0.0
  %3936 = vmatpush1.msra.mxu0 0.0
  %3937 = vmatprep.subr.mxu0 0.0
  %3938 = vmatpush1.msra.mxu0 0.0
  %3939 = vmatprep.subr.mxu0 0.0
  %3940 = vmatpush1.msra.mxu0 0.0
  %3941 = vmatprep.subr.mxu0 0.0
  %3942 = vmatpush1.msra.mxu0 0.0
  %3943 = vmatprep.subr.mxu0 0.0
  %3944 = vmatpush1.msra.mxu0 0.0
  %3945 = vmatprep.subr.mxu0 0.0
  %3946 = vmatpush1.msra.mxu0 0.0
  %3947 = vmatprep.subr.mxu0 0.0
  %3948 = vmatpush1.msra.mxu0 0.0
  %3949 = vmatprep.subr.mxu0 0.0
  %3950 = vmatpush1.msra.mxu0 0.0
  %3951 = vmatprep.subr.mxu0 0.0
  %3952 = vmatpush1.msra.mxu0 0.0
  %3953 = vmatprep.subr.mxu0 0.0
  %3954 = vmatpush1.msra.mxu0 0.0
  %3955 = vmatprep.subr.mxu0 0.0
  %3956 = vmatpush1.msra.mxu0 0.0
  %3957 = vmatprep.subr.mxu0 0.0
  %3958 = vmatpush1.msra.mxu0 0.0
  %3959 = vmatprep.mubr.f32.mxu0 0.0
  %3960 = vmatmul.mubr.f32.gmra.mrb[0].mxu0 %v3872
  %v3961 = vpop.f32.mrb[0].mxu0
  %v3962 = vadd.f32 0.0, %v3961
  %v3963 = vpop.f32.mrb[0].mxu0
  %3964 = vmatprep.mubr.f32.mxu0 0.0
  %3965 = vmatmul.mubr.f32.gmra.mrb[0].mxu0 %v3875
  %v3966 = vpop.f32.mrb[0].mxu0
  %v3967 = vadd.f32 0.0, %v3966
  %v3968 = vpop.f32.mrb[0].mxu0
  %3969 = vmatprep.mubr.f32.mxu0 0.0
  %3970 = vmatmul.mubr.f32.gmra.mrb[0].mxu0 %v3878
  %v3971 = vpop.f32.mrb[0].mxu0
  %v3972 = vadd.f32 0.0, %v3971
  %v3973 = vpop.f32.mrb[0].mxu0
  %3974 = vmatprep.mubr.f32.mxu0 0.0
  %3975 = vmatmul.mubr.f32.gmra.mrb[0].mxu0 %v3881
  %v3976 = vpop.f32.mrb[0].mxu0
  %v3977 = vadd.f32 0.0, %v3976
  %v3978 = vpop.f32.mrb[0].mxu0
  %3979 = vmatprep.mubr.f32.mxu0 0.0
  %3980 = vmatmul.mubr.f32.gmra.mrb[0].mxu0 %v3884
  %v3981 = vpop.f32.mrb[0].mxu0
  %v3982 = vadd.f32 0.0, %v3981
  %v3983 = vpop.f32.mrb[0].mxu0
  %3984 = vmatprep.mubr.f32.mxu0 0.0
  %3985 = vmatmul.mubr.f32.gmra.mrb[0].mxu0 %v3887
  %v3986 = vpop.f32.mrb[0].mxu0
  %v3987 = vadd.f32 0.0, %v3986
  %v3988 = vpop.f32.mrb[0].mxu0
  %3989 = vmatprep.mubr.f32.mxu0 0.0
  %3990 = vmatmul.mubr.f32.gmra.mrb[0].mxu0 %v3890
  %v3991 = vpop.f32.mrb[0].mxu0
  %v3992 = vadd.f32 0.0, %v3991
  %v3993 = vpop.f32.mrb[0].mxu0
  %3994 = vmatprep.mubr.f32.mxu0 0.0
  %3995 = vmatmul.mubr.f32.gmra.mrb[0].mxu0 %v3893
  %v3996 = vpop.f32.mrb[0].mxu0
  %v3997 = vadd.f32 0.0, %v3996
  %v3998 = vpop.f32.mrb[0].mxu0
  %3999 = vdwg.mxu0
  %v4001 = vsel %vm230, %v3847, 0
  %v4004 = vsel %vm230, %v3848, 0
  %v4007 = vsel %vm230, %v3849, 0
  %v4010 = vsel %vm230, %v3850, 0
  %v4013 = vsel %vm230, %v3851, 0
  %v4016 = vsel %vm230, %v3852, 0
  %v4019 = vsel %vm230, %v3853, 0
  %v4022 = vsel %vm230, %v3854, 0
  %4024 = vmatprep.subr.mxu0 0.0
  %4025 = vmatpush1.msra.mxu0 %v3855
  %4026 = vmatprep.subr.mxu0 0.0
  %4027 = vmatpush1.msra.mxu0 %v3856
  %4028 = vmatprep.subr.mxu0 0.0
  %4029 = vmatpush1.msra.mxu0 %v3857
  %4030 = vmatprep.subr.mxu0 0.0
  %4031 = vmatpush1.msra.mxu0 %v3858
  %4032 = vmatprep.subr.mxu0 0.0
  %4033 = vmatpush1.msra.mxu0 0.0
  %4034 = vmatprep.subr.mxu0 0.0
  %4035 = vmatpush1.msra.mxu0 0.0
  %4036 = vmatprep.subr.mxu0 0.0
  %4037 = vmatpush1.msra.mxu0 0.0
  %4038 = vmatprep.subr.mxu0 0.0
  %4039 = vmatpush1.msra.mxu0 0.0
  %4040 = vmatprep.subr.mxu0 0.0
  %4041 = vmatpush1.msra.mxu0 0.0
  %4042 = vmatprep.subr.mxu0 0.0
  %4043 = vmatpush1.msra.mxu0 0.0
  %4044 = vmatprep.subr.mxu0 0.0
  %4045 = vmatpush1.msra.mxu0 0.0
  %4046 = vmatprep.subr.mxu0 0.0
  %4047 = vmatpush1.msra.mxu0 0.0
  %4048 = vmatprep.subr.mxu0 0.0
  %4049 = vmatpush1.msra.mxu0 0.0
  %4050 = vmatprep.subr.mxu0 0.0
  %4051 = vmatpush1.msra.mxu0 0.0
  %4052 = vmatprep.subr.mxu0 0.0
  %4053 = vmatpush1.msra.mxu0 0.0
  %4054 = vmatprep.subr.mxu0 0.0
  %4055 = vmatpush1.msra.mxu0 0.0
  %4056 = vmatprep.subr.mxu0 0.0
  %4057 = vmatpush1.msra.mxu0 0.0
  %4058 = vmatprep.subr.mxu0 0.0
  %4059 = vmatpush1.msra.mxu0 0.0
  %4060 = vmatprep.subr.mxu0 0.0
  %4061 = vmatpush1.msra.mxu0 0.0
  %4062 = vmatprep.subr.mxu0 0.0
  %4063 = vmatpush1.msra.mxu0 0.0
  %4064 = vmatprep.subr.mxu0 0.0
  %4065 = vmatpush1.msra.mxu0 0.0
  %4066 = vmatprep.subr.mxu0 0.0
  %4067 = vmatpush1.msra.mxu0 0.0
  %4068 = vmatprep.subr.mxu0 0.0
  %4069 = vmatpush1.msra.mxu0 0.0
  %4070 = vmatprep.subr.mxu0 0.0
  %4071 = vmatpush1.msra.mxu0 0.0
  %4072 = vmatprep.subr.mxu0 0.0
  %4073 = vmatpush1.msra.mxu0 0.0
  %4074 = vmatprep.subr.mxu0 0.0
  %4075 = vmatpush1.msra.mxu0 0.0
  %4076 = vmatprep.subr.mxu0 0.0
  %4077 = vmatpush1.msra.mxu0 0.0
  %4078 = vmatprep.subr.mxu0 0.0
  %4079 = vmatpush1.msra.mxu0 0.0
  %4080 = vmatprep.subr.mxu0 0.0
  %4081 = vmatpush1.msra.mxu0 0.0
  %4082 = vmatprep.subr.mxu0 0.0
  %4083 = vmatpush1.msra.mxu0 0.0
  %4084 = vmatprep.subr.mxu0 0.0
  %4085 = vmatpush1.msra.mxu0 0.0
  %4086 = vmatprep.subr.mxu0 0.0
  %4087 = vmatpush1.msra.mxu0 0.0
  %4088 = vmatprep.mubr.f32.mxu0 0.0
  %4089 = vmatmul.mubr.f32.gmra.mrb[0].mxu0 %v4001
  %v4090 = vpop.f32.mrb[0].mxu0
  %v4091 = vadd.f32 %v3962, %v4090
  %v4092 = vpop.f32.mrb[0].mxu0
  %4093 = vmatprep.mubr.f32.mxu0 0.0
  %4094 = vmatmul.mubr.f32.gmra.mrb[0].mxu0 %v4004
  %v4095 = vpop.f32.mrb[0].mxu0
  %v4096 = vadd.f32 %v3967, %v4095
  %v4097 = vpop.f32.mrb[0].mxu0
  %4098 = vmatprep.mubr.f32.mxu0 0.0
  %4099 = vmatmul.mubr.f32.gmra.mrb[0].mxu0 %v4007
  %v4100 = vpop.f32.mrb[0].mxu0
  %v4101 = vadd.f32 %v3972, %v4100
  %v4102 = vpop.f32.mrb[0].mxu0
  %4103 = vmatprep.mubr.f32.mxu0 0.0
  %4104 = vmatmul.mubr.f32.gmra.mrb[0].mxu0 %v4010
  %v4105 = vpop.f32.mrb[0].mxu0
  %v4106 = vadd.f32 %v3977, %v4105
  %v4107 = vpop.f32.mrb[0].mxu0
  %4108 = vmatprep.mubr.f32.mxu0 0.0
  %4109 = vmatmul.mubr.f32.gmra.mrb[0].mxu0 %v4013
  %v4110 = vpop.f32.mrb[0].mxu0
  %v4111 = vadd.f32 %v3982, %v4110
  %v4112 = vpop.f32.mrb[0].mxu0
  %4113 = vmatprep.mubr.f32.mxu0 0.0
  %4114 = vmatmul.mubr.f32.gmra.mrb[0].mxu0 %v4016
  %v4115 = vpop.f32.mrb[0].mxu0
  %v4116 = vadd.f32 %v3987, %v4115
  %v4117 = vpop.f32.mrb[0].mxu0
  %4118 = vmatprep.mubr.f32.mxu0 0.0
  %4119 = vmatmul.mubr.f32.gmra.mrb[0].mxu0 %v4019
  %v4120 = vpop.f32.mrb[0].mxu0
  %v4121 = vadd.f32 %v3992, %v4120
  %v4122 = vpop.f32.mrb[0].mxu0
  %4123 = vmatprep.mubr.f32.mxu0 0.0
  %4124 = vmatmul.mubr.f32.gmra.mrb[0].mxu0 %v4022
  %v4125 = vpop.f32.mrb[0].mxu0
  %v4126 = vadd.f32 %v3997, %v4125
  %v4127 = vpop.f32.mrb[0].mxu0
  %4128 = vdwg.mxu0
  %v4129 = vld [vmem:[%s10] sm:$0x1]
  %v4131 = vlaneseq
  %v4132 = vshrl.u32 %v4131, 7
  %v4133 = vsub.s32 0, %v4132
  %v4134 = vrot.slane %v4129, %v4133
  %v4136 = vadd.f32 %v4091, %v4134
  %v4137 = vadd.f32 %v4096, %v4134
  %v4138 = vadd.f32 %v4101, %v4134
  %v4139 = vadd.f32 %v4106, %v4134
  %v4140 = vadd.f32 %v4111, %v4134
  %v4141 = vadd.f32 %v4116, %v4134
  %v4142 = vadd.f32 %v4121, %v4134
  %v4143 = vadd.f32 %v4126, %v4134
  %vm4144 = vcmask 64512
  %4145 = vst.msk [vmem:[%s11] sm:$0xff] %vm4144, %v4136
  %4146 = vst.msk [vmem:[%s11 + $0x8] sm:$0xff] %vm4144, %v4137
  %4147 = vst.msk [vmem:[%s11 + $0x10] sm:$0xff] %vm4144, %v4138
  %4148 = vst.msk [vmem:[%s11 + $0x18] sm:$0xff] %vm4144, %v4139
  %4149 = vst.msk [vmem:[%s11 + $0x20] sm:$0xff] %vm4144, %v4140
  %4150 = vst.msk [vmem:[%s11 + $0x28] sm:$0xff] %vm4144, %v4141
  %4151 = vst.msk [vmem:[%s11 + $0x30] sm:$0xff] %vm4144, %v4142
  %4152 = vst.msk [vmem:[%s11 + $0x38] sm:$0xff] %vm4144, %v4143
  // Predicated region
  $region46: #{bilstm_model_forward.1} parent=0 // pred_check
    _
  $region47: #{bilstm_model_forward.1} parent=0 // pred_check_branch
    %4154 = sbr.rel (0) target = $region49
  $region48: #{bilstm_model_forward.1} parent=0 // pred_region
    _
  $region49: #{bilstm_model_forward.1} parent=0 // pred_fallthru
    _
  // Predicated region
  $region50: #{bilstm_model_forward.1} parent=0 // pred_check
    _
  $region51: #{bilstm_model_forward.1} parent=0 // pred_check_branch
    %4156 = sbr.rel (0) target = $region53
  $region52: #{bilstm_model_forward.1} parent=0 // pred_region
    _
  $region53: #{bilstm_model_forward.1} parent=0 // pred_fallthru
    _

</llo_original>
